<compile_context>
chip_gen: v6e
topology: v6e:2x2x1
jax: 0.10.0
libtpu: 0.0.40
codegen_flags: <defaults>
</compile_context>

<pallas_src>
import functools
import math

import jax
import jax.numpy as jnp
from jax import lax
from jax.experimental import pallas as pl
from jax.experimental.pallas import tpu as pltpu

LN_EPS = 1e-6   # torchvision ViT uses LayerNorm(eps=1e-6)


def _layernorm(x, g, b):
    """Two-pass LayerNorm over the last dim (f32)."""
    mu = jnp.mean(x, axis=-1, keepdims=True)
    xc = x - mu
    var = jnp.mean(xc * xc, axis=-1, keepdims=True)
    return xc * (lax.rsqrt(var + LN_EPS) * g) + b


# ----------------------------------------------------------------------------
# Encoder kernel, grid = (batch_blocks, num_layers).
# The (rows, D) residual stream lives in o_ref (same block across the layer
# axis).  Layer 0 also performs the patch embedding (fused).
# ----------------------------------------------------------------------------
def _make_encoder_kernel(nb_batch, seq_pad, seq_real, hidden, heads):
    dh = hidden // heads
    scale = 1.0 / math.sqrt(dh)

    def kernel(p_ref, wp_ref, pos_ref,
               g1_ref, b1_ref, wqkv_ref, bqkv_ref, wo_ref, bo_ref,
               g2_ref, b2_ref, w1_ref, b1m_ref, w2_ref, b2m_ref,
               o_ref, attn_scr):
        layer = pl.program_id(1)

        # ---- fused patch embedding (once per batch block) -------------------
        @pl.when(layer == 0)
        def _():
            o_ref[...] = (
                jnp.dot(p_ref[...], wp_ref[...],
                        preferred_element_type=jnp.float32)
                + pos_ref[...])

        x = o_ref[...]                        # (rows, D) f32 residual stream

        # ---- LN1 + multi-head self attention ---------------------------------
        y = _layernorm(x, g1_ref[...], b1_ref[...])
        qkv = jnp.dot(y.astype(jnp.bfloat16), wqkv_ref[...],
                      preferred_element_type=jnp.float32) + bqkv_ref[...]

        # additive key-padding mask, built once per step, shared by all heads
        if seq_pad > seq_real:
            kidx = lax.broadcasted_iota(jnp.int32, (seq_pad, seq_pad), 1)
            neg_mask = jnp.where(kidx < seq_real, 0.0, -1e30)
        else:
            neg_mask = None

        # attention is tiny (S_pad x S_pad per head); static unroll per batch
        # element / head, head outputs written to scratch at static offsets
        for b in range(nb_batch):
            r0 = b * seq_pad
            for h in range(heads):
                c0 = h * dh
                qh = qkv[r0:r0 + seq_pad, c0:c0 + dh].astype(jnp.bfloat16)
                kh = qkv[r0:r0 + seq_pad,
                         hidden + c0:hidden + c0 + dh].astype(jnp.bfloat16)
                vh = qkv[r0:r0 + seq_pad,
                         2 * hidden + c0:2 * hidden + c0 + dh].astype(jnp.bfloat16)
                s = jnp.dot(qh, kh.T, preferred_element_type=jnp.float32) * scale
                if neg_mask is not None:
                    s = s + neg_mask
                s = s - jnp.max(s, axis=-1, keepdims=True)
                p = jnp.exp(s)
                p = p * pl.reciprocal(jnp.sum(p, axis=-1, keepdims=True),
                                      approx=True)
                attn_scr[r0:r0 + seq_pad, c0:c0 + dh] = jnp.dot(
                    p.astype(jnp.bfloat16), vh,
                    preferred_element_type=jnp.float32)

        attn = jnp.dot(attn_scr[...].astype(jnp.bfloat16), wo_ref[...],
                       preferred_element_type=jnp.float32) + bo_ref[...]
        x = x + attn

        # ---- LN2 + MLP --------------------------------------------------------
        y2 = _layernorm(x, g2_ref[...], b2_ref[...])
        hmid = jnp.dot(y2.astype(jnp.bfloat16), w1_ref[...],
                       preferred_element_type=jnp.float32) + b1m_ref[...]
        hmid = jax.nn.gelu(hmid, approximate=True)
        mlp = jnp.dot(hmid.astype(jnp.bfloat16), w2_ref[...],
                      preferred_element_type=jnp.float32) + b2m_ref[...]
        o_ref[...] = x + mlp

    return kernel


# ----------------------------------------------------------------------------
# Final LayerNorm on the class token + classifier head.
# Output is a 128-lane padded slab (lane-dense store), sliced in the wrapper.
# ----------------------------------------------------------------------------
def _head_kernel(x_ref, g_ref, b_ref, w_ref, bh_ref, o_ref):
    y = _layernorm(x_ref[...], g_ref[...], b_ref[...])
    o_ref[...] = jnp.dot(y.astype(jnp.bfloat16), w_ref[...],
                         preferred_element_type=jnp.float32) + bh_ref[...]


def _vmem_limit_bytes():
    """Budget scoped VMEM from the actual chip capacity (v7x: 64 MiB/TC)."""
    try:
        cap = pltpu.get_tpu_info().vmem_capacity_bytes
        return min(100 * 1024 * 1024, int(cap * 0.85))
    except Exception:          # pragma: no cover - unknown backend / query fail
        return None            # fall back to the compiler default


# ----------------------------------------------------------------------------
# One-time weight preparation (stack / transpose / cast) -- done OUTSIDE the
# per-forward jit so it is not re-executed every call.
# ----------------------------------------------------------------------------
def prepare_params(params, *, in_channels, hidden, mlp_dim, num_layers,
                   num_classes, patch, num_patches):
    D = hidden
    CK = in_channels * patch
    P = num_patches
    S_real = P + 1
    S_pad = ((S_real + 7) // 8) * 8

    def stk(name):
        return jnp.stack([params["layers"][i][name] for i in range(num_layers)])

    # per-position additive term: row0 = cls + pos[0]; rows 1..P = pos + conv_b
    pos_seq = jnp.zeros((S_pad, D), jnp.float32)
    pos_seq = pos_seq.at[0].set(params["pos_emb"][0] + params["cls_token"])
    pos_seq = pos_seq.at[1:1 + P].set(params["pos_emb"][1:1 + P]
                                      + params["conv_b"][None, :])

    cls_pad = ((num_classes + 127) // 128) * 128
    w_head = jnp.zeros((D, cls_pad), jnp.bfloat16)
    w_head = w_head.at[:, :num_classes].set(params["head_w"].T.astype(jnp.bfloat16))
    b_head = jnp.zeros((1, cls_pad), jnp.float32)
    b_head = b_head.at[:, :num_classes].set(params["head_b"][None, :])

    return {
        "w_proj": params["conv_w"].reshape(D, CK).T.astype(jnp.bfloat16),
        "pos_seq": pos_seq,
        "ln1_g": stk("ln1_w")[:, None, :], "ln1_b": stk("ln1_b")[:, None, :],
        "w_qkv": jnp.transpose(stk("qkv_w"), (0, 2, 1)).astype(jnp.bfloat16),
        "b_qkv": stk("qkv_b")[:, None, :],
        "w_o": jnp.transpose(stk("out_w"), (0, 2, 1)).astype(jnp.bfloat16),
        "b_o": stk("out_b")[:, None, :],
        "ln2_g": stk("ln2_w")[:, None, :], "ln2_b": stk("ln2_b")[:, None, :],
        "w_1": jnp.transpose(stk("mlp_w1"), (0, 2, 1)).astype(jnp.bfloat16),
        "b_1": stk("mlp_b1")[:, None, :],
        "w_2": jnp.transpose(stk("mlp_w2"), (0, 2, 1)).astype(jnp.bfloat16),
        "b_2": stk("mlp_b2")[:, None, :],
        "ln_g": params["ln_w"][None, :], "ln_b": params["ln_b"][None, :],
        "w_head": w_head, "b_head": b_head,
    }


# ----------------------------------------------------------------------------
# Forward wrapper
# ----------------------------------------------------------------------------
@functools.partial(jax.jit, static_argnames=(
    "hidden", "heads", "mlp_dim", "num_layers", "num_classes", "patch",
    "batch_blocks"))
def vit1d_forward_pallas(x, prep, *, hidden, heads, mlp_dim, num_layers,
                         num_classes, patch, batch_blocks=1):
    """x: (N, C_in, L) float32 EEG. Returns logits (N, num_classes)."""
    N, C, L = x.shape
    D, M = hidden, mlp_dim
    P = L // patch
    S_real = P + 1
    S_pad = ((S_real + 7) // 8) * 8
    CK = C * patch
    dh = D // heads

    nb = batch_blocks                       # >1 on v7x to split across both TCs
    assert N % nb == 0
    Nb = N // nb
    rows = Nb * S_pad

    # ---- patch extraction: stride == kernel -> pure reshape (no duplication)
    patches = x[:, :, :P * patch].reshape(N, C, P, patch)
    patches = patches.transpose(0, 2, 1, 3).reshape(N, P, CK)
    patches_p = jnp.zeros((N, S_pad, CK), jnp.bfloat16)
    patches_p = patches_p.at[:, 1:1 + P, :].set(patches.astype(jnp.bfloat16))
    patches_flat = patches_p.reshape(N * S_pad, CK)

    pos_full = jnp.tile(prep["pos_seq"], (N, 1))            # (N*S_pad, D) f32

    # ---- cost estimate (weights counted once per layer per batch block) -----
    flops_layer = (2 * N * S_pad * D * 3 * D
                   + 2 * N * heads * S_pad * S_pad * dh * 2
                   + 2 * N * S_pad * D * D
                   + 2 * N * S_pad * D * M * 2)
    weight_bytes_layer = 2 * (D * 3 * D + D * D + 2 * D * M) + 4 * (7 * D + M)
    cost = pl.CostEstimate(
        flops=int(num_layers * flops_layer + 2 * N * S_pad * CK * D),
        transcendentals=int(num_layers * (N * S_pad * M
                                          + N * heads * S_pad * S_pad)),
        bytes_accessed=int(nb * num_layers * weight_bytes_layer
                           + N * S_pad * (2 * CK + 8 * D)))

    def spec_w(shape):
        return pl.BlockSpec((None,) + shape, lambda c, l: (l, 0, 0))

    y = pl.pallas_call(
        _make_encoder_kernel(Nb, S_pad, S_real, D, heads),
        out_shape=jax.ShapeDtypeStruct((N * S_pad, D), jnp.float32),
        grid=(nb, num_layers),
        in_specs=[
            pl.BlockSpec((rows, CK), lambda c, l: (c, 0)),     # patches (resident)
            pl.BlockSpec((CK, D), lambda c, l: (0, 0)),        # proj weight
            pl.BlockSpec((rows, D), lambda c, l: (c, 0)),      # pos (+cls, +bias)
            spec_w((1, D)), spec_w((1, D)),                    # ln1
            spec_w((D, 3 * D)), spec_w((1, 3 * D)),            # qkv
            spec_w((D, D)), spec_w((1, D)),                    # out proj
            spec_w((1, D)), spec_w((1, D)),                    # ln2
            spec_w((D, M)), spec_w((1, M)),                    # mlp1
            spec_w((M, D)), spec_w((1, D)),                    # mlp2
        ],
        out_specs=pl.BlockSpec((rows, D), lambda c, l: (c, 0)),
        scratch_shapes=[pltpu.VMEM((rows, D), jnp.float32)],
        compiler_params=pltpu.CompilerParams(
            dimension_semantics=("parallel", "arbitrary"),
            vmem_limit_bytes=_vmem_limit_bytes()),
        cost_estimate=cost,
    )(patches_flat, prep["w_proj"], pos_full,
      prep["ln1_g"], prep["ln1_b"], prep["w_qkv"], prep["b_qkv"],
      prep["w_o"], prep["b_o"], prep["ln2_g"], prep["ln2_b"],
      prep["w_1"], prep["b_1"], prep["w_2"], prep["b_2"])

    # ---- final LN + head on the class token (lane-dense padded output) ------
    cls = y.reshape(N, S_pad, D)[:, 0, :]                    # (N, D)
    cls_pad = prep["w_head"].shape[1]

    vmem = pl.BlockSpec(memory_space=pltpu.MemorySpace.VMEM)
    logits_pad = pl.pallas_call(
        _head_kernel,
        out_shape=jax.ShapeDtypeStruct((N, cls_pad), jnp.float32),
        in_specs=[vmem] * 5,
        out_specs=vmem,
    )(cls, prep["ln_g"], prep["ln_b"], prep["w_head"], prep["b_head"])
    return logits_pad[:, :num_classes]


# ----------------------------------------------------------------------------
# Pure-JAX reference (same math / same bf16 matmul inputs, no Pallas)
# ----------------------------------------------------------------------------
def vit1d_forward_ref(x, params, *, hidden, heads, mlp_dim, num_layers,
                      num_classes, patch):
    N, C, L = x.shape
    D = hidden
    dh = D // heads
    P = L // patch

    def mm(a, w):
        return jnp.dot(a.astype(jnp.bfloat16), w.astype(jnp.bfloat16),
                       preferred_element_type=jnp.float32)

    def ln(t, g, b):
        mu = jnp.mean(t, -1, keepdims=True)
        var = jnp.mean((t - mu) ** 2, -1, keepdims=True)
        return (t - mu) * lax.rsqrt(var + LN_EPS) * g + b

    patches = x[:, :, :P * patch].reshape(N, C, P, patch)
    patches = patches.transpose(0, 2, 1, 3).reshape(N, P, C * patch)
    tok = mm(patches, params["conv_w"].reshape(D, C * patch).T) + params["conv_b"]
    cls = jnp.broadcast_to(params["cls_token"], (N, 1, D))
    xs = jnp.concatenate([cls, tok], axis=1) + params["pos_emb"][None]

    for i in range(num_layers):
        lp = params["layers"][i]
        y = ln(xs, lp["ln1_w"], lp["ln1_b"])
        qkv = mm(y, lp["qkv_w"].T) + lp["qkv_b"]
        q, k, v = jnp.split(qkv, 3, axis=-1)
        q = q.reshape(N, -1, heads, dh).transpose(0, 2, 1, 3)
        k = k.reshape(N, -1, heads, dh).transpose(0, 2, 1, 3)
        v = v.reshape(N, -1, heads, dh).transpose(0, 2, 1, 3)
        s = jnp.einsum("nhqd,nhkd->nhqk", q.astype(jnp.bfloat16),
                       k.astype(jnp.bfloat16),
                       preferred_element_type=jnp.float32) / math.sqrt(dh)
        p = jax.nn.softmax(s, axis=-1)
        o = jnp.einsum("nhqk,nhkd->nhqd", p.astype(jnp.bfloat16),
                       v.astype(jnp.bfloat16),
                       preferred_element_type=jnp.float32)
        o = o.transpose(0, 2, 1, 3).reshape(N, -1, D)
        xs = xs + mm(o, lp["out_w"].T) + lp["out_b"]
        y2 = ln(xs, lp["ln2_w"], lp["ln2_b"])
        h1 = jax.nn.gelu(mm(y2, lp["mlp_w1"].T) + lp["mlp_b1"], approximate=True)
        xs = xs + mm(h1, lp["mlp_w2"].T) + lp["mlp_b2"]

    xs = ln(xs, params["ln_w"], params["ln_b"])
    return mm(xs[:, 0, :], params["head_w"].T) + params["head_b"]


# ----------------------------------------------------------------------------
# Deterministic parameter init (PyTorch-layout weight shapes)
# ----------------------------------------------------------------------------
def init_params(key, *, in_channels, hidden, heads, mlp_dim, num_layers,
                num_classes, patch, num_patches):
    D, S = hidden, num_patches + 1
    keys = jax.random.split(key, 16 + 16 * num_layers)
    it = iter(keys)

    def nrm(shape, std):
        return std * jax.random.normal(next(it), shape, jnp.float32)

    p = {
        "conv_w": nrm((D, in_channels, patch), 0.05),
        "conv_b": nrm((D,), 0.02),
        "cls_token": nrm((D,), 0.02),
        "pos_emb": nrm((S, D), 0.02),
        "ln_w": jnp.ones((D,), jnp.float32),
        "ln_b": jnp.zeros((D,), jnp.float32),
        "head_w": nrm((num_classes, D), 0.05),
        "head_b": jnp.zeros((num_classes,), jnp.float32),
        "layers": [],
    }
    for _ in range(num_layers):
        p["layers"].append({
            "ln1_w": jnp.ones((D,), jnp.float32),
            "ln1_b": jnp.zeros((D,), jnp.float32),
            "qkv_w": nrm((3 * D, D), 0.05),
            "qkv_b": nrm((3 * D,), 0.02),
            "out_w": nrm((D, D), 0.05),
            "out_b": nrm((D,), 0.02),
            "ln2_w": jnp.ones((D,), jnp.float32),
            "ln2_b": jnp.zeros((D,), jnp.float32),
            "mlp_w1": nrm((mlp_dim, D), 0.05),
            "mlp_b1": nrm((mlp_dim,), 0.02),
            "mlp_w2": nrm((D, mlp_dim), 0.05),
            "mlp_b2": nrm((D,), 0.02),
        })
    return p


if __name__ == "__main__":
    # Scaled-down config (real module: hidden 1024, 24 layers, 16 heads).
    N, C_IN, LEN = 2, 8, 112           # 7 patches of 16 -> seq len 8 w/ cls token
    HIDDEN, HEADS, MLP, LAYERS, CLASSES, PATCH = 128, 4, 256, 2, 2, 16

    key = jax.random.PRNGKey(0)
    kx, kp = jax.random.split(key)
    x = jax.random.normal(kx, (N, C_IN, LEN), jnp.float32)
    params = init_params(kp, in_channels=C_IN, hidden=HIDDEN, heads=HEADS,
                         mlp_dim=MLP, num_layers=LAYERS, num_classes=CLASSES,
                         patch=PATCH, num_patches=LEN // PATCH)

    # one-time weight prep (stack / transpose / bf16 cast) outside the fwd jit
    prep = jax.tree_util.tree_map(
        jax.block_until_ready,
        prepare_params(params, in_channels=C_IN, hidden=HIDDEN, mlp_dim=MLP,
                       num_layers=LAYERS, num_classes=CLASSES, patch=PATCH,
                       num_patches=LEN // PATCH))

    logits = vit1d_forward_pallas(x, prep, hidden=HIDDEN, heads=HEADS,
                                  mlp_dim=MLP, num_layers=LAYERS,
                                  num_classes=CLASSES, patch=PATCH,
                                  batch_blocks=1)
    logits = jax.block_until_ready(logits)
    assert logits.shape == (N, CLASSES)

    ref = vit1d_forward_ref(x, params, hidden=HIDDEN, heads=HEADS, mlp_dim=MLP,
                            num_layers=LAYERS, num_classes=CLASSES, patch=PATCH)
    err = float(jnp.max(jnp.abs(logits - ref)))
    assert err < 5e-2, f"max abs err {err}"
    print("KERNEL_OK")
</pallas_src>

<mosaic_0001>
module attributes {stable_mosaic.version = 11 : i64} {
  func.func @_head_kernel(%arg0: memref<2x128xf32, #tpu.memory_space<vmem>>, %arg1: memref<1x128xf32, #tpu.memory_space<vmem>>, %arg2: memref<1x128xf32, #tpu.memory_space<vmem>>, %arg3: memref<128x128xbf16, #tpu.memory_space<vmem>>, %arg4: memref<1x128xf32, #tpu.memory_space<vmem>>, %arg5: memref<2x128xf32, #tpu.memory_space<vmem>>) attributes {dimension_semantics = [], scalar_prefetch = 0 : i64, scratch_operands = 0 : i64, tpu.core_type = #tpu.core_type<tc>} {
    %c0 = arith.constant 0 : index
    %c0_0 = arith.constant 0 : index
    %0 = vector.load %arg0[%c0, %c0_0] : memref<2x128xf32, #tpu.memory_space<vmem>>, vector<2x128xf32>
    %c0_1 = arith.constant 0 : index
    %c0_2 = arith.constant 0 : index
    %1 = vector.load %arg1[%c0_1, %c0_2] : memref<1x128xf32, #tpu.memory_space<vmem>>, vector<1x128xf32>
    %c0_3 = arith.constant 0 : index
    %c0_4 = arith.constant 0 : index
    %2 = vector.load %arg2[%c0_3, %c0_4] : memref<1x128xf32, #tpu.memory_space<vmem>>, vector<1x128xf32>
    %cst = arith.constant dense<0.000000e+00> : vector<2xf32>
    %3 = vector.multi_reduction <add>, %0, %cst [1] : vector<2x128xf32> to vector<2xf32>
    %4 = vector.shape_cast %3 : vector<2xf32> to vector<2x1xf32>
    %cst_5 = arith.constant 1.280000e+02 : f32
    %5 = vector.broadcast %cst_5 : f32 to vector<2x1xf32>
    %6 = arith.divf %4, %5 : vector<2x1xf32>
    %7 = vector.broadcast %6 : vector<2x1xf32> to vector<2x128xf32>
    %8 = arith.subf %0, %7 : vector<2x128xf32>
    %9 = arith.mulf %8, %8 : vector<2x128xf32>
    %cst_6 = arith.constant dense<0.000000e+00> : vector<2xf32>
    %10 = vector.multi_reduction <add>, %9, %cst_6 [1] : vector<2x128xf32> to vector<2xf32>
    %11 = vector.shape_cast %10 : vector<2xf32> to vector<2x1xf32>
    %cst_7 = arith.constant 1.280000e+02 : f32
    %12 = vector.broadcast %cst_7 : f32 to vector<2x1xf32>
    %13 = arith.divf %11, %12 : vector<2x1xf32>
    %cst_8 = arith.constant 9.99999997E-7 : f32
    %14 = vector.broadcast %cst_8 : f32 to vector<2x1xf32>
    %15 = arith.addf %13, %14 : vector<2x1xf32>
    %16 = math.rsqrt %15 : vector<2x1xf32>
    %17 = vector.broadcast %16 : vector<2x1xf32> to vector<2x128xf32>
    %18 = vector.broadcast %1 : vector<1x128xf32> to vector<2x128xf32>
    %19 = arith.mulf %17, %18 : vector<2x128xf32>
    %20 = arith.mulf %8, %19 : vector<2x128xf32>
    %21 = vector.broadcast %2 : vector<1x128xf32> to vector<2x128xf32>
    %22 = arith.addf %20, %21 : vector<2x128xf32>
    %23 = arith.truncf %22 : vector<2x128xf32> to vector<2x128xbf16>
    %c0_9 = arith.constant 0 : index
    %c0_10 = arith.constant 0 : index
    %24 = vector.load %arg3[%c0_9, %c0_10] : memref<128x128xbf16, #tpu.memory_space<vmem>>, vector<128x128xbf16>
    %cst_11 = arith.constant dense<0.000000e+00> : vector<2x128xf32>
    %25 = tpu.matmul %23, %24, %cst_11 {dimension_numbers = #tpu.dot_dimension_numbers<[1], [0], [0], [1], [0, 0, 1, 1], [], []>} : vector<2x128xbf16>, vector<128x128xbf16>, vector<2x128xf32> -> vector<2x128xf32>
    %c0_12 = arith.constant 0 : index
    %c0_13 = arith.constant 0 : index
    %26 = vector.load %arg4[%c0_12, %c0_13] : memref<1x128xf32, #tpu.memory_space<vmem>>, vector<1x128xf32>
    %27 = vector.broadcast %26 : vector<1x128xf32> to vector<2x128xf32>
    %28 = arith.addf %25, %27 : vector<2x128xf32>
    %c0_14 = arith.constant 0 : index
    %c0_15 = arith.constant 0 : index
    %29 = vector.load %arg5[%c0_14, %c0_15] : memref<2x128xf32, #tpu.memory_space<vmem>>, vector<2x128xf32>
    tpu.vector_store %arg5[%c0_14, %c0_15], %28 {strides = array<i32>} : memref<2x128xf32, #tpu.memory_space<vmem>>, vector<2x128xf32>,
    return
  }
}

module attributes {stable_mosaic.version = 11 : i64} {
  func.func @kernel(%arg0: i32, %arg1: i32, %arg2: memref<16x128xbf16, #tpu.memory_space<vmem>>, %arg3: memref<128x128xbf16, #tpu.memory_space<vmem>>, %arg4: memref<16x128xf32, #tpu.memory_space<vmem>>, %arg5: memref<1x1x128xf32, #tpu.memory_space<vmem>>, %arg6: memref<1x1x128xf32, #tpu.memory_space<vmem>>, %arg7: memref<1x128x384xbf16, #tpu.memory_space<vmem>>, %arg8: memref<1x1x384xf32, #tpu.memory_space<vmem>>, %arg9: memref<1x128x128xbf16, #tpu.memory_space<vmem>>, %arg10: memref<1x1x128xf32, #tpu.memory_space<vmem>>, %arg11: memref<1x1x128xf32, #tpu.memory_space<vmem>>, %arg12: memref<1x1x128xf32, #tpu.memory_space<vmem>>, %arg13: memref<1x128x256xbf16, #tpu.memory_space<vmem>>, %arg14: memref<1x1x256xf32, #tpu.memory_space<vmem>>, %arg15: memref<1x256x128xbf16, #tpu.memory_space<vmem>>, %arg16: memref<1x1x128xf32, #tpu.memory_space<vmem>>, %arg17: memref<16x128xf32, #tpu.memory_space<vmem>>, %arg18: memref<16x128xf32, #tpu.memory_space<vmem>>) attributes {dimension_semantics = [#tpu.dimension_semantics<parallel>, #tpu.dimension_semantics<arbitrary>], iteration_bounds = array<i64: 1, 2>, scalar_prefetch = 0 : i64, scratch_operands = 1 : i64, tpu.core_type = #tpu.core_type<tc>, window_params = [{transform_indices = @transform_0, window_bounds = array<i64: 16, 128>}, {pipeline_mode = #tpu.pipeline_mode<synchronous>, transform_indices = @transform_1, window_bounds = array<i64: 128, 128>}, {transform_indices = @transform_2, window_bounds = array<i64: 16, 128>}, {transform_indices = @transform_3, window_bounds = array<i64: 1, 1, 128>}, {transform_indices = @transform_4, window_bounds = array<i64: 1, 1, 128>}, {transform_indices = @transform_5, window_bounds = array<i64: 1, 128, 384>}, {transform_indices = @transform_6, window_bounds = array<i64: 1, 1, 384>}, {transform_indices = @transform_7, window_bounds = array<i64: 1, 128, 128>}, {transform_indices = @transform_8, window_bounds = array<i64: 1, 1, 128>}, {transform_indices = @transform_9, window_bounds = array<i64: 1, 1, 128>}, {transform_indices = @transform_10, window_bounds = array<i64: 1, 1, 128>}, {transform_indices = @transform_11, window_bounds = array<i64: 1, 128, 256>}, {transform_indices = @transform_12, window_bounds = array<i64: 1, 1, 256>}, {transform_indices = @transform_13, window_bounds = array<i64: 1, 256, 128>}, {transform_indices = @transform_14, window_bounds = array<i64: 1, 1, 128>}, {transform_indices = @transform_15, window_bounds = array<i64: 16, 128>}]} {
    %c0_i32 = arith.constant 0 : i32
    %0 = arith.cmpi eq, %arg1, %c0_i32 : i32
    %1 = arith.extui %0 : i1 to i32
    %c0_i32_0 = arith.constant 0 : i32
    %2 = arith.cmpi ne, %1, %c0_i32_0 : i32
    scf.if %2 {
      %c0_111 = arith.constant 0 : index
      %c0_112 = arith.constant 0 : index
      %285 = vector.load %arg2[%c0_111, %c0_112] : memref<16x128xbf16, #tpu.memory_space<vmem>>, vector<16x128xbf16>
      %c0_113 = arith.constant 0 : index
      %c0_114 = arith.constant 0 : index
      %286 = vector.load %arg3[%c0_113, %c0_114] : memref<128x128xbf16, #tpu.memory_space<vmem>>, vector<128x128xbf16>
      %cst_115 = arith.constant dense<0.000000e+00> : vector<16x128xf32>
      %287 = tpu.matmul %285, %286, %cst_115 {dimension_numbers = #tpu.dot_dimension_numbers<[1], [0], [0], [1], [0, 0, 1, 1], [], []>} : vector<16x128xbf16>, vector<128x128xbf16>, vector<16x128xf32> -> vector<16x128xf32>
      %c0_116 = arith.constant 0 : index
      %c0_117 = arith.constant 0 : index
      %288 = vector.load %arg4[%c0_116, %c0_117] : memref<16x128xf32, #tpu.memory_space<vmem>>, vector<16x128xf32>
      %289 = arith.addf %287, %288 : vector<16x128xf32>
      %c0_118 = arith.constant 0 : index
      %c0_119 = arith.constant 0 : index
      %290 = vector.load %arg17[%c0_118, %c0_119] : memref<16x128xf32, #tpu.memory_space<vmem>>, vector<16x128xf32>
      tpu.vector_store %arg17[%c0_118, %c0_119], %289 {strides = array<i32>} : memref<16x128xf32, #tpu.memory_space<vmem>>, vector<16x128xf32>,
    } else {
    }
    %c0 = arith.constant 0 : index
    %c0_1 = arith.constant 0 : index
    %3 = vector.load %arg17[%c0, %c0_1] : memref<16x128xf32, #tpu.memory_space<vmem>>, vector<16x128xf32>
    %c0_2 = arith.constant 0 : index
    %c0_3 = arith.constant 0 : index
    %c0_4 = arith.constant 0 : index
    %4 = vector.load %arg5[%c0_2, %c0_3, %c0_4] : memref<1x1x128xf32, #tpu.memory_space<vmem>>, vector<1x1x128xf32>
    %5 = vector.shape_cast %4 : vector<1x1x128xf32> to vector<1x128xf32>
    %c0_5 = arith.constant 0 : index
    %c0_6 = arith.constant 0 : index
    %c0_7 = arith.constant 0 : index
    %6 = vector.load %arg6[%c0_5, %c0_6, %c0_7] : memref<1x1x128xf32, #tpu.memory_space<vmem>>, vector<1x1x128xf32>
    %7 = vector.shape_cast %6 : vector<1x1x128xf32> to vector<1x128xf32>
    %cst = arith.constant dense<0.000000e+00> : vector<16xf32>
    %8 = vector.multi_reduction <add>, %3, %cst [1] : vector<16x128xf32> to vector<16xf32>
    %9 = vector.shape_cast %8 : vector<16xf32> to vector<16x1xf32>
    %cst_8 = arith.constant 1.280000e+02 : f32
    %10 = vector.broadcast %cst_8 : f32 to vector<16x1xf32>
    %11 = arith.divf %9, %10 : vector<16x1xf32>
    %12 = vector.broadcast %11 : vector<16x1xf32> to vector<16x128xf32>
    %13 = arith.subf %3, %12 : vector<16x128xf32>
    %14 = arith.mulf %13, %13 : vector<16x128xf32>
    %cst_9 = arith.constant dense<0.000000e+00> : vector<16xf32>
    %15 = vector.multi_reduction <add>, %14, %cst_9 [1] : vector<16x128xf32> to vector<16xf32>
    %16 = vector.shape_cast %15 : vector<16xf32> to vector<16x1xf32>
    %cst_10 = arith.constant 1.280000e+02 : f32
    %17 = vector.broadcast %cst_10 : f32 to vector<16x1xf32>
    %18 = arith.divf %16, %17 : vector<16x1xf32>
    %cst_11 = arith.constant 9.99999997E-7 : f32
    %19 = vector.broadcast %cst_11 : f32 to vector<16x1xf32>
    %20 = arith.addf %18, %19 : vector<16x1xf32>
    %21 = math.rsqrt %20 : vector<16x1xf32>
    %22 = vector.broadcast %21 : vector<16x1xf32> to vector<16x128xf32>
    %23 = vector.broadcast %5 : vector<1x128xf32> to vector<16x128xf32>
    %24 = arith.mulf %22, %23 : vector<16x128xf32>
    %25 = arith.mulf %13, %24 : vector<16x128xf32>
    %26 = vector.broadcast %7 : vector<1x128xf32> to vector<16x128xf32>
    %27 = arith.addf %25, %26 : vector<16x128xf32>
    %28 = arith.truncf %27 : vector<16x128xf32> to vector<16x128xbf16>
    %c0_12 = arith.constant 0 : index
    %c0_13 = arith.constant 0 : index
    %c0_14 = arith.constant 0 : index
    %29 = vector.load %arg7[%c0_12, %c0_13, %c0_14] : memref<1x128x384xbf16, #tpu.memory_space<vmem>>, vector<1x128x384xbf16>
    %30 = vector.shape_cast %29 : vector<1x128x384xbf16> to vector<128x384xbf16>
    %cst_15 = arith.constant dense<0.000000e+00> : vector<16x384xf32>
    %31 = tpu.matmul %28, %30, %cst_15 {dimension_numbers = #tpu.dot_dimension_numbers<[1], [0], [0], [1], [0, 0, 1, 1], [], []>} : vector<16x128xbf16>, vector<128x384xbf16>, vector<16x384xf32> -> vector<16x384xf32>
    %c0_16 = arith.constant 0 : index
    %c0_17 = arith.constant 0 : index
    %c0_18 = arith.constant 0 : index
    %32 = vector.load %arg8[%c0_16, %c0_17, %c0_18] : memref<1x1x384xf32, #tpu.memory_space<vmem>>, vector<1x1x384xf32>
    %33 = vector.shape_cast %32 : vector<1x1x384xf32> to vector<1x384xf32>
    %34 = vector.broadcast %33 : vector<1x384xf32> to vector<16x384xf32>
    %35 = arith.addf %31, %34 : vector<16x384xf32>
    %36 = vector.extract_strided_slice %35 {offsets = [0, 0], sizes = [8, 32], strides = [1, 1]} : vector<16x384xf32> to vector<8x32xf32>
    %37 = arith.truncf %36 : vector<8x32xf32> to vector<8x32xbf16>
    %38 = vector.extract_strided_slice %35 {offsets = [0, 128], sizes = [8, 32], strides = [1, 1]} : vector<16x384xf32> to vector<8x32xf32>
    %39 = arith.truncf %38 : vector<8x32xf32> to vector<8x32xbf16>
    %40 = vector.extract_strided_slice %35 {offsets = [0, 256], sizes = [8, 32], strides = [1, 1]} : vector<16x384xf32> to vector<8x32xf32>
    %41 = arith.truncf %40 : vector<8x32xf32> to vector<8x32xbf16>
    %42 = tpu.transpose %39, [1, 0] : vector<8x32xbf16> -> vector<32x8xbf16>
    %cst_19 = arith.constant dense<0.000000e+00> : vector<8x8xf32>
    %43 = tpu.matmul %37, %42, %cst_19 {dimension_numbers = #tpu.dot_dimension_numbers<[1], [0], [0], [1], [0, 0, 1, 1], [], []>} : vector<8x32xbf16>, vector<32x8xbf16>, vector<8x8xf32> -> vector<8x8xf32>
    %cst_20 = arith.constant 0.176776692 : f32
    %44 = vector.broadcast %cst_20 : f32 to vector<8x8xf32>
    %45 = arith.mulf %43, %44 : vector<8x8xf32>
    %cst_21 = arith.constant dense<0xFF800000> : vector<8xf32>
    %46 = vector.multi_reduction <maximumf>, %45, %cst_21 [1] : vector<8x8xf32> to vector<8xf32>
    %47 = vector.shape_cast %46 : vector<8xf32> to vector<8x1xf32>
    %48 = vector.broadcast %47 : vector<8x1xf32> to vector<8x8xf32>
    %49 = arith.subf %45, %48 : vector<8x8xf32>
    %50 = math.exp %49 : vector<8x8xf32>
    %cst_22 = arith.constant dense<0.000000e+00> : vector<8xf32>
    %51 = vector.multi_reduction <add>, %50, %cst_22 [1] : vector<8x8xf32> to vector<8xf32>
    %52 = vector.shape_cast %51 : vector<8xf32> to vector<8x1xf32>
    %53 = tpu.reciprocal %52 {approx = true} : vector<8x1xf32> -> vector<8x1xf32>
    %54 = vector.broadcast %53 : vector<8x1xf32> to vector<8x8xf32>
    %55 = arith.mulf %50, %54 : vector<8x8xf32>
    %56 = arith.truncf %55 : vector<8x8xf32> to vector<8x8xbf16>
    %cst_23 = arith.constant dense<0.000000e+00> : vector<8x32xf32>
    %57 = tpu.matmul %56, %41, %cst_23 {dimension_numbers = #tpu.dot_dimension_numbers<[1], [0], [0], [1], [0, 0, 1, 1], [], []>} : vector<8x8xbf16>, vector<8x32xbf16>, vector<8x32xf32> -> vector<8x32xf32>
    %c0_24 = arith.constant 0 : index
    %c0_25 = arith.constant 0 : index
    %58 = vector.load %arg18[%c0_24, %c0_25] : memref<16x128xf32, #tpu.memory_space<vmem>>, vector<8x32xf32>
    tpu.vector_store %arg18[%c0_24, %c0_25], %57 {strides = array<i32>} : memref<16x128xf32, #tpu.memory_space<vmem>>, vector<8x32xf32>,
    %59 = vector.extract_strided_slice %35 {offsets = [0, 32], sizes = [8, 32], strides = [1, 1]} : vector<16x384xf32> to vector<8x32xf32>
    %60 = arith.truncf %59 : vector<8x32xf32> to vector<8x32xbf16>
    %61 = vector.extract_strided_slice %35 {offsets = [0, 160], sizes = [8, 32], strides = [1, 1]} : vector<16x384xf32> to vector<8x32xf32>
    %62 = arith.truncf %61 : vector<8x32xf32> to vector<8x32xbf16>
    %63 = vector.extract_strided_slice %35 {offsets = [0, 288], sizes = [8, 32], strides = [1, 1]} : vector<16x384xf32> to vector<8x32xf32>
    %64 = arith.truncf %63 : vector<8x32xf32> to vector<8x32xbf16>
    %65 = tpu.transpose %62, [1, 0] : vector<8x32xbf16> -> vector<32x8xbf16>
    %cst_26 = arith.constant dense<0.000000e+00> : vector<8x8xf32>
    %66 = tpu.matmul %60, %65, %cst_26 {dimension_numbers = #tpu.dot_dimension_numbers<[1], [0], [0], [1], [0, 0, 1, 1], [], []>} : vector<8x32xbf16>, vector<32x8xbf16>, vector<8x8xf32> -> vector<8x8xf32>
    %cst_27 = arith.constant 0.176776692 : f32
    %67 = vector.broadcast %cst_27 : f32 to vector<8x8xf32>
    %68 = arith.mulf %66, %67 : vector<8x8xf32>
    %cst_28 = arith.constant dense<0xFF800000> : vector<8xf32>
    %69 = vector.multi_reduction <maximumf>, %68, %cst_28 [1] : vector<8x8xf32> to vector<8xf32>
    %70 = vector.shape_cast %69 : vector<8xf32> to vector<8x1xf32>
    %71 = vector.broadcast %70 : vector<8x1xf32> to vector<8x8xf32>
    %72 = arith.subf %68, %71 : vector<8x8xf32>
    %73 = math.exp %72 : vector<8x8xf32>
    %cst_29 = arith.constant dense<0.000000e+00> : vector<8xf32>
    %74 = vector.multi_reduction <add>, %73, %cst_29 [1] : vector<8x8xf32> to vector<8xf32>
    %75 = vector.shape_cast %74 : vector<8xf32> to vector<8x1xf32>
    %76 = tpu.reciprocal %75 {approx = true} : vector<8x1xf32> -> vector<8x1xf32>
    %77 = vector.broadcast %76 : vector<8x1xf32> to vector<8x8xf32>
    %78 = arith.mulf %73, %77 : vector<8x8xf32>
    %79 = arith.truncf %78 : vector<8x8xf32> to vector<8x8xbf16>
    %cst_30 = arith.constant dense<0.000000e+00> : vector<8x32xf32>
    %80 = tpu.matmul %79, %64, %cst_30 {dimension_numbers = #tpu.dot_dimension_numbers<[1], [0], [0], [1], [0, 0, 1, 1], [], []>} : vector<8x8xbf16>, vector<8x32xbf16>, vector<8x32xf32> -> vector<8x32xf32>
    %c0_31 = arith.constant 0 : index
    %c32 = arith.constant 32 : index
    %81 = vector.load %arg18[%c0_31, %c32] : memref<16x128xf32, #tpu.memory_space<vmem>>, vector<8x32xf32>
    tpu.vector_store %arg18[%c0_31, %c32], %80 {strides = array<i32>} : memref<16x128xf32, #tpu.memory_space<vmem>>, vector<8x32xf32>,
    %82 = vector.extract_strided_slice %35 {offsets = [0, 64], sizes = [8, 32], strides = [1, 1]} : vector<16x384xf32> to vector<8x32xf32>
    %83 = arith.truncf %82 : vector<8x32xf32> to vector<8x32xbf16>
    %84 = vector.extract_strided_slice %35 {offsets = [0, 192], sizes = [8, 32], strides = [1, 1]} : vector<16x384xf32> to vector<8x32xf32>
    %85 = arith.truncf %84 : vector<8x32xf32> to vector<8x32xbf16>
    %86 = vector.extract_strided_slice %35 {offsets = [0, 320], sizes = [8, 32], strides = [1, 1]} : vector<16x384xf32> to vector<8x32xf32>
    %87 = arith.truncf %86 : vector<8x32xf32> to vector<8x32xbf16>
    %88 = tpu.transpose %85, [1, 0] : vector<8x32xbf16> -> vector<32x8xbf16>
    %cst_32 = arith.constant dense<0.000000e+00> : vector<8x8xf32>
    %89 = tpu.matmul %83, %88, %cst_32 {dimension_numbers = #tpu.dot_dimension_numbers<[1], [0], [0], [1], [0, 0, 1, 1], [], []>} : vector<8x32xbf16>, vector<32x8xbf16>, vector<8x8xf32> -> vector<8x8xf32>
    %cst_33 = arith.constant 0.176776692 : f32
    %90 = vector.broadcast %cst_33 : f32 to vector<8x8xf32>
    %91 = arith.mulf %89, %90 : vector<8x8xf32>
    %cst_34 = arith.constant dense<0xFF800000> : vector<8xf32>
    %92 = vector.multi_reduction <maximumf>, %91, %cst_34 [1] : vector<8x8xf32> to vector<8xf32>
    %93 = vector.shape_cast %92 : vector<8xf32> to vector<8x1xf32>
    %94 = vector.broadcast %93 : vector<8x1xf32> to vector<8x8xf32>
    %95 = arith.subf %91, %94 : vector<8x8xf32>
    %96 = math.exp %95 : vector<8x8xf32>
    %cst_35 = arith.constant dense<0.000000e+00> : vector<8xf32>
    %97 = vector.multi_reduction <add>, %96, %cst_35 [1] : vector<8x8xf32> to vector<8xf32>
    %98 = vector.shape_cast %97 : vector<8xf32> to vector<8x1xf32>
    %99 = tpu.reciprocal %98 {approx = true} : vector<8x1xf32> -> vector<8x1xf32>
    %100 = vector.broadcast %99 : vector<8x1xf32> to vector<8x8xf32>
    %101 = arith.mulf %96, %100 : vector<8x8xf32>
    %102 = arith.truncf %101 : vector<8x8xf32> to vector<8x8xbf16>
    %cst_36 = arith.constant dense<0.000000e+00> : vector<8x32xf32>
    %103 = tpu.matmul %102, %87, %cst_36 {dimension_numbers = #tpu.dot_dimension_numbers<[1], [0], [0], [1], [0, 0, 1, 1], [], []>} : vector<8x8xbf16>, vector<8x32xbf16>, vector<8x32xf32> -> vector<8x32xf32>
    %c0_37 = arith.constant 0 : index
    %c64 = arith.constant 64 : index
    %104 = vector.load %arg18[%c0_37, %c64] : memref<16x128xf32, #tpu.memory_space<vmem>>, vector<8x32xf32>
    tpu.vector_store %arg18[%c0_37, %c64], %103 {strides = array<i32>} : memref<16x128xf32, #tpu.memory_space<vmem>>, vector<8x32xf32>,
    %105 = vector.extract_strided_slice %35 {offsets = [0, 96], sizes = [8, 32], strides = [1, 1]} : vector<16x384xf32> to vector<8x32xf32>
    %106 = arith.truncf %105 : vector<8x32xf32> to vector<8x32xbf16>
    %107 = vector.extract_strided_slice %35 {offsets = [0, 224], sizes = [8, 32], strides = [1, 1]} : vector<16x384xf32> to vector<8x32xf32>
    %108 = arith.truncf %107 : vector<8x32xf32> to vector<8x32xbf16>
    %109 = vector.extract_strided_slice %35 {offsets = [0, 352], sizes = [8, 32], strides = [1, 1]} : vector<16x384xf32> to vector<8x32xf32>
    %110 = arith.truncf %109 : vector<8x32xf32> to vector<8x32xbf16>
    %111 = tpu.transpose %108, [1, 0] : vector<8x32xbf16> -> vector<32x8xbf16>
    %cst_38 = arith.constant dense<0.000000e+00> : vector<8x8xf32>
    %112 = tpu.matmul %106, %111, %cst_38 {dimension_numbers = #tpu.dot_dimension_numbers<[1], [0], [0], [1], [0, 0, 1, 1], [], []>} : vector<8x32xbf16>, vector<32x8xbf16>, vector<8x8xf32> -> vector<8x8xf32>
    %cst_39 = arith.constant 0.176776692 : f32
    %113 = vector.broadcast %cst_39 : f32 to vector<8x8xf32>
    %114 = arith.mulf %112, %113 : vector<8x8xf32>
    %cst_40 = arith.constant dense<0xFF800000> : vector<8xf32>
    %115 = vector.multi_reduction <maximumf>, %114, %cst_40 [1] : vector<8x8xf32> to vector<8xf32>
    %116 = vector.shape_cast %115 : vector<8xf32> to vector<8x1xf32>
    %117 = vector.broadcast %116 : vector<8x1xf32> to vector<8x8xf32>
    %118 = arith.subf %114, %117 : vector<8x8xf32>
    %119 = math.exp %118 : vector<8x8xf32>
    %cst_41 = arith.constant dense<0.000000e+00> : vector<8xf32>
    %120 = vector.multi_reduction <add>, %119, %cst_41 [1] : vector<8x8xf32> to vector<8xf32>
    %121 = vector.shape_cast %120 : vector<8xf32> to vector<8x1xf32>
    %122 = tpu.reciprocal %121 {approx = true} : vector<8x1xf32> -> vector<8x1xf32>
    %123 = vector.broadcast %122 : vector<8x1xf32> to vector<8x8xf32>
    %124 = arith.mulf %119, %123 : vector<8x8xf32>
    %125 = arith.truncf %124 : vector<8x8xf32> to vector<8x8xbf16>
    %cst_42 = arith.constant dense<0.000000e+00> : vector<8x32xf32>
    %126 = tpu.matmul %125, %110, %cst_42 {dimension_numbers = #tpu.dot_dimension_numbers<[1], [0], [0], [1], [0, 0, 1, 1], [], []>} : vector<8x8xbf16>, vector<8x32xbf16>, vector<8x32xf32> -> vector<8x32xf32>
    %c0_43 = arith.constant 0 : index
    %c96 = arith.constant 96 : index
    %127 = vector.load %arg18[%c0_43, %c96] : memref<16x128xf32, #tpu.memory_space<vmem>>, vector<8x32xf32>
    tpu.vector_store %arg18[%c0_43, %c96], %126 {strides = array<i32>} : memref<16x128xf32, #tpu.memory_space<vmem>>, vector<8x32xf32>,
    %128 = vector.extract_strided_slice %35 {offsets = [8, 0], sizes = [8, 32], strides = [1, 1]} : vector<16x384xf32> to vector<8x32xf32>
    %129 = arith.truncf %128 : vector<8x32xf32> to vector<8x32xbf16>
    %130 = vector.extract_strided_slice %35 {offsets = [8, 128], sizes = [8, 32], strides = [1, 1]} : vector<16x384xf32> to vector<8x32xf32>
    %131 = arith.truncf %130 : vector<8x32xf32> to vector<8x32xbf16>
    %132 = vector.extract_strided_slice %35 {offsets = [8, 256], sizes = [8, 32], strides = [1, 1]} : vector<16x384xf32> to vector<8x32xf32>
    %133 = arith.truncf %132 : vector<8x32xf32> to vector<8x32xbf16>
    %134 = tpu.transpose %131, [1, 0] : vector<8x32xbf16> -> vector<32x8xbf16>
    %cst_44 = arith.constant dense<0.000000e+00> : vector<8x8xf32>
    %135 = tpu.matmul %129, %134, %cst_44 {dimension_numbers = #tpu.dot_dimension_numbers<[1], [0], [0], [1], [0, 0, 1, 1], [], []>} : vector<8x32xbf16>, vector<32x8xbf16>, vector<8x8xf32> -> vector<8x8xf32>
    %cst_45 = arith.constant 0.176776692 : f32
    %136 = vector.broadcast %cst_45 : f32 to vector<8x8xf32>
    %137 = arith.mulf %135, %136 : vector<8x8xf32>
    %cst_46 = arith.constant dense<0xFF800000> : vector<8xf32>
    %138 = vector.multi_reduction <maximumf>, %137, %cst_46 [1] : vector<8x8xf32> to vector<8xf32>
    %139 = vector.shape_cast %138 : vector<8xf32> to vector<8x1xf32>
    %140 = vector.broadcast %139 : vector<8x1xf32> to vector<8x8xf32>
    %141 = arith.subf %137, %140 : vector<8x8xf32>
    %142 = math.exp %141 : vector<8x8xf32>
    %cst_47 = arith.constant dense<0.000000e+00> : vector<8xf32>
    %143 = vector.multi_reduction <add>, %142, %cst_47 [1] : vector<8x8xf32> to vector<8xf32>
    %144 = vector.shape_cast %143 : vector<8xf32> to vector<8x1xf32>
    %145 = tpu.reciprocal %144 {approx = true} : vector<8x1xf32> -> vector<8x1xf32>
    %146 = vector.broadcast %145 : vector<8x1xf32> to vector<8x8xf32>
    %147 = arith.mulf %142, %146 : vector<8x8xf32>
    %148 = arith.truncf %147 : vector<8x8xf32> to vector<8x8xbf16>
    %cst_48 = arith.constant dense<0.000000e+00> : vector<8x32xf32>
    %149 = tpu.matmul %148, %133, %cst_48 {dimension_numbers = #tpu.dot_dimension_numbers<[1], [0], [0], [1], [0, 0, 1, 1], [], []>} : vector<8x8xbf16>, vector<8x32xbf16>, vector<8x32xf32> -> vector<8x32xf32>
    %c8 = arith.constant 8 : index
    %c0_49 = arith.constant 0 : index
    %150 = vector.load %arg18[%c8, %c0_49] : memref<16x128xf32, #tpu.memory_space<vmem>>, vector<8x32xf32>
    tpu.vector_store %arg18[%c8, %c0_49], %149 {strides = array<i32>} : memref<16x128xf32, #tpu.memory_space<vmem>>, vector<8x32xf32>,
    %151 = vector.extract_strided_slice %35 {offsets = [8, 32], sizes = [8, 32], strides = [1, 1]} : vector<16x384xf32> to vector<8x32xf32>
    %152 = arith.truncf %151 : vector<8x32xf32> to vector<8x32xbf16>
    %153 = vector.extract_strided_slice %35 {offsets = [8, 160], sizes = [8, 32], strides = [1, 1]} : vector<16x384xf32> to vector<8x32xf32>
    %154 = arith.truncf %153 : vector<8x32xf32> to vector<8x32xbf16>
    %155 = vector.extract_strided_slice %35 {offsets = [8, 288], sizes = [8, 32], strides = [1, 1]} : vector<16x384xf32> to vector<8x32xf32>
    %156 = arith.truncf %155 : vector<8x32xf32> to vector<8x32xbf16>
    %157 = tpu.transpose %154, [1, 0] : vector<8x32xbf16> -> vector<32x8xbf16>
    %cst_50 = arith.constant dense<0.000000e+00> : vector<8x8xf32>
    %158 = tpu.matmul %152, %157, %cst_50 {dimension_numbers = #tpu.dot_dimension_numbers<[1], [0], [0], [1], [0, 0, 1, 1], [], []>} : vector<8x32xbf16>, vector<32x8xbf16>, vector<8x8xf32> -> vector<8x8xf32>
    %cst_51 = arith.constant 0.176776692 : f32
    %159 = vector.broadcast %cst_51 : f32 to vector<8x8xf32>
    %160 = arith.mulf %158, %159 : vector<8x8xf32>
    %cst_52 = arith.constant dense<0xFF800000> : vector<8xf32>
    %161 = vector.multi_reduction <maximumf>, %160, %cst_52 [1] : vector<8x8xf32> to vector<8xf32>
    %162 = vector.shape_cast %161 : vector<8xf32> to vector<8x1xf32>
    %163 = vector.broadcast %162 : vector<8x1xf32> to vector<8x8xf32>
    %164 = arith.subf %160, %163 : vector<8x8xf32>
    %165 = math.exp %164 : vector<8x8xf32>
    %cst_53 = arith.constant dense<0.000000e+00> : vector<8xf32>
    %166 = vector.multi_reduction <add>, %165, %cst_53 [1] : vector<8x8xf32> to vector<8xf32>
    %167 = vector.shape_cast %166 : vector<8xf32> to vector<8x1xf32>
    %168 = tpu.reciprocal %167 {approx = true} : vector<8x1xf32> -> vector<8x1xf32>
    %169 = vector.broadcast %168 : vector<8x1xf32> to vector<8x8xf32>
    %170 = arith.mulf %165, %169 : vector<8x8xf32>
    %171 = arith.truncf %170 : vector<8x8xf32> to vector<8x8xbf16>
    %cst_54 = arith.constant dense<0.000000e+00> : vector<8x32xf32>
    %172 = tpu.matmul %171, %156, %cst_54 {dimension_numbers = #tpu.dot_dimension_numbers<[1], [0], [0], [1], [0, 0, 1, 1], [], []>} : vector<8x8xbf16>, vector<8x32xbf16>, vector<8x32xf32> -> vector<8x32xf32>
    %c8_55 = arith.constant 8 : index
    %c32_56 = arith.constant 32 : index
    %173 = vector.load %arg18[%c8_55, %c32_56] : memref<16x128xf32, #tpu.memory_space<vmem>>, vector<8x32xf32>
    tpu.vector_store %arg18[%c8_55, %c32_56], %172 {strides = array<i32>} : memref<16x128xf32, #tpu.memory_space<vmem>>, vector<8x32xf32>,
    %174 = vector.extract_strided_slice %35 {offsets = [8, 64], sizes = [8, 32], strides = [1, 1]} : vector<16x384xf32> to vector<8x32xf32>
    %175 = arith.truncf %174 : vector<8x32xf32> to vector<8x32xbf16>
    %176 = vector.extract_strided_slice %35 {offsets = [8, 192], sizes = [8, 32], strides = [1, 1]} : vector<16x384xf32> to vector<8x32xf32>
    %177 = arith.truncf %176 : vector<8x32xf32> to vector<8x32xbf16>
    %178 = vector.extract_strided_slice %35 {offsets = [8, 320], sizes = [8, 32], strides = [1, 1]} : vector<16x384xf32> to vector<8x32xf32>
    %179 = arith.truncf %178 : vector<8x32xf32> to vector<8x32xbf16>
    %180 = tpu.transpose %177, [1, 0] : vector<8x32xbf16> -> vector<32x8xbf16>
    %cst_57 = arith.constant dense<0.000000e+00> : vector<8x8xf32>
    %181 = tpu.matmul %175, %180, %cst_57 {dimension_numbers = #tpu.dot_dimension_numbers<[1], [0], [0], [1], [0, 0, 1, 1], [], []>} : vector<8x32xbf16>, vector<32x8xbf16>, vector<8x8xf32> -> vector<8x8xf32>
    %cst_58 = arith.constant 0.176776692 : f32
    %182 = vector.broadcast %cst_58 : f32 to vector<8x8xf32>
    %183 = arith.mulf %181, %182 : vector<8x8xf32>
    %cst_59 = arith.constant dense<0xFF800000> : vector<8xf32>
    %184 = vector.multi_reduction <maximumf>, %183, %cst_59 [1] : vector<8x8xf32> to vector<8xf32>
    %185 = vector.shape_cast %184 : vector<8xf32> to vector<8x1xf32>
    %186 = vector.broadcast %185 : vector<8x1xf32> to vector<8x8xf32>
    %187 = arith.subf %183, %186 : vector<8x8xf32>
    %188 = math.exp %187 : vector<8x8xf32>
    %cst_60 = arith.constant dense<0.000000e+00> : vector<8xf32>
    %189 = vector.multi_reduction <add>, %188, %cst_60 [1] : vector<8x8xf32> to vector<8xf32>
    %190 = vector.shape_cast %189 : vector<8xf32> to vector<8x1xf32>
    %191 = tpu.reciprocal %190 {approx = true} : vector<8x1xf32> -> vector<8x1xf32>
    %192 = vector.broadcast %191 : vector<8x1xf32> to vector<8x8xf32>
    %193 = arith.mulf %188, %192 : vector<8x8xf32>
    %194 = arith.truncf %193 : vector<8x8xf32> to vector<8x8xbf16>
    %cst_61 = arith.constant dense<0.000000e+00> : vector<8x32xf32>
    %195 = tpu.matmul %194, %179, %cst_61 {dimension_numbers = #tpu.dot_dimension_numbers<[1], [0], [0], [1], [0, 0, 1, 1], [], []>} : vector<8x8xbf16>, vector<8x32xbf16>, vector<8x32xf32> -> vector<8x32xf32>
    %c8_62 = arith.constant 8 : index
    %c64_63 = arith.constant 64 : index
    %196 = vector.load %arg18[%c8_62, %c64_63] : memref<16x128xf32, #tpu.memory_space<vmem>>, vector<8x32xf32>
    tpu.vector_store %arg18[%c8_62, %c64_63], %195 {strides = array<i32>} : memref<16x128xf32, #tpu.memory_space<vmem>>, vector<8x32xf32>,
    %197 = vector.extract_strided_slice %35 {offsets = [8, 96], sizes = [8, 32], strides = [1, 1]} : vector<16x384xf32> to vector<8x32xf32>
    %198 = arith.truncf %197 : vector<8x32xf32> to vector<8x32xbf16>
    %199 = vector.extract_strided_slice %35 {offsets = [8, 224], sizes = [8, 32], strides = [1, 1]} : vector<16x384xf32> to vector<8x32xf32>
    %200 = arith.truncf %199 : vector<8x32xf32> to vector<8x32xbf16>
    %201 = vector.extract_strided_slice %35 {offsets = [8, 352], sizes = [8, 32], strides = [1, 1]} : vector<16x384xf32> to vector<8x32xf32>
    %202 = arith.truncf %201 : vector<8x32xf32> to vector<8x32xbf16>
    %203 = tpu.transpose %200, [1, 0] : vector<8x32xbf16> -> vector<32x8xbf16>
    %cst_64 = arith.constant dense<0.000000e+00> : vector<8x8xf32>
    %204 = tpu.matmul %198, %203, %cst_64 {dimension_numbers = #tpu.dot_dimension_numbers<[1], [0], [0], [1], [0, 0, 1, 1], [], []>} : vector<8x32xbf16>, vector<32x8xbf16>, vector<8x8xf32> -> vector<8x8xf32>
    %cst_65 = arith.constant 0.176776692 : f32
    %205 = vector.broadcast %cst_65 : f32 to vector<8x8xf32>
    %206 = arith.mulf %204, %205 : vector<8x8xf32>
    %cst_66 = arith.constant dense<0xFF800000> : vector<8xf32>
    %207 = vector.multi_reduction <maximumf>, %206, %cst_66 [1] : vector<8x8xf32> to vector<8xf32>
    %208 = vector.shape_cast %207 : vector<8xf32> to vector<8x1xf32>
    %209 = vector.broadcast %208 : vector<8x1xf32> to vector<8x8xf32>
    %210 = arith.subf %206, %209 : vector<8x8xf32>
    %211 = math.exp %210 : vector<8x8xf32>
    %cst_67 = arith.constant dense<0.000000e+00> : vector<8xf32>
    %212 = vector.multi_reduction <add>, %211, %cst_67 [1] : vector<8x8xf32> to vector<8xf32>
    %213 = vector.shape_cast %212 : vector<8xf32> to vector<8x1xf32>
    %214 = tpu.reciprocal %213 {approx = true} : vector<8x1xf32> -> vector<8x1xf32>
    %215 = vector.broadcast %214 : vector<8x1xf32> to vector<8x8xf32>
    %216 = arith.mulf %211, %215 : vector<8x8xf32>
    %217 = arith.truncf %216 : vector<8x8xf32> to vector<8x8xbf16>
    %cst_68 = arith.constant dense<0.000000e+00> : vector<8x32xf32>
    %218 = tpu.matmul %217, %202, %cst_68 {dimension_numbers = #tpu.dot_dimension_numbers<[1], [0], [0], [1], [0, 0, 1, 1], [], []>} : vector<8x8xbf16>, vector<8x32xbf16>, vector<8x32xf32> -> vector<8x32xf32>
    %c8_69 = arith.constant 8 : index
    %c96_70 = arith.constant 96 : index
    %219 = vector.load %arg18[%c8_69, %c96_70] : memref<16x128xf32, #tpu.memory_space<vmem>>, vector<8x32xf32>
    tpu.vector_store %arg18[%c8_69, %c96_70], %218 {strides = array<i32>} : memref<16x128xf32, #tpu.memory_space<vmem>>, vector<8x32xf32>,
    %c0_71 = arith.constant 0 : index
    %c0_72 = arith.constant 0 : index
    %220 = vector.load %arg18[%c0_71, %c0_72] : memref<16x128xf32, #tpu.memory_space<vmem>>, vector<16x128xf32>
    %221 = arith.truncf %220 : vector<16x128xf32> to vector<16x128xbf16>
    %c0_73 = arith.constant 0 : index
    %c0_74 = arith.constant 0 : index
    %c0_75 = arith.constant 0 : index
    %222 = vector.load %arg9[%c0_73, %c0_74, %c0_75] : memref<1x128x128xbf16, #tpu.memory_space<vmem>>, vector<1x128x128xbf16>
    %223 = vector.shape_cast %222 : vector<1x128x128xbf16> to vector<128x128xbf16>
    %cst_76 = arith.constant dense<0.000000e+00> : vector<16x128xf32>
    %224 = tpu.matmul %221, %223, %cst_76 {dimension_numbers = #tpu.dot_dimension_numbers<[1], [0], [0], [1], [0, 0, 1, 1], [], []>} : vector<16x128xbf16>, vector<128x128xbf16>, vector<16x128xf32> -> vector<16x128xf32>
    %c0_77 = arith.constant 0 : index
    %c0_78 = arith.constant 0 : index
    %c0_79 = arith.constant 0 : index
    %225 = vector.load %arg10[%c0_77, %c0_78, %c0_79] : memref<1x1x128xf32, #tpu.memory_space<vmem>>, vector<1x1x128xf32>
    %226 = vector.shape_cast %225 : vector<1x1x128xf32> to vector<1x128xf32>
    %227 = vector.broadcast %226 : vector<1x128xf32> to vector<16x128xf32>
    %228 = arith.addf %224, %227 : vector<16x128xf32>
    %229 = arith.addf %3, %228 : vector<16x128xf32>
    %c0_80 = arith.constant 0 : index
    %c0_81 = arith.constant 0 : index
    %c0_82 = arith.constant 0 : index
    %230 = vector.load %arg11[%c0_80, %c0_81, %c0_82] : memref<1x1x128xf32, #tpu.memory_space<vmem>>, vector<1x1x128xf32>
    %231 = vector.shape_cast %230 : vector<1x1x128xf32> to vector<1x128xf32>
    %c0_83 = arith.constant 0 : index
    %c0_84 = arith.constant 0 : index
    %c0_85 = arith.constant 0 : index
    %232 = vector.load %arg12[%c0_83, %c0_84, %c0_85] : memref<1x1x128xf32, #tpu.memory_space<vmem>>, vector<1x1x128xf32>
    %233 = vector.shape_cast %232 : vector<1x1x128xf32> to vector<1x128xf32>
    %cst_86 = arith.constant dense<0.000000e+00> : vector<16xf32>
    %234 = vector.multi_reduction <add>, %229, %cst_86 [1] : vector<16x128xf32> to vector<16xf32>
    %235 = vector.shape_cast %234 : vector<16xf32> to vector<16x1xf32>
    %cst_87 = arith.constant 1.280000e+02 : f32
    %236 = vector.broadcast %cst_87 : f32 to vector<16x1xf32>
    %237 = arith.divf %235, %236 : vector<16x1xf32>
    %238 = vector.broadcast %237 : vector<16x1xf32> to vector<16x128xf32>
    %239 = arith.subf %229, %238 : vector<16x128xf32>
    %240 = arith.mulf %239, %239 : vector<16x128xf32>
    %cst_88 = arith.constant dense<0.000000e+00> : vector<16xf32>
    %241 = vector.multi_reduction <add>, %240, %cst_88 [1] : vector<16x128xf32> to vector<16xf32>
    %242 = vector.shape_cast %241 : vector<16xf32> to vector<16x1xf32>
    %cst_89 = arith.constant 1.280000e+02 : f32
    %243 = vector.broadcast %cst_89 : f32 to vector<16x1xf32>
    %244 = arith.divf %242, %243 : vector<16x1xf32>
    %cst_90 = arith.constant 9.99999997E-7 : f32
    %245 = vector.broadcast %cst_90 : f32 to vector<16x1xf32>
    %246 = arith.addf %244, %245 : vector<16x1xf32>
    %247 = math.rsqrt %246 : vector<16x1xf32>
    %248 = vector.broadcast %247 : vector<16x1xf32> to vector<16x128xf32>
    %249 = vector.broadcast %231 : vector<1x128xf32> to vector<16x128xf32>
    %250 = arith.mulf %248, %249 : vector<16x128xf32>
    %251 = arith.mulf %239, %250 : vector<16x128xf32>
    %252 = vector.broadcast %233 : vector<1x128xf32> to vector<16x128xf32>
    %253 = arith.addf %251, %252 : vector<16x128xf32>
    %254 = arith.truncf %253 : vector<16x128xf32> to vector<16x128xbf16>
    %c0_91 = arith.constant 0 : index
    %c0_92 = arith.constant 0 : index
    %c0_93 = arith.constant 0 : index
    %255 = vector.load %arg13[%c0_91, %c0_92, %c0_93] : memref<1x128x256xbf16, #tpu.memory_space<vmem>>, vector<1x128x256xbf16>
    %256 = vector.shape_cast %255 : vector<1x128x256xbf16> to vector<128x256xbf16>
    %cst_94 = arith.constant dense<0.000000e+00> : vector<16x256xf32>
    %257 = tpu.matmul %254, %256, %cst_94 {dimension_numbers = #tpu.dot_dimension_numbers<[1], [0], [0], [1], [0, 0, 1, 1], [], []>} : vector<16x128xbf16>, vector<128x256xbf16>, vector<16x256xf32> -> vector<16x256xf32>
    %c0_95 = arith.constant 0 : index
    %c0_96 = arith.constant 0 : index
    %c0_97 = arith.constant 0 : index
    %258 = vector.load %arg14[%c0_95, %c0_96, %c0_97] : memref<1x1x256xf32, #tpu.memory_space<vmem>>, vector<1x1x256xf32>
    %259 = vector.shape_cast %258 : vector<1x1x256xf32> to vector<1x256xf32>
    %260 = vector.broadcast %259 : vector<1x256xf32> to vector<16x256xf32>
    %261 = arith.addf %257, %260 : vector<16x256xf32>
    %262 = arith.mulf %261, %261 : vector<16x256xf32>
    %263 = arith.mulf %261, %262 : vector<16x256xf32>
    %cst_98 = arith.constant 4.471500e-02 : f32
    %264 = vector.broadcast %cst_98 : f32 to vector<16x256xf32>
    %265 = arith.mulf %264, %263 : vector<16x256xf32>
    %266 = arith.addf %261, %265 : vector<16x256xf32>
    %cst_99 = arith.constant 0.797884583 : f32
    %267 = vector.broadcast %cst_99 : f32 to vector<16x256xf32>
    %268 = arith.mulf %267, %266 : vector<16x256xf32>
    %269 = math.tanh %268 : vector<16x256xf32>
    %cst_100 = arith.constant 1.000000e+00 : f32
    %270 = vector.broadcast %cst_100 : f32 to vector<16x256xf32>
    %271 = arith.addf %270, %269 : vector<16x256xf32>
    %cst_101 = arith.constant 5.000000e-01 : f32
    %272 = vector.broadcast %cst_101 : f32 to vector<16x256xf32>
    %273 = arith.mulf %272, %271 : vector<16x256xf32>
    %274 = arith.mulf %261, %273 : vector<16x256xf32>
    %275 = arith.truncf %274 : vector<16x256xf32> to vector<16x256xbf16>
    %c0_102 = arith.constant 0 : index
    %c0_103 = arith.constant 0 : index
    %c0_104 = arith.constant 0 : index
    %276 = vector.load %arg15[%c0_102, %c0_103, %c0_104] : memref<1x256x128xbf16, #tpu.memory_space<vmem>>, vector<1x256x128xbf16>
    %277 = vector.shape_cast %276 : vector<1x256x128xbf16> to vector<256x128xbf16>
    %cst_105 = arith.constant dense<0.000000e+00> : vector<16x128xf32>
    %278 = tpu.matmul %275, %277, %cst_105 {dimension_numbers = #tpu.dot_dimension_numbers<[1], [0], [0], [1], [0, 0, 1, 1], [], []>} : vector<16x256xbf16>, vector<256x128xbf16>, vector<16x128xf32> -> vector<16x128xf32>
    %c0_106 = arith.constant 0 : index
    %c0_107 = arith.constant 0 : index
    %c0_108 = arith.constant 0 : index
    %279 = vector.load %arg16[%c0_106, %c0_107, %c0_108] : memref<1x1x128xf32, #tpu.memory_space<vmem>>, vector<1x1x128xf32>
    %280 = vector.shape_cast %279 : vector<1x1x128xf32> to vector<1x128xf32>
    %281 = vector.broadcast %280 : vector<1x128xf32> to vector<16x128xf32>
    %282 = arith.addf %278, %281 : vector<16x128xf32>
    %283 = arith.addf %229, %282 : vector<16x128xf32>
    %c0_109 = arith.constant 0 : index
    %c0_110 = arith.constant 0 : index
    %284 = vector.load %arg17[%c0_109, %c0_110] : memref<16x128xf32, #tpu.memory_space<vmem>>, vector<16x128xf32>
    tpu.vector_store %arg17[%c0_109, %c0_110], %283 {strides = array<i32>} : memref<16x128xf32, #tpu.memory_space<vmem>>, vector<16x128xf32>,
    return
  }
  func.func @transform_0(%arg0: i32, %arg1: i32) -> (i32, i32) {
    %c0_i32 = arith.constant 0 : i32
    %c0_i32_0 = arith.constant 0 : i32
    return %arg0, %c0_i32 : i32, i32
  }
  func.func @transform_1(%arg0: i32, %arg1: i32) -> (i32, i32) {
    %c0_i32 = arith.constant 0 : i32
    %c0_i32_0 = arith.constant 0 : i32
    %c0_i32_1 = arith.constant 0 : i32
    return %c0_i32, %c0_i32_0 : i32, i32
  }
  func.func @transform_2(%arg0: i32, %arg1: i32) -> (i32, i32) {
    %c0_i32 = arith.constant 0 : i32
    %c0_i32_0 = arith.constant 0 : i32
    return %arg0, %c0_i32 : i32, i32
  }
  func.func @transform_3(%arg0: i32, %arg1: i32) -> (i32, i32, i32) {
    %c0_i32 = arith.constant 0 : i32
    %c0_i32_0 = arith.constant 0 : i32
    %c0_i32_1 = arith.constant 0 : i32
    return %arg1, %c0_i32, %c0_i32_0 : i32, i32, i32
  }
  func.func @transform_4(%arg0: i32, %arg1: i32) -> (i32, i32, i32) {
    %c0_i32 = arith.constant 0 : i32
    %c0_i32_0 = arith.constant 0 : i32
    %c0_i32_1 = arith.constant 0 : i32
    return %arg1, %c0_i32, %c0_i32_0 : i32, i32, i32
  }
  func.func @transform_5(%arg0: i32, %arg1: i32) -> (i32, i32, i32) {
    %c0_i32 = arith.constant 0 : i32
    %c0_i32_0 = arith.constant 0 : i32
    %c0_i32_1 = arith.constant 0 : i32
    return %arg1, %c0_i32, %c0_i32_0 : i32, i32, i32
  }
  func.func @transform_6(%arg0: i32, %arg1: i32) -> (i32, i32, i32) {
    %c0_i32 = arith.constant 0 : i32
    %c0_i32_0 = arith.constant 0 : i32
    %c0_i32_1 = arith.constant 0 : i32
    return %arg1, %c0_i32, %c0_i32_0 : i32, i32, i32
  }
  func.func @transform_7(%arg0: i32, %arg1: i32) -> (i32, i32, i32) {
    %c0_i32 = arith.constant 0 : i32
    %c0_i32_0 = arith.constant 0 : i32
    %c0_i32_1 = arith.constant 0 : i32
    return %arg1, %c0_i32, %c0_i32_0 : i32, i32, i32
  }
  func.func @transform_8(%arg0: i32, %arg1: i32) -> (i32, i32, i32) {
    %c0_i32 = arith.constant 0 : i32
    %c0_i32_0 = arith.constant 0 : i32
    %c0_i32_1 = arith.constant 0 : i32
    return %arg1, %c0_i32, %c0_i32_0 : i32, i32, i32
  }
  func.func @transform_9(%arg0: i32, %arg1: i32) -> (i32, i32, i32) {
    %c0_i32 = arith.constant 0 : i32
    %c0_i32_0 = arith.constant 0 : i32
    %c0_i32_1 = arith.constant 0 : i32
    return %arg1, %c0_i32, %c0_i32_0 : i32, i32, i32
  }
  func.func @transform_10(%arg0: i32, %arg1: i32) -> (i32, i32, i32) {
    %c0_i32 = arith.constant 0 : i32
    %c0_i32_0 = arith.constant 0 : i32
    %c0_i32_1 = arith.constant 0 : i32
    return %arg1, %c0_i32, %c0_i32_0 : i32, i32, i32
  }
  func.func @transform_11(%arg0: i32, %arg1: i32) -> (i32, i32, i32) {
    %c0_i32 = arith.constant 0 : i32
    %c0_i32_0 = arith.constant 0 : i32
    %c0_i32_1 = arith.constant 0 : i32
    return %arg1, %c0_i32, %c0_i32_0 : i32, i32, i32
  }
  func.func @transform_12(%arg0: i32, %arg1: i32) -> (i32, i32, i32) {
    %c0_i32 = arith.constant 0 : i32
    %c0_i32_0 = arith.constant 0 : i32
    %c0_i32_1 = arith.constant 0 : i32
    return %arg1, %c0_i32, %c0_i32_0 : i32, i32, i32
  }
  func.func @transform_13(%arg0: i32, %arg1: i32) -> (i32, i32, i32) {
    %c0_i32 = arith.constant 0 : i32
    %c0_i32_0 = arith.constant 0 : i32
    %c0_i32_1 = arith.constant 0 : i32
    return %arg1, %c0_i32, %c0_i32_0 : i32, i32, i32
  }
  func.func @transform_14(%arg0: i32, %arg1: i32) -> (i32, i32, i32) {
    %c0_i32 = arith.constant 0 : i32
    %c0_i32_0 = arith.constant 0 : i32
    %c0_i32_1 = arith.constant 0 : i32
    return %arg1, %c0_i32, %c0_i32_0 : i32, i32, i32
  }
  func.func @transform_15(%arg0: i32, %arg1: i32) -> (i32, i32) {
    %c0_i32 = arith.constant 0 : i32
    %c0_i32_0 = arith.constant 0 : i32
    return %arg0, %c0_i32 : i32, i32
  }
}

</mosaic_0001>

<llo_original>
// kernel: vit1d_forward_pallas.3
$region0: #{vit1d_forward_pallas.3}
  #allocation0 [shape = 'u32[]', space=smem, size = 0x4, offset = 0x4, fixed_abs, tag = 'smem constant byte address 0x4 - core index']
  #allocation1 [shape = 'u32[144,128]{1,0:T(1,128)}', space=vmem, size = 0x12000, scoped, tag = 'internal scratch']
  %s0 = inlined_call_operand.vmem [shape: f32[2,128], index: 0, kind: input, shape index: {}]
  %s1 = inlined_call_operand.vmem [shape: f32[1,128], index: 1, kind: input, shape index: {}]
  %s2 = inlined_call_operand.vmem [shape: f32[1,128], index: 2, kind: input, shape index: {}]
  %s3 = inlined_call_operand.vmem [shape: bf16[128,128], index: 3, kind: input, shape index: {}]
  %s4 = inlined_call_operand.vmem [shape: f32[1,128], index: 4, kind: input, shape index: {}]
  %s5 = inlined_call_operand.hbm [shape: f32[2,128], index: 5, kind: output, shape index: {}]
  %s6 = sld [smem:[#allocation0]]
  $region30: #{vit1d_forward_pallas.3} parent=0
    _
  %s8 = ssub.s32 1, %s6
  %s9 = scalar_select 0, %s8, %s6
  $region1: #{vit1d_forward_pallas.3} parent=0
    #allocation2 [shape = 'u8[1024]{0}', space=vmem, size = 0x400, scoped, tag = 'output window, operand 0, single buffered']
    #allocation3 [shape = 's32[1]{0}', space=sflag, size = 0x4, scoped, tag = 'scoped memory for vit1d_forward_pallas.3']
    %10 = vsyncpa [#allocation3], 0
    // Predicated region
    $region2: #{vit1d_forward_pallas.3} parent=1 // pred_check
      _
    $region3: #{vit1d_forward_pallas.3} parent=1 // pred_check_branch
      %12 = sbr.rel (0) target = $region5
    $region4: #{vit1d_forward_pallas.3} parent=1 // pred_region
      _
    $region5: #{vit1d_forward_pallas.3} parent=1 // pred_fallthru
      _
    // Predicated region
    $region6: #{vit1d_forward_pallas.3} parent=1 // pred_check
      _
    $region7: #{vit1d_forward_pallas.3} parent=1 // pred_check_branch
      %14 = sbr.rel (0) target = $region9
    $region8: #{vit1d_forward_pallas.3} parent=1 // pred_region
      _
    $region9: #{vit1d_forward_pallas.3} parent=1 // pred_fallthru
      _
    // Predicated region
    $region10: #{vit1d_forward_pallas.3} parent=1 // pred_check
      _
    $region11: #{vit1d_forward_pallas.3} parent=1 // pred_check_branch
      %16 = sbr.rel (0) target = $region13
    $region12: #{vit1d_forward_pallas.3} parent=1 // pred_region
      _
    $region13: #{vit1d_forward_pallas.3} parent=1 // pred_fallthru
      _
    // Predicated region
    $region14: #{vit1d_forward_pallas.3} parent=1 // pred_check
      _
    $region15: #{vit1d_forward_pallas.3} parent=1 // pred_check_branch
      %18 = sbr.rel (0) target = $region17
    $region16: #{vit1d_forward_pallas.3} parent=1 // pred_region
      _
    $region17: #{vit1d_forward_pallas.3} parent=1 // pred_fallthru
      _
    // Predicated region
    $region18: #{vit1d_forward_pallas.3} parent=1 // pred_check
      _
    $region19: #{vit1d_forward_pallas.3} parent=1 // pred_check_branch
      %20 = sbr.rel (0) target = $region21
    $region20: #{vit1d_forward_pallas.3} parent=1 // pred_region
      _
    $region21: #{vit1d_forward_pallas.3} parent=1 // pred_fallthru
      _
    %v22 = vld [vmem:[%s0] sm:$0x3]
    %v23 = vld [vmem:[%s1] sm:$0x1]
    %v24 = vld [vmem:[%s2] sm:$0x1]
    %vm25 = vcmask 1041408
    %v26 = vsel %vm25, %v22, 0.0
    %27 = vadd.xlane.f32.xlu0 %v26
    %v28 = vpop.xlane.xlu0 %27
    %v29 = vrcp.pop 128.0
    %v30 = vmul.f32 %v28, %v29
    %v31 = vsub.f32 %v22, %v30
    %v32 = vmul.f32 %v31, %v31
    %v33 = vsel %vm25, %v32, 0.0
    %34 = vadd.xlane.f32.xlu0 %v33
    %v35 = vpop.xlane.xlu0 %34
    %v36 = vmul.f32 %v35, %v29
    %v37 = vadd.f32 %v36, 1e-06
    %v38 = vrsqrt.pop %v37
    %v40 = vlaneseq
    %v41 = vshrl.u32 %v40, 7
    %v42 = vsub.s32 0, %v41
    %v43 = vrot.slane %v23, %v42
    %v45 = vmul.f32 %v38, %v43
    %v46 = vmul.f32 %v31, %v45
    %v48 = vlaneseq
    %v49 = vshrl.u32 %v48, 7
    %v50 = vsub.s32 0, %v49
    %v51 = vrot.slane %v24, %v50
    %v53 = vadd.f32 %v46, %v51
    %v54 = vpack.c.bf16 %v53, %v53
    %v55 = vld [vmem:[%s3] sm:$0xf]
    %v56 = vld [vmem:[%s3 + $0x4] sm:$0xf]
    %v57 = vld [vmem:[%s3 + $0x8] sm:$0xf]
    %v58 = vld [vmem:[%s3 + $0xc] sm:$0xf]
    %v59 = vld [vmem:[%s3 + $0x10] sm:$0xf]
    %v60 = vld [vmem:[%s3 + $0x14] sm:$0xf]
    %v61 = vld [vmem:[%s3 + $0x18] sm:$0xf]
    %v62 = vld [vmem:[%s3 + $0x1c] sm:$0xf]
    %v63 = vld [vmem:[%s3 + $0x20] sm:$0xf]
    %v64 = vld [vmem:[%s3 + $0x24] sm:$0xf]
    %v65 = vld [vmem:[%s3 + $0x28] sm:$0xf]
    %v66 = vld [vmem:[%s3 + $0x2c] sm:$0xf]
    %v67 = vld [vmem:[%s3 + $0x30] sm:$0xf]
    %v68 = vld [vmem:[%s3 + $0x34] sm:$0xf]
    %v69 = vld [vmem:[%s3 + $0x38] sm:$0xf]
    %v70 = vld [vmem:[%s3 + $0x3c] sm:$0xf]
    %v71 = vld [vmem:[%s4] sm:$0x1]
    %v73 = vlaneseq
    %v74 = vshrl.u32 %v73, 7
    %v75 = vsub.s32 0, %v74
    %v76 = vrot.slane %v71, %v75
    %v94 = vunpack.c.l.b16 %v55
    %v95 = vunpack.c.l.b16 %v56
    %v96 = vunpack.c.l.b16 %v57
    %v97 = vunpack.c.l.b16 %v58
    %v98 = vunpack.c.l.b16 %v59
    %v99 = vunpack.c.l.b16 %v60
    %v100 = vunpack.c.l.b16 %v61
    %v101 = vunpack.c.l.b16 %v62
    %v102 = vunpack.c.l.b16 %v63
    %v103 = vunpack.c.l.b16 %v64
    %v104 = vunpack.c.l.b16 %v65
    %v105 = vunpack.c.l.b16 %v66
    %v106 = vunpack.c.l.b16 %v67
    %v107 = vunpack.c.l.b16 %v68
    %v108 = vunpack.c.l.b16 %v69
    %v109 = vunpack.c.l.b16 %v70
    %v110 = vpack.c.b16 %v95, %v94
    %v111 = vpack.c.b16 %v97, %v96
    %v112 = vpack.c.b16 %v99, %v98
    %v113 = vpack.c.b16 %v101, %v100
    %v114 = vpack.c.b16 %v103, %v102
    %v115 = vpack.c.b16 %v105, %v104
    %v116 = vpack.c.b16 %v107, %v106
    %v117 = vpack.c.b16 %v109, %v108
    %126 = vmatprep.subr.bf16.mxu0 0
    %127 = vmatpush1.bf16.msra.mxu0 %v117
    %128 = vmatprep.subr.bf16.mxu0 0
    %129 = vmatpush1.bf16.msra.mxu0 %v116
    %130 = vmatprep.subr.bf16.mxu0 0
    %131 = vmatpush1.bf16.msra.mxu0 %v115
    %132 = vmatprep.subr.bf16.mxu0 0
    %133 = vmatpush1.bf16.msra.mxu0 %v114
    %134 = vmatprep.subr.bf16.mxu0 0
    %135 = vmatpush1.bf16.msra.mxu0 %v113
    %136 = vmatprep.subr.bf16.mxu0 0
    %137 = vmatpush1.bf16.msra.mxu0 %v112
    %138 = vmatprep.subr.bf16.mxu0 0
    %139 = vmatpush1.bf16.msra.mxu0 %v111
    %140 = vmatprep.subr.bf16.mxu0 0
    %141 = vmatpush1.bf16.msra.mxu0 %v110
    %142 = vmatprep.subr.bf16.mxu0 0
    %143 = vmatpush2.bf16.msra.mxu0 0
    %144 = vmatprep.subr.bf16.mxu0 0
    %145 = vmatpush2.bf16.msra.mxu0 0
    %146 = vmatprep.subr.bf16.mxu0 0
    %147 = vmatpush2.bf16.msra.mxu0 0
    %148 = vmatprep.subr.bf16.mxu0 0
    %149 = vmatpush2.bf16.msra.mxu0 0
    %150 = vmatprep.subr.bf16.mxu0 0
    %151 = vmatpush2.bf16.msra.mxu0 0
    %152 = vmatprep.subr.bf16.mxu0 0
    %153 = vmatpush2.bf16.msra.mxu0 0
    %154 = vmatprep.subr.bf16.mxu0 0
    %155 = vmatpush2.bf16.msra.mxu0 0
    %156 = vmatprep.subr.bf16.mxu0 0
    %157 = vmatpush2.bf16.msra.mxu0 0
    %158 = vmatprep.mubr.bf16.mxu0 0
    %159 = vmatmul.mubr.bf16.gmra.mxu0 %v54
    %v160 = vpop.f32.mrf.mxu0
    %v161 = vadd.f32 %v76, %v160
    %v162 = vpop.f32.mrf.mxu0
    %v163 = vpop.f32.mrf.mxu0
    %v164 = vpop.f32.mrf.mxu0
    %165 = vdwg.mxu0
    %166 = vst [vmem:[#allocation2] sm:$0x3] %v161
    // Predicated region
    $region22: #{vit1d_forward_pallas.3} parent=1 // pred_check
      _
    $region23: #{vit1d_forward_pallas.3} parent=1 // pred_check_branch
      %168 = sbr.rel (0) target = $region25
    $region24: #{vit1d_forward_pallas.3} parent=1 // pred_region
      %s170 = ssub.s32 32, 32
      %171 = vsyncadd [#allocation3], %s170
      %s173 = sshll.u32 [#allocation2], 4
      %s174 = int_to_ptr.vmem [resolvable:$true] %s173
      %176 = dma.vmem_to_hbm [thread:$0]  %s174, 32, %s5, [#allocation3]
    $region25: #{vit1d_forward_pallas.3} parent=1 // pred_fallthru
      _
    // Predicated region
    $region26: #{vit1d_forward_pallas.3} parent=1 // pred_check
      _
    $region27: #{vit1d_forward_pallas.3} parent=1 // pred_check_branch
      %178 = sbr.rel (0) target = $region29
    $region28: #{vit1d_forward_pallas.3} parent=1 // pred_region
      %179 = dma.done [#allocation3], 32
    $region29: #{vit1d_forward_pallas.3} parent=1 // pred_fallthru
      _
    %180 = vsyncpa [#allocation3], 1

// kernel: vit1d_forward_pallas.2
$region0: #{vit1d_forward_pallas.2}
  #allocation0 [shape = 'u32[]', space=smem, size = 0x4, offset = 0x4, fixed_abs, tag = 'smem constant byte address 0x4 - core index']
  #allocation1 [shape = 'u32[144,128]{1,0:T(1,128)}', space=vmem, size = 0x12000, scoped, tag = 'internal scratch']
  #allocation2 [shape = 'f32[16,128]{1,0:T(8,128)}', space=vmem, size = 0x2000, scoped, tag = 'scratch operand']
  %s0 = inlined_call_operand.vmem [shape: bf16[16,128], index: 0, kind: input, shape index: {}]
  %s1 = inlined_call_operand.vmem [shape: bf16[128,128], index: 1, kind: input, shape index: {}]
  %s2 = inlined_call_operand.vmem [shape: f32[16,128], index: 2, kind: input, shape index: {}]
  %s3 = inlined_call_operand.vmem [shape: f32[2,1,128], index: 3, kind: input, shape index: {}]
  %s4 = inlined_call_operand.vmem [shape: f32[2,1,128], index: 4, kind: input, shape index: {}]
  %s5 = inlined_call_operand.hbm [shape: bf16[2,128,384], index: 5, kind: input, shape index: {}]
  %s6 = inlined_call_operand.vmem [shape: f32[2,1,384], index: 6, kind: input, shape index: {}]
  %s7 = inlined_call_operand.hbm [shape: bf16[2,128,128], index: 7, kind: input, shape index: {}]
  %s8 = inlined_call_operand.vmem [shape: f32[2,1,128], index: 8, kind: input, shape index: {}]
  %s9 = inlined_call_operand.hbm [shape: f32[2,1,128], index: 9, kind: input, shape index: {}]
  %s10 = inlined_call_operand.vmem [shape: f32[2,1,128], index: 10, kind: input, shape index: {}]
  %s11 = inlined_call_operand.vmem [shape: bf16[2,128,256], index: 11, kind: input, shape index: {}]
  %s12 = inlined_call_operand.vmem [shape: f32[2,1,256], index: 12, kind: input, shape index: {}]
  %s13 = inlined_call_operand.hbm [shape: bf16[2,256,128], index: 13, kind: input, shape index: {}]
  %s14 = inlined_call_operand.hbm [shape: f32[2,1,128], index: 14, kind: input, shape index: {}]
  %s15 = inlined_call_operand.vmem [shape: f32[16,128], index: 15, kind: output, shape index: {}]
  %s16 = sld [smem:[#allocation0]]
  $region117: #{vit1d_forward_pallas.2} parent=0
    _
  %s18 = ssub.s32 1, %s16
  %s19 = scalar_select 0, %s18, %s16
  $region1: #{vit1d_forward_pallas.2} parent=0
    #allocation3 [shape = 'u8[196608]{0}', space=vmem, size = 0x30000, scoped, tag = 'input window, operand 5']
    #allocation4 [shape = 's32[2]{0}', space=sflag, size = 0x8, scoped, tag = 'scoped memory for vit1d_forward_pallas.2']
    #allocation5 [shape = 'u8[65536]{0}', space=vmem, size = 0x10000, scoped, tag = 'input window, operand 7']
    #allocation6 [shape = 's32[2]{0}', space=sflag, size = 0x8, scoped, tag = 'scoped memory for vit1d_forward_pallas.2']
    #allocation7 [shape = 'u8[1024]{0}', space=vmem, size = 0x400, scoped, tag = 'input window, operand 9']
    #allocation8 [shape = 'u8[131072]{0}', space=vmem, size = 0x20000, scoped, tag = 'input window, operand 13']
    #allocation9 [shape = 's32[2]{0}', space=sflag, size = 0x8, scoped, tag = 'scoped memory for vit1d_forward_pallas.2']
    #allocation10 [shape = 'u8[1024]{0}', space=vmem, size = 0x400, scoped, tag = 'input window, operand 14']
    %20 = vsyncpa [#allocation4], 0
    %s21 = scalar_lea.sflag [#allocation4], 1
    %22 = vsyncpa %s21, 0
    %23 = vsyncpa [#allocation6], 0
    %s24 = scalar_lea.sflag [#allocation6], 1
    %25 = vsyncpa %s24, 0
    %26 = vsyncpa [#allocation9], 0
    %s27 = scalar_lea.sflag [#allocation9], 1
    %28 = vsyncpa %s27, 0
    loop: start=0, step=1, limit=4
    $region2: #{vit1d_forward_pallas.2} parent=1 // loop_pre_header
      _
    $region3: #{vit1d_forward_pallas.2} parent=1 // loop_header
      %s30 = sphi 0, %s34
      %p31 = scmp.ge.s32.totalorder %s30, 4
      %s37 = sphi 0, %s49
      %s38 = sphi 0, %s45
      %s39 = sphi 0, %s37
      %s40 = sphi 0, %s38
      %s41 = sphi 0, %s39
      %s42 = sphi 0, %s40
      %s52 = sphi 0, %s54
      %s55 = sphi 0, %s52
      %s56 = sphi 0, %s55
      %s72 = sphi 0, %s56
      %s76 = sphi 0, %s76
      %s78 = sphi 0, %s76
      %s79 = sphi 0, %s78
      %s93 = sphi 0, %s79
      %s99 = sphi 0, %s101
      %s102 = sphi 0, %s99
      %s103 = sphi 0, %s102
      %s119 = sphi 0, %s103
      %s125 = sphi 0, %s127
      %s128 = sphi 0, %s125
      %s129 = sphi 0, %s128
      %s145 = sphi 0, %s129
      %s151 = sphi 0, %s153
      %s154 = sphi 0, %s151
      %s155 = sphi 0, %s154
      %s171 = sphi 0, %s155
      %s177 = sphi 0, %s179
      %s180 = sphi 0, %s177
      %s181 = sphi 0, %s180
      %s197 = sphi 0, %s181
      %s203 = sphi 0, %s205
      %s206 = sphi 0, %s203
      %s207 = sphi 0, %s206
      %s223 = sphi 0, %s207
      %s229 = sphi 0, %s231
      %s232 = sphi 0, %s229
      %s233 = sphi 0, %s232
      %s249 = sphi 0, %s233
      %s255 = sphi 0, %s257
      %s258 = sphi 0, %s255
      %s259 = sphi 0, %s258
      %s275 = sphi 0, %s259
      %s281 = sphi 0, %s283
      %s284 = sphi 0, %s281
      %s285 = sphi 0, %s284
      %s301 = sphi 0, %s285
      %s307 = sphi 0, %s309
      %s310 = sphi 0, %s307
      %s311 = sphi 0, %s310
      %s327 = sphi 0, %s311
      %s333 = sphi 0, %s335
      %s336 = sphi 0, %s333
      %s337 = sphi 0, %s336
      %s353 = sphi 0, %s337
      %s359 = sphi 0, %s361
      %s362 = sphi 0, %s359
      %s363 = sphi 0, %s362
      %s379 = sphi 0, %s363
      %s385 = sphi 0, %s387
      %s388 = sphi 0, %s385
      %s389 = sphi 0, %s388
      %s405 = sphi 0, %s389
      %s411 = sphi 0, %s413
      %s414 = sphi 0, %s411
      %s415 = sphi 0, %s414
      %s431 = sphi 0, %s415
      %s437 = sphi 0, %s439
      %s440 = sphi 0, %s437
      %s441 = sphi 0, %s440
      %s457 = sphi 0, %s441
    $region4: #{vit1d_forward_pallas.2} parent=1 // loop_header_branch
      %33 = sbr.rel (%p31) target = $region8
    $region5: #{vit1d_forward_pallas.2} parent=1 // loop_body
      %s35 = ssub.s32 %s30, 1
      %s36 = ssub.s32 %s30, 2
      %s43 = sadd.s32 1, %s38
      %p44 = scmp.ge.s32.totalorder %s43, 2
      %s45 = scalar_select %p44, 0, %s43
      %s46 = sadd.s32 1, %s37
      %s47 = scalar_select %p44, %s46, %s37
      %p48 = scmp.ge.s32.totalorder %s47, 1
      %s49 = scalar_select %p48, 0, %s47
      %s50 = ssub.s32 %s37, %s49
      %p51 = scmp.eq.s32.totalorder %s50, 0
      %s53 = sadd.s32 %s52, 1
      %s54 = scalar_select %p51, %s52, %s53
      %p57 = pneg %p51
      %p58 = scmp.eq.s32.totalorder %s30, 1
      %p59 = por %p57, %p58
      %p60 = scmp.ne.s32.totalorder %s52, %s55
      %p61 = scmp.eq.s32.totalorder %s30, 0
      %p62 = por %p60, %p61
      %p63 = scmp.ne.s32.totalorder %s52, %s55
      %p64 = scmp.eq.s32.totalorder %s35, 1
      %p65 = por %p63, %p64
      %p66 = scmp.ne.s32.totalorder %s55, %s56
      %p67 = scmp.eq.s32.totalorder %s35, 0
      %p68 = por %p66, %p67
      %p69 = scmp.ne.s32.totalorder %s55, %s56
      %p70 = scmp.eq.s32.totalorder %s36, 1
      %p71 = por %p69, %p70
      %p73 = scmp.ne.s32.totalorder %s56, %s72
      %p74 = scmp.eq.s32.totalorder %s36, 0
      %p75 = por %p73, %p74
      %s77 = sadd.s32 %s76, 1
      %p80 = scmp.eq.s32.totalorder %s30, 1
      %p81 = scmp.ne.s32.totalorder %s76, %s78
      %p82 = scmp.eq.s32.totalorder %s30, 0
      %p83 = por %p81, %p82
      %p84 = scmp.ne.s32.totalorder %s76, %s78
      %p85 = scmp.eq.s32.totalorder %s35, 1
      %p86 = por %p84, %p85
      %p87 = scmp.ne.s32.totalorder %s78, %s79
      %p88 = scmp.eq.s32.totalorder %s35, 0
      %p89 = por %p87, %p88
      %p90 = scmp.ne.s32.totalorder %s78, %s79
      %p91 = scmp.eq.s32.totalorder %s36, 1
      %p92 = por %p90, %p91
      %p94 = scmp.ne.s32.totalorder %s79, %s93
      %p95 = scmp.eq.s32.totalorder %s36, 0
      %p96 = por %p94, %p95
      %s97 = ssub.s32 %s37, %s49
      %p98 = scmp.eq.s32.totalorder %s97, 0
      %s100 = sadd.s32 %s99, 1
      %s101 = scalar_select %p98, %s99, %s100
      %p104 = pneg %p98
      %p105 = scmp.eq.s32.totalorder %s30, 1
      %p106 = por %p104, %p105
      %p107 = scmp.ne.s32.totalorder %s99, %s102
      %p108 = scmp.eq.s32.totalorder %s30, 0
      %p109 = por %p107, %p108
      %p110 = scmp.ne.s32.totalorder %s99, %s102
      %p111 = scmp.eq.s32.totalorder %s35, 1
      %p112 = por %p110, %p111
      %p113 = scmp.ne.s32.totalorder %s102, %s103
      %p114 = scmp.eq.s32.totalorder %s35, 0
      %p115 = por %p113, %p114
      %p116 = scmp.ne.s32.totalorder %s102, %s103
      %p117 = scmp.eq.s32.totalorder %s36, 1
      %p118 = por %p116, %p117
      %p120 = scmp.ne.s32.totalorder %s103, %s119
      %p121 = scmp.eq.s32.totalorder %s36, 0
      %p122 = por %p120, %p121
      %s123 = ssub.s32 %s38, %s45
      %p124 = scmp.eq.s32.totalorder %s123, 0
      %s126 = sadd.s32 %s125, 1
      %s127 = scalar_select %p124, %s125, %s126
      %p130 = pneg %p124
      %p131 = scmp.eq.s32.totalorder %s30, 1
      %p132 = por %p130, %p131
      %p133 = scmp.ne.s32.totalorder %s125, %s128
      %p134 = scmp.eq.s32.totalorder %s30, 0
      %p135 = por %p133, %p134
      %p136 = scmp.ne.s32.totalorder %s125, %s128
      %p137 = scmp.eq.s32.totalorder %s35, 1
      %p138 = por %p136, %p137
      %p139 = scmp.ne.s32.totalorder %s128, %s129
      %p140 = scmp.eq.s32.totalorder %s35, 0
      %p141 = por %p139, %p140
      %p142 = scmp.ne.s32.totalorder %s128, %s129
      %p143 = scmp.eq.s32.totalorder %s36, 1
      %p144 = por %p142, %p143
      %p146 = scmp.ne.s32.totalorder %s129, %s145
      %p147 = scmp.eq.s32.totalorder %s36, 0
      %p148 = por %p146, %p147
      %s149 = ssub.s32 %s38, %s45
      %p150 = scmp.eq.s32.totalorder %s149, 0
      %s152 = sadd.s32 %s151, 1
      %s153 = scalar_select %p150, %s151, %s152
      %p156 = pneg %p150
      %p157 = scmp.eq.s32.totalorder %s30, 1
      %p158 = por %p156, %p157
      %p159 = scmp.ne.s32.totalorder %s151, %s154
      %p160 = scmp.eq.s32.totalorder %s30, 0
      %p161 = por %p159, %p160
      %p162 = scmp.ne.s32.totalorder %s151, %s154
      %p163 = scmp.eq.s32.totalorder %s35, 1
      %p164 = por %p162, %p163
      %p165 = scmp.ne.s32.totalorder %s154, %s155
      %p166 = scmp.eq.s32.totalorder %s35, 0
      %p167 = por %p165, %p166
      %p168 = scmp.ne.s32.totalorder %s154, %s155
      %p169 = scmp.eq.s32.totalorder %s36, 1
      %p170 = por %p168, %p169
      %p172 = scmp.ne.s32.totalorder %s155, %s171
      %p173 = scmp.eq.s32.totalorder %s36, 0
      %p174 = por %p172, %p173
      %s175 = ssub.s32 %s38, %s45
      %p176 = scmp.eq.s32.totalorder %s175, 0
      %s178 = sadd.s32 %s177, 1
      %s179 = scalar_select %p176, %s177, %s178
      %p182 = pneg %p176
      %p183 = scmp.eq.s32.totalorder %s30, 1
      %p184 = por %p182, %p183
      %p185 = scmp.ne.s32.totalorder %s177, %s180
      %p186 = scmp.eq.s32.totalorder %s30, 0
      %p187 = por %p185, %p186
      %p188 = scmp.ne.s32.totalorder %s177, %s180
      %p189 = scmp.eq.s32.totalorder %s35, 1
      %p190 = por %p188, %p189
      %p191 = scmp.ne.s32.totalorder %s180, %s181
      %p192 = scmp.eq.s32.totalorder %s35, 0
      %p193 = por %p191, %p192
      %p194 = scmp.ne.s32.totalorder %s180, %s181
      %p195 = scmp.eq.s32.totalorder %s36, 1
      %p196 = por %p194, %p195
      %p198 = scmp.ne.s32.totalorder %s181, %s197
      %p199 = scmp.eq.s32.totalorder %s36, 0
      %p200 = por %p198, %p199
      %s201 = ssub.s32 %s38, %s45
      %p202 = scmp.eq.s32.totalorder %s201, 0
      %s204 = sadd.s32 %s203, 1
      %s205 = scalar_select %p202, %s203, %s204
      %p208 = pneg %p202
      %p209 = scmp.eq.s32.totalorder %s30, 1
      %p210 = por %p208, %p209
      %p211 = scmp.ne.s32.totalorder %s203, %s206
      %p212 = scmp.eq.s32.totalorder %s30, 0
      %p213 = por %p211, %p212
      %p214 = scmp.ne.s32.totalorder %s203, %s206
      %p215 = scmp.eq.s32.totalorder %s35, 1
      %p216 = por %p214, %p215
      %p217 = scmp.ne.s32.totalorder %s206, %s207
      %p218 = scmp.eq.s32.totalorder %s35, 0
      %p219 = por %p217, %p218
      %p220 = scmp.ne.s32.totalorder %s206, %s207
      %p221 = scmp.eq.s32.totalorder %s36, 1
      %p222 = por %p220, %p221
      %p224 = scmp.ne.s32.totalorder %s207, %s223
      %p225 = scmp.eq.s32.totalorder %s36, 0
      %p226 = por %p224, %p225
      %s227 = ssub.s32 %s38, %s45
      %p228 = scmp.eq.s32.totalorder %s227, 0
      %s230 = sadd.s32 %s229, 1
      %s231 = scalar_select %p228, %s229, %s230
      %p234 = pneg %p228
      %p235 = scmp.eq.s32.totalorder %s30, 1
      %p236 = por %p234, %p235
      %p237 = scmp.ne.s32.totalorder %s229, %s232
      %p238 = scmp.eq.s32.totalorder %s30, 0
      %p239 = por %p237, %p238
      %p240 = scmp.ne.s32.totalorder %s229, %s232
      %p241 = scmp.eq.s32.totalorder %s35, 1
      %p242 = por %p240, %p241
      %p243 = scmp.ne.s32.totalorder %s232, %s233
      %p244 = scmp.eq.s32.totalorder %s35, 0
      %p245 = por %p243, %p244
      %p246 = scmp.ne.s32.totalorder %s232, %s233
      %p247 = scmp.eq.s32.totalorder %s36, 1
      %p248 = por %p246, %p247
      %p250 = scmp.ne.s32.totalorder %s233, %s249
      %p251 = scmp.eq.s32.totalorder %s36, 0
      %p252 = por %p250, %p251
      %s253 = ssub.s32 %s38, %s45
      %p254 = scmp.eq.s32.totalorder %s253, 0
      %s256 = sadd.s32 %s255, 1
      %s257 = scalar_select %p254, %s255, %s256
      %p260 = pneg %p254
      %p261 = scmp.eq.s32.totalorder %s30, 1
      %p262 = por %p260, %p261
      %p263 = scmp.ne.s32.totalorder %s255, %s258
      %p264 = scmp.eq.s32.totalorder %s30, 0
      %p265 = por %p263, %p264
      %p266 = scmp.ne.s32.totalorder %s255, %s258
      %p267 = scmp.eq.s32.totalorder %s35, 1
      %p268 = por %p266, %p267
      %p269 = scmp.ne.s32.totalorder %s258, %s259
      %p270 = scmp.eq.s32.totalorder %s35, 0
      %p271 = por %p269, %p270
      %p272 = scmp.ne.s32.totalorder %s258, %s259
      %p273 = scmp.eq.s32.totalorder %s36, 1
      %p274 = por %p272, %p273
      %p276 = scmp.ne.s32.totalorder %s259, %s275
      %p277 = scmp.eq.s32.totalorder %s36, 0
      %p278 = por %p276, %p277
      %s279 = ssub.s32 %s38, %s45
      %p280 = scmp.eq.s32.totalorder %s279, 0
      %s282 = sadd.s32 %s281, 1
      %s283 = scalar_select %p280, %s281, %s282
      %p286 = pneg %p280
      %p287 = scmp.eq.s32.totalorder %s30, 1
      %p288 = por %p286, %p287
      %p289 = scmp.ne.s32.totalorder %s281, %s284
      %p290 = scmp.eq.s32.totalorder %s30, 0
      %p291 = por %p289, %p290
      %p292 = scmp.ne.s32.totalorder %s281, %s284
      %p293 = scmp.eq.s32.totalorder %s35, 1
      %p294 = por %p292, %p293
      %p295 = scmp.ne.s32.totalorder %s284, %s285
      %p296 = scmp.eq.s32.totalorder %s35, 0
      %p297 = por %p295, %p296
      %p298 = scmp.ne.s32.totalorder %s284, %s285
      %p299 = scmp.eq.s32.totalorder %s36, 1
      %p300 = por %p298, %p299
      %p302 = scmp.ne.s32.totalorder %s285, %s301
      %p303 = scmp.eq.s32.totalorder %s36, 0
      %p304 = por %p302, %p303
      %s305 = ssub.s32 %s38, %s45
      %p306 = scmp.eq.s32.totalorder %s305, 0
      %s308 = sadd.s32 %s307, 1
      %s309 = scalar_select %p306, %s307, %s308
      %p312 = pneg %p306
      %p313 = scmp.eq.s32.totalorder %s30, 1
      %p314 = por %p312, %p313
      %p315 = scmp.ne.s32.totalorder %s307, %s310
      %p316 = scmp.eq.s32.totalorder %s30, 0
      %p317 = por %p315, %p316
      %p318 = scmp.ne.s32.totalorder %s307, %s310
      %p319 = scmp.eq.s32.totalorder %s35, 1
      %p320 = por %p318, %p319
      %p321 = scmp.ne.s32.totalorder %s310, %s311
      %p322 = scmp.eq.s32.totalorder %s35, 0
      %p323 = por %p321, %p322
      %p324 = scmp.ne.s32.totalorder %s310, %s311
      %p325 = scmp.eq.s32.totalorder %s36, 1
      %p326 = por %p324, %p325
      %p328 = scmp.ne.s32.totalorder %s311, %s327
      %p329 = scmp.eq.s32.totalorder %s36, 0
      %p330 = por %p328, %p329
      %s331 = ssub.s32 %s38, %s45
      %p332 = scmp.eq.s32.totalorder %s331, 0
      %s334 = sadd.s32 %s333, 1
      %s335 = scalar_select %p332, %s333, %s334
      %p338 = pneg %p332
      %p339 = scmp.eq.s32.totalorder %s30, 1
      %p340 = por %p338, %p339
      %p341 = scmp.ne.s32.totalorder %s333, %s336
      %p342 = scmp.eq.s32.totalorder %s30, 0
      %p343 = por %p341, %p342
      %p344 = scmp.ne.s32.totalorder %s333, %s336
      %p345 = scmp.eq.s32.totalorder %s35, 1
      %p346 = por %p344, %p345
      %p347 = scmp.ne.s32.totalorder %s336, %s337
      %p348 = scmp.eq.s32.totalorder %s35, 0
      %p349 = por %p347, %p348
      %p350 = scmp.ne.s32.totalorder %s336, %s337
      %p351 = scmp.eq.s32.totalorder %s36, 1
      %p352 = por %p350, %p351
      %p354 = scmp.ne.s32.totalorder %s337, %s353
      %p355 = scmp.eq.s32.totalorder %s36, 0
      %p356 = por %p354, %p355
      %s357 = ssub.s32 %s38, %s45
      %p358 = scmp.eq.s32.totalorder %s357, 0
      %s360 = sadd.s32 %s359, 1
      %s361 = scalar_select %p358, %s359, %s360
      %p364 = pneg %p358
      %p365 = scmp.eq.s32.totalorder %s30, 1
      %p366 = por %p364, %p365
      %p367 = scmp.ne.s32.totalorder %s359, %s362
      %p368 = scmp.eq.s32.totalorder %s30, 0
      %p369 = por %p367, %p368
      %p370 = scmp.ne.s32.totalorder %s359, %s362
      %p371 = scmp.eq.s32.totalorder %s35, 1
      %p372 = por %p370, %p371
      %p373 = scmp.ne.s32.totalorder %s362, %s363
      %p374 = scmp.eq.s32.totalorder %s35, 0
      %p375 = por %p373, %p374
      %p376 = scmp.ne.s32.totalorder %s362, %s363
      %p377 = scmp.eq.s32.totalorder %s36, 1
      %p378 = por %p376, %p377
      %p380 = scmp.ne.s32.totalorder %s363, %s379
      %p381 = scmp.eq.s32.totalorder %s36, 0
      %p382 = por %p380, %p381
      %s383 = ssub.s32 %s38, %s45
      %p384 = scmp.eq.s32.totalorder %s383, 0
      %s386 = sadd.s32 %s385, 1
      %s387 = scalar_select %p384, %s385, %s386
      %p390 = pneg %p384
      %p391 = scmp.eq.s32.totalorder %s30, 1
      %p392 = por %p390, %p391
      %p393 = scmp.ne.s32.totalorder %s385, %s388
      %p394 = scmp.eq.s32.totalorder %s30, 0
      %p395 = por %p393, %p394
      %p396 = scmp.ne.s32.totalorder %s385, %s388
      %p397 = scmp.eq.s32.totalorder %s35, 1
      %p398 = por %p396, %p397
      %p399 = scmp.ne.s32.totalorder %s388, %s389
      %p400 = scmp.eq.s32.totalorder %s35, 0
      %p401 = por %p399, %p400
      %p402 = scmp.ne.s32.totalorder %s388, %s389
      %p403 = scmp.eq.s32.totalorder %s36, 1
      %p404 = por %p402, %p403
      %p406 = scmp.ne.s32.totalorder %s389, %s405
      %p407 = scmp.eq.s32.totalorder %s36, 0
      %p408 = por %p406, %p407
      %s409 = ssub.s32 %s38, %s45
      %p410 = scmp.eq.s32.totalorder %s409, 0
      %s412 = sadd.s32 %s411, 1
      %s413 = scalar_select %p410, %s411, %s412
      %p416 = pneg %p410
      %p417 = scmp.eq.s32.totalorder %s30, 1
      %p418 = por %p416, %p417
      %p419 = scmp.ne.s32.totalorder %s411, %s414
      %p420 = scmp.eq.s32.totalorder %s30, 0
      %p421 = por %p419, %p420
      %p422 = scmp.ne.s32.totalorder %s411, %s414
      %p423 = scmp.eq.s32.totalorder %s35, 1
      %p424 = por %p422, %p423
      %p425 = scmp.ne.s32.totalorder %s414, %s415
      %p426 = scmp.eq.s32.totalorder %s35, 0
      %p427 = por %p425, %p426
      %p428 = scmp.ne.s32.totalorder %s414, %s415
      %p429 = scmp.eq.s32.totalorder %s36, 1
      %p430 = por %p428, %p429
      %p432 = scmp.ne.s32.totalorder %s415, %s431
      %p433 = scmp.eq.s32.totalorder %s36, 0
      %p434 = por %p432, %p433
      %s435 = ssub.s32 %s37, %s49
      %p436 = scmp.eq.s32.totalorder %s435, 0
      %s438 = sadd.s32 %s437, 1
      %s439 = scalar_select %p436, %s437, %s438
      %p442 = pneg %p436
      %p443 = scmp.eq.s32.totalorder %s30, 1
      %p444 = por %p442, %p443
      %p445 = scmp.ne.s32.totalorder %s437, %s440
      %p446 = scmp.eq.s32.totalorder %s30, 0
      %p447 = por %p445, %p446
      %p448 = scmp.ne.s32.totalorder %s437, %s440
      %p449 = scmp.eq.s32.totalorder %s35, 1
      %p450 = por %p448, %p449
      %p451 = scmp.ne.s32.totalorder %s440, %s441
      %p452 = scmp.eq.s32.totalorder %s35, 0
      %p453 = por %p451, %p452
      %p454 = scmp.ne.s32.totalorder %s440, %s441
      %p455 = scmp.eq.s32.totalorder %s36, 1
      %p456 = por %p454, %p455
      %p458 = scmp.ne.s32.totalorder %s441, %s457
      %p459 = scmp.eq.s32.totalorder %s36, 0
      %p460 = por %p458, %p459
      %p461 = scmp.le.s32.totalorder 1, %s30
      %p462 = scmp.lt.s32.totalorder %s30, 3
      %p463 = pnand %p461, %p462
      %p464 = pneg %p463
      // Predicated region
      $region9: #{vit1d_forward_pallas.2} parent=5 // pred_check
        _
      $region10: #{vit1d_forward_pallas.2} parent=5 // pred_check_branch
        %466 = sbr.rel (%p463) target = $region12
      $region11: #{vit1d_forward_pallas.2} parent=5 // pred_region
        %s467 = ssub.s32 %s30, 1
        // Predicated region
        $region13: #{vit1d_forward_pallas.2} parent=11 // pred_check
          %p468 = pneg %p68
        $region14: #{vit1d_forward_pallas.2} parent=11 // pred_check_branch
          %470 = sbr.rel (%p468) target = $region16
        $region15: #{vit1d_forward_pallas.2} parent=11 // pred_region
          %s471 = smul.u32 2, %s39
          %p472 = scmp.lt.s32.totalorder %s471, 1
          %s473 = scalar_select %p472, %s471, 1
          %s474 = smul.addr %s473, 4
          %s475 = scalar_lea.vmem %s0, %s474
          %s476 = smul.u32 2, %s39
        $region16: #{vit1d_forward_pallas.2} parent=11 // pred_fallthru
          _
        // Predicated region
        $region17: #{vit1d_forward_pallas.2} parent=11 // pred_check
          %p477 = pneg %p89
        $region18: #{vit1d_forward_pallas.2} parent=11 // pred_check_branch
          %479 = sbr.rel (%p477) target = $region20
        $region19: #{vit1d_forward_pallas.2} parent=11 // pred_region
          _
        $region20: #{vit1d_forward_pallas.2} parent=11 // pred_fallthru
          _
        // Predicated region
        $region21: #{vit1d_forward_pallas.2} parent=11 // pred_check
          %p480 = pneg %p115
        $region22: #{vit1d_forward_pallas.2} parent=11 // pred_check_branch
          %482 = sbr.rel (%p480) target = $region24
        $region23: #{vit1d_forward_pallas.2} parent=11 // pred_region
          %s483 = smul.u32 2, %s39
          %p484 = scmp.lt.s32.totalorder %s483, 1
          %s485 = scalar_select %p484, %s483, 1
          %s486 = smul.addr %s485, 8
          %s487 = scalar_lea.vmem %s2, %s486
          %s488 = smul.u32 2, %s39
        $region24: #{vit1d_forward_pallas.2} parent=11 // pred_fallthru
          _
      $region12: #{vit1d_forward_pallas.2} parent=5 // pred_fallthru
        _
      %p489 = scmp.lt.s32.totalorder %s30, 2
      // Predicated region
      $region25: #{vit1d_forward_pallas.2} parent=5 // pred_check
        %p490 = pneg %p489
      $region26: #{vit1d_forward_pallas.2} parent=5 // pred_check_branch
        %492 = sbr.rel (%p490) target = $region28
      $region27: #{vit1d_forward_pallas.2} parent=5 // pred_region
        // Predicated region
        $region29: #{vit1d_forward_pallas.2} parent=27 // pred_check
          %p493 = pneg %p135
        $region30: #{vit1d_forward_pallas.2} parent=27 // pred_check_branch
          %495 = sbr.rel (%p493) target = $region32
        $region31: #{vit1d_forward_pallas.2} parent=27 // pred_region
          %p496 = scmp.lt.s32.totalorder %s38, 1
          %s497 = scalar_select %p496, %s38, 1
          %s498 = scalar_lea.vmem %s3, %s497
        $region32: #{vit1d_forward_pallas.2} parent=27 // pred_fallthru
          _
        // Predicated region
        $region33: #{vit1d_forward_pallas.2} parent=27 // pred_check
          %p499 = pneg %p161
        $region34: #{vit1d_forward_pallas.2} parent=27 // pred_check_branch
          %501 = sbr.rel (%p499) target = $region36
        $region35: #{vit1d_forward_pallas.2} parent=27 // pred_region
          %p502 = scmp.lt.s32.totalorder %s38, 1
          %s503 = scalar_select %p502, %s38, 1
          %s504 = scalar_lea.vmem %s4, %s503
        $region36: #{vit1d_forward_pallas.2} parent=27 // pred_fallthru
          _
        // Predicated region
        $region37: #{vit1d_forward_pallas.2} parent=27 // pred_check
          %p505 = pneg %p187
        $region38: #{vit1d_forward_pallas.2} parent=27 // pred_check_branch
          %507 = sbr.rel (%p505) target = $region40
        $region39: #{vit1d_forward_pallas.2} parent=27 // pred_region
          %s508 = sand.u32 %s177, 1
          %s509 = scalar_lea.sflag [#allocation4], %s508
          %s510 = sand.u32 %s177, 1
          %s511 = smul.addr %s510, 192
          %s512 = scalar_lea.vmem [#allocation3], %s511
          %s514 = ssub.s32 3072, 3072
          %515 = vsyncadd %s509, %s514
          %s516 = smul.addr %s38, 48
          %s517 = smul.addr %s516, 64
          %s518 = scalar_lea.hbm %s5, %s517
          %s519 = sshll.u32 %s512, 4
          %s520 = int_to_ptr.vmem [resolvable:$true] %s519
          %525 = dma.hbm_to_vmem [thread:$0]  %s518, 3072, %s520, %s509, 192, 192, 12
        $region40: #{vit1d_forward_pallas.2} parent=27 // pred_fallthru
          _
        // Predicated region
        $region41: #{vit1d_forward_pallas.2} parent=27 // pred_check
          %p526 = pneg %p213
        $region42: #{vit1d_forward_pallas.2} parent=27 // pred_check_branch
          %528 = sbr.rel (%p526) target = $region44
        $region43: #{vit1d_forward_pallas.2} parent=27 // pred_region
          %p529 = scmp.lt.s32.totalorder %s38, 1
          %s530 = scalar_select %p529, %s38, 1
          %s531 = smul.addr %s530, 3
          %s532 = scalar_lea.vmem %s6, %s531
        $region44: #{vit1d_forward_pallas.2} parent=27 // pred_fallthru
          _
        // Predicated region
        $region45: #{vit1d_forward_pallas.2} parent=27 // pred_check
          %p533 = pneg %p239
        $region46: #{vit1d_forward_pallas.2} parent=27 // pred_check_branch
          %535 = sbr.rel (%p533) target = $region48
        $region47: #{vit1d_forward_pallas.2} parent=27 // pred_region
          %s536 = sand.u32 %s30, 1
          %s537 = scalar_lea.sflag [#allocation6], %s536
          %s538 = sand.u32 %s229, 1
          %s539 = smul.addr %s538, 64
          %s540 = scalar_lea.vmem [#allocation5], %s539
          %s542 = ssub.s32 1024, 1024
          %543 = vsyncadd %s537, %s542
          %s544 = smul.addr %s38, 16
          %s545 = smul.addr %s544, 64
          %s546 = scalar_lea.hbm %s7, %s545
          %s547 = sshll.u32 %s540, 4
          %s548 = int_to_ptr.vmem [resolvable:$true] %s547
          %553 = dma.hbm_to_vmem [thread:$0]  %s546, 1024, %s548, %s537, 64, 64, 4
        $region48: #{vit1d_forward_pallas.2} parent=27 // pred_fallthru
          _
        // Predicated region
        $region49: #{vit1d_forward_pallas.2} parent=27 // pred_check
          %p554 = pneg %p265
        $region50: #{vit1d_forward_pallas.2} parent=27 // pred_check_branch
          %556 = sbr.rel (%p554) target = $region52
        $region51: #{vit1d_forward_pallas.2} parent=27 // pred_region
          %p557 = scmp.lt.s32.totalorder %s38, 1
          %s558 = scalar_select %p557, %s38, 1
          %s559 = scalar_lea.vmem %s8, %s558
        $region52: #{vit1d_forward_pallas.2} parent=27 // pred_fallthru
          _
        // Predicated region
        $region53: #{vit1d_forward_pallas.2} parent=27 // pred_check
          %p560 = pneg %p291
        $region54: #{vit1d_forward_pallas.2} parent=27 // pred_check_branch
          %562 = sbr.rel (%p560) target = $region56
        $region55: #{vit1d_forward_pallas.2} parent=27 // pred_region
          %s563 = sand.u32 %s30, 1
          %s564 = scalar_lea.sflag [#allocation6], %s563
          %s565 = sand.u32 %s281, 1
          %s566 = scalar_lea.vmem [#allocation7], %s565
          %s568 = ssub.s32 16, 16
          %569 = vsyncadd %s564, %s568
          %s570 = smul.addr %s38, 16
          %s571 = scalar_lea.hbm %s9, %s570
          %s573 = sshll.u32 %s566, 4
          %s574 = int_to_ptr.vmem [resolvable:$true] %s573
          %576 = dma.hbm_to_vmem [thread:$0]  %s571, 16, %s574, %s564
        $region56: #{vit1d_forward_pallas.2} parent=27 // pred_fallthru
          _
        // Predicated region
        $region57: #{vit1d_forward_pallas.2} parent=27 // pred_check
          %p577 = pneg %p317
        $region58: #{vit1d_forward_pallas.2} parent=27 // pred_check_branch
          %579 = sbr.rel (%p577) target = $region60
        $region59: #{vit1d_forward_pallas.2} parent=27 // pred_region
          %p580 = scmp.lt.s32.totalorder %s38, 1
          %s581 = scalar_select %p580, %s38, 1
          %s582 = scalar_lea.vmem %s10, %s581
        $region60: #{vit1d_forward_pallas.2} parent=27 // pred_fallthru
          _
        // Predicated region
        $region61: #{vit1d_forward_pallas.2} parent=27 // pred_check
          %p583 = pneg %p343
        $region62: #{vit1d_forward_pallas.2} parent=27 // pred_check_branch
          %585 = sbr.rel (%p583) target = $region64
        $region63: #{vit1d_forward_pallas.2} parent=27 // pred_region
          %p586 = scmp.lt.s32.totalorder %s38, 1
          %s587 = scalar_select %p586, %s38, 1
          %s588 = smul.addr %s587, 32
          %s589 = smul.addr %s588, 4
          %s590 = scalar_lea.vmem %s11, %s589
        $region64: #{vit1d_forward_pallas.2} parent=27 // pred_fallthru
          _
        // Predicated region
        $region65: #{vit1d_forward_pallas.2} parent=27 // pred_check
          %p591 = pneg %p369
        $region66: #{vit1d_forward_pallas.2} parent=27 // pred_check_branch
          %593 = sbr.rel (%p591) target = $region68
        $region67: #{vit1d_forward_pallas.2} parent=27 // pred_region
          %p594 = scmp.lt.s32.totalorder %s38, 1
          %s595 = scalar_select %p594, %s38, 1
          %s596 = smul.addr %s595, 2
          %s597 = scalar_lea.vmem %s12, %s596
        $region68: #{vit1d_forward_pallas.2} parent=27 // pred_fallthru
          _
        // Predicated region
        $region69: #{vit1d_forward_pallas.2} parent=27 // pred_check
          %p598 = pneg %p395
        $region70: #{vit1d_forward_pallas.2} parent=27 // pred_check_branch
          %600 = sbr.rel (%p598) target = $region72
        $region71: #{vit1d_forward_pallas.2} parent=27 // pred_region
          %s601 = sand.u32 %s30, 1
          %s602 = scalar_lea.sflag [#allocation9], %s601
          %s603 = sand.u32 %s385, 1
          %s604 = smul.addr %s603, 128
          %s605 = scalar_lea.vmem [#allocation8], %s604
          %s607 = ssub.s32 2048, 2048
          %608 = vsyncadd %s602, %s607
          %s609 = smul.addr %s38, 32
          %s610 = smul.addr %s609, 64
          %s611 = scalar_lea.hbm %s13, %s610
          %s612 = sshll.u32 %s605, 4
          %s613 = int_to_ptr.vmem [resolvable:$true] %s612
          %618 = dma.hbm_to_vmem [thread:$0]  %s611, 2048, %s613, %s602, 64, 64, 4
        $region72: #{vit1d_forward_pallas.2} parent=27 // pred_fallthru
          _
        // Predicated region
        $region73: #{vit1d_forward_pallas.2} parent=27 // pred_check
          %p619 = pneg %p421
        $region74: #{vit1d_forward_pallas.2} parent=27 // pred_check_branch
          %621 = sbr.rel (%p619) target = $region76
        $region75: #{vit1d_forward_pallas.2} parent=27 // pred_region
          %s622 = sand.u32 %s30, 1
          %s623 = scalar_lea.sflag [#allocation9], %s622
          %s624 = sand.u32 %s411, 1
          %s625 = scalar_lea.vmem [#allocation10], %s624
          %s627 = ssub.s32 16, 16
          %628 = vsyncadd %s623, %s627
          %s629 = smul.addr %s38, 16
          %s630 = scalar_lea.hbm %s14, %s629
          %s632 = sshll.u32 %s625, 4
          %s633 = int_to_ptr.vmem [resolvable:$true] %s632
          %635 = dma.hbm_to_vmem [thread:$0]  %s630, 16, %s633, %s623
        $region76: #{vit1d_forward_pallas.2} parent=27 // pred_fallthru
          _
      $region28: #{vit1d_forward_pallas.2} parent=5 // pred_fallthru
        _
      %p636 = scmp.le.s32.totalorder 1, %s30
      %p637 = scmp.lt.s32.totalorder %s30, 3
      %p638 = pnand %p636, %p637
      %p639 = pneg %p638
      // Predicated region
      $region77: #{vit1d_forward_pallas.2} parent=5 // pred_check
        _
      $region78: #{vit1d_forward_pallas.2} parent=5 // pred_check_branch
        %641 = sbr.rel (%p638) target = $region80
      $region79: #{vit1d_forward_pallas.2} parent=5 // pred_region
        %s642 = ssub.s32 %s30, 1
        %s643 = sand.u32 %s180, 1
        %s644 = scalar_lea.sflag [#allocation4], %s643
        %s645 = sand.u32 %s180, 1
        %s646 = smul.addr %s645, 192
        %s647 = scalar_lea.vmem [#allocation3], %s646
        // Predicated region
        $region81: #{vit1d_forward_pallas.2} parent=79 // pred_check
          %p648 = pneg %p193
        $region82: #{vit1d_forward_pallas.2} parent=79 // pred_check_branch
          %650 = sbr.rel (%p648) target = $region84
        $region83: #{vit1d_forward_pallas.2} parent=79 // pred_region
          %651 = dma.done %s644, 3072
        $region84: #{vit1d_forward_pallas.2} parent=79 // pred_fallthru
          _
        %s652 = sand.u32 %s35, 1
        %s653 = scalar_lea.sflag [#allocation6], %s652
        %s654 = sand.u32 %s232, 1
        %s655 = smul.addr %s654, 64
        %s656 = scalar_lea.vmem [#allocation5], %s655
        // Predicated region
        $region85: #{vit1d_forward_pallas.2} parent=79 // pred_check
          %p657 = pneg %p245
        $region86: #{vit1d_forward_pallas.2} parent=79 // pred_check_branch
          %659 = sbr.rel (%p657) target = $region88
        $region87: #{vit1d_forward_pallas.2} parent=79 // pred_region
          %660 = dma.done %s653, 1024
        $region88: #{vit1d_forward_pallas.2} parent=79 // pred_fallthru
          _
        %s661 = sand.u32 %s35, 1
        %s662 = scalar_lea.sflag [#allocation6], %s661
        %s663 = sand.u32 %s284, 1
        %s664 = scalar_lea.vmem [#allocation7], %s663
        // Predicated region
        $region89: #{vit1d_forward_pallas.2} parent=79 // pred_check
          %p665 = pneg %p297
        $region90: #{vit1d_forward_pallas.2} parent=79 // pred_check_branch
          %667 = sbr.rel (%p665) target = $region92
        $region91: #{vit1d_forward_pallas.2} parent=79 // pred_region
          %668 = dma.done %s662, 16
        $region92: #{vit1d_forward_pallas.2} parent=79 // pred_fallthru
          _
        %s669 = sand.u32 %s35, 1
        %s670 = scalar_lea.sflag [#allocation9], %s669
        %s671 = sand.u32 %s388, 1
        %s672 = smul.addr %s671, 128
        %s673 = scalar_lea.vmem [#allocation8], %s672
        // Predicated region
        $region93: #{vit1d_forward_pallas.2} parent=79 // pred_check
          %p674 = pneg %p401
        $region94: #{vit1d_forward_pallas.2} parent=79 // pred_check_branch
          %676 = sbr.rel (%p674) target = $region96
        $region95: #{vit1d_forward_pallas.2} parent=79 // pred_region
          %677 = dma.done %s670, 2048
        $region96: #{vit1d_forward_pallas.2} parent=79 // pred_fallthru
          _
        %s678 = sand.u32 %s35, 1
        %s679 = scalar_lea.sflag [#allocation9], %s678
        %s680 = sand.u32 %s414, 1
        %s681 = scalar_lea.vmem [#allocation10], %s680
        // Predicated region
        $region97: #{vit1d_forward_pallas.2} parent=79 // pred_check
          %p682 = pneg %p427
        $region98: #{vit1d_forward_pallas.2} parent=79 // pred_check_branch
          %684 = sbr.rel (%p682) target = $region100
        $region99: #{vit1d_forward_pallas.2} parent=79 // pred_region
          %685 = dma.done %s679, 16
        $region100: #{vit1d_forward_pallas.2} parent=79 // pred_fallthru
          _
        %s686 = smul.u32 2, %s39
        %p687 = scmp.lt.s32.totalorder %s686, 1
        %s688 = scalar_select %p687, %s686, 1
        %s689 = smul.addr %s688, 4
        %s690 = scalar_lea.vmem %s0, %s689
        %p691 = pneg %p68
        %p692 = pneg %p65
        %p693 = pneg %p89
        %p694 = pneg %p86
        %s695 = smul.u32 2, %s39
        %p696 = scmp.lt.s32.totalorder %s695, 1
        %s697 = scalar_select %p696, %s695, 1
        %s698 = smul.addr %s697, 8
        %s699 = scalar_lea.vmem %s2, %s698
        %p700 = pneg %p115
        %p701 = pneg %p112
        %p702 = scmp.lt.s32.totalorder %s40, 1
        %s703 = scalar_select %p702, %s40, 1
        %s704 = scalar_lea.vmem %s3, %s703
        %p705 = pneg %p141
        %p706 = pneg %p138
        %p707 = scmp.lt.s32.totalorder %s40, 1
        %s708 = scalar_select %p707, %s40, 1
        %s709 = scalar_lea.vmem %s4, %s708
        %p710 = pneg %p167
        %p711 = pneg %p164
        %s712 = sand.u32 %s180, 1
        %s713 = scalar_lea.sflag [#allocation4], %s712
        %s714 = sand.u32 %s180, 1
        %s715 = smul.addr %s714, 192
        %s716 = scalar_lea.vmem [#allocation3], %s715
        %p717 = pneg %p193
        %p718 = pneg %p190
        %p719 = scmp.lt.s32.totalorder %s40, 1
        %s720 = scalar_select %p719, %s40, 1
        %s721 = smul.addr %s720, 3
        %s722 = scalar_lea.vmem %s6, %s721
        %p723 = pneg %p219
        %p724 = pneg %p216
        %s725 = sand.u32 %s35, 1
        %s726 = scalar_lea.sflag [#allocation6], %s725
        %s727 = sand.u32 %s232, 1
        %s728 = smul.addr %s727, 64
        %s729 = scalar_lea.vmem [#allocation5], %s728
        %p730 = pneg %p245
        %p731 = pneg %p242
        %p732 = scmp.lt.s32.totalorder %s40, 1
        %s733 = scalar_select %p732, %s40, 1
        %s734 = scalar_lea.vmem %s8, %s733
        %p735 = pneg %p271
        %p736 = pneg %p268
        %s737 = sand.u32 %s35, 1
        %s738 = scalar_lea.sflag [#allocation6], %s737
        %s739 = sand.u32 %s284, 1
        %s740 = scalar_lea.vmem [#allocation7], %s739
        %p741 = pneg %p297
        %p742 = pneg %p294
        %p743 = scmp.lt.s32.totalorder %s40, 1
        %s744 = scalar_select %p743, %s40, 1
        %s745 = scalar_lea.vmem %s10, %s744
        %p746 = pneg %p323
        %p747 = pneg %p320
        %p748 = scmp.lt.s32.totalorder %s40, 1
        %s749 = scalar_select %p748, %s40, 1
        %s750 = smul.addr %s749, 32
        %s751 = smul.addr %s750, 4
        %s752 = scalar_lea.vmem %s11, %s751
        %p753 = pneg %p349
        %p754 = pneg %p346
        %p755 = scmp.lt.s32.totalorder %s40, 1
        %s756 = scalar_select %p755, %s40, 1
        %s757 = smul.addr %s756, 2
        %s758 = scalar_lea.vmem %s12, %s757
        %p759 = pneg %p375
        %p760 = pneg %p372
        %s761 = sand.u32 %s35, 1
        %s762 = scalar_lea.sflag [#allocation9], %s761
        %s763 = sand.u32 %s388, 1
        %s764 = smul.addr %s763, 128
        %s765 = scalar_lea.vmem [#allocation8], %s764
        %p766 = pneg %p401
        %p767 = pneg %p398
        %s768 = sand.u32 %s35, 1
        %s769 = scalar_lea.sflag [#allocation9], %s768
        %s770 = sand.u32 %s414, 1
        %s771 = scalar_lea.vmem [#allocation10], %s770
        %p772 = pneg %p427
        %p773 = pneg %p424
        %p774 = pneg %p453
        %p775 = pneg %p450
        %s776 = smul.u32 2, %s39
        %p777 = scmp.lt.s32.totalorder %s776, 1
        %s778 = scalar_select %p777, %s776, 1
        %s779 = smul.addr %s778, 8
        %s780 = scalar_lea.vmem %s15, %s779
        %s781 = smul.u32 2, %s39
        %p782 = scmp.lt.s32.totalorder %s781, 1
        %s783 = scalar_select %p782, %s781, 1
        %s784 = smul.addr %s783, 4
        %s785 = scalar_lea.vmem %s0, %s784
        %s786 = smul.u32 2, %s39
        %s787 = smul.u32 2, %s39
        %p788 = scmp.lt.s32.totalorder %s787, 1
        %s789 = scalar_select %p788, %s787, 1
        %s790 = smul.addr %s789, 8
        %s791 = scalar_lea.vmem %s2, %s790
        %s792 = smul.u32 2, %s39
        %p793 = scmp.lt.s32.totalorder %s40, 1
        %s794 = scalar_select %p793, %s40, 1
        %s795 = scalar_lea.vmem %s3, %s794
        %p796 = scmp.lt.s32.totalorder %s40, 1
        %s797 = scalar_select %p796, %s40, 1
        %s798 = scalar_lea.vmem %s4, %s797
        %p799 = scmp.lt.s32.totalorder %s40, 1
        %s800 = scalar_select %p799, %s40, 1
        %s801 = smul.addr %s800, 3
        %s802 = scalar_lea.vmem %s6, %s801
        %p803 = scmp.lt.s32.totalorder %s40, 1
        %s804 = scalar_select %p803, %s40, 1
        %s805 = scalar_lea.vmem %s8, %s804
        %p806 = scmp.lt.s32.totalorder %s40, 1
        %s807 = scalar_select %p806, %s40, 1
        %s808 = scalar_lea.vmem %s10, %s807
        %p809 = scmp.lt.s32.totalorder %s40, 1
        %s810 = scalar_select %p809, %s40, 1
        %s811 = smul.addr %s810, 32
        %s812 = smul.addr %s811, 4
        %s813 = scalar_lea.vmem %s11, %s812
        %p814 = scmp.lt.s32.totalorder %s40, 1
        %s815 = scalar_select %p814, %s40, 1
        %s816 = smul.addr %s815, 2
        %s817 = scalar_lea.vmem %s12, %s816
        %s818 = smul.u32 2, %s39
        %p819 = scmp.lt.s32.totalorder %s818, 1
        %s820 = scalar_select %p819, %s818, 1
        %s821 = smul.addr %s820, 8
        %s822 = scalar_lea.vmem %s15, %s821
        %s823 = smul.u32 2, %s39
        %p825 = scmp.eq.s32.totalorder %s40, 0
        // Predicated region
        $region101: #{vit1d_forward_pallas.2} parent=79 // pred_check
          %p826 = pneg %p825
        $region102: #{vit1d_forward_pallas.2} parent=79 // pred_check_branch
          %828 = sbr.rel (%p826) target = $region104
        $region103: #{vit1d_forward_pallas.2} parent=79 // pred_region
          %v829 = vld [vmem:[%s785] sm:$0xf]
          %v830 = vld [vmem:[%s785 + $0x4] sm:$0xf]
          %v831 = vld [vmem:[%s1] sm:$0xf]
          %v832 = vld [vmem:[%s1 + $0x4] sm:$0xf]
          %v833 = vld [vmem:[%s1 + $0x8] sm:$0xf]
          %v834 = vld [vmem:[%s1 + $0xc] sm:$0xf]
          %v835 = vld [vmem:[%s1 + $0x10] sm:$0xf]
          %v836 = vld [vmem:[%s1 + $0x14] sm:$0xf]
          %v837 = vld [vmem:[%s1 + $0x18] sm:$0xf]
          %v838 = vld [vmem:[%s1 + $0x1c] sm:$0xf]
          %v839 = vld [vmem:[%s1 + $0x20] sm:$0xf]
          %v840 = vld [vmem:[%s1 + $0x24] sm:$0xf]
          %v841 = vld [vmem:[%s1 + $0x28] sm:$0xf]
          %v842 = vld [vmem:[%s1 + $0x2c] sm:$0xf]
          %v843 = vld [vmem:[%s1 + $0x30] sm:$0xf]
          %v844 = vld [vmem:[%s1 + $0x34] sm:$0xf]
          %v845 = vld [vmem:[%s1 + $0x38] sm:$0xf]
          %v846 = vld [vmem:[%s1 + $0x3c] sm:$0xf]
          %v847 = vld [vmem:[%s791] sm:$0xff]
          %v848 = vld [vmem:[%s791 + $0x8] sm:$0xff]
          %v851 = vunpack.c.l.b16 %v829
          %v852 = vunpack.c.l.b16 %v830
          %v853 = vpack.c.b16 %v852, %v851
          %v871 = vunpack.c.l.b16 %v831
          %v872 = vunpack.c.l.b16 %v832
          %v873 = vunpack.c.l.b16 %v833
          %v874 = vunpack.c.l.b16 %v834
          %v875 = vunpack.c.l.b16 %v835
          %v876 = vunpack.c.l.b16 %v836
          %v877 = vunpack.c.l.b16 %v837
          %v878 = vunpack.c.l.b16 %v838
          %v879 = vunpack.c.l.b16 %v839
          %v880 = vunpack.c.l.b16 %v840
          %v881 = vunpack.c.l.b16 %v841
          %v882 = vunpack.c.l.b16 %v842
          %v883 = vunpack.c.l.b16 %v843
          %v884 = vunpack.c.l.b16 %v844
          %v885 = vunpack.c.l.b16 %v845
          %v886 = vunpack.c.l.b16 %v846
          %v887 = vpack.c.b16 %v872, %v871
          %v888 = vpack.c.b16 %v874, %v873
          %v889 = vpack.c.b16 %v876, %v875
          %v890 = vpack.c.b16 %v878, %v877
          %v891 = vpack.c.b16 %v880, %v879
          %v892 = vpack.c.b16 %v882, %v881
          %v893 = vpack.c.b16 %v884, %v883
          %v894 = vpack.c.b16 %v886, %v885
          %903 = vmatprep.subr.bf16.mxu0 0
          %904 = vmatpush1.bf16.msra.mxu0 %v894
          %905 = vmatprep.subr.bf16.mxu0 0
          %906 = vmatpush1.bf16.msra.mxu0 %v893
          %907 = vmatprep.subr.bf16.mxu0 0
          %908 = vmatpush1.bf16.msra.mxu0 %v892
          %909 = vmatprep.subr.bf16.mxu0 0
          %910 = vmatpush1.bf16.msra.mxu0 %v891
          %911 = vmatprep.subr.bf16.mxu0 0
          %912 = vmatpush1.bf16.msra.mxu0 %v890
          %913 = vmatprep.subr.bf16.mxu0 0
          %914 = vmatpush1.bf16.msra.mxu0 %v889
          %915 = vmatprep.subr.bf16.mxu0 0
          %916 = vmatpush1.bf16.msra.mxu0 %v888
          %917 = vmatprep.subr.bf16.mxu0 0
          %918 = vmatpush1.bf16.msra.mxu0 %v887
          %919 = vmatprep.subr.bf16.mxu0 0
          %920 = vmatpush2.bf16.msra.mxu0 0
          %921 = vmatprep.subr.bf16.mxu0 0
          %922 = vmatpush2.bf16.msra.mxu0 0
          %923 = vmatprep.subr.bf16.mxu0 0
          %924 = vmatpush2.bf16.msra.mxu0 0
          %925 = vmatprep.subr.bf16.mxu0 0
          %926 = vmatpush2.bf16.msra.mxu0 0
          %927 = vmatprep.subr.bf16.mxu0 0
          %928 = vmatpush2.bf16.msra.mxu0 0
          %929 = vmatprep.subr.bf16.mxu0 0
          %930 = vmatpush2.bf16.msra.mxu0 0
          %931 = vmatprep.subr.bf16.mxu0 0
          %932 = vmatpush2.bf16.msra.mxu0 0
          %933 = vmatprep.subr.bf16.mxu0 0
          %934 = vmatpush2.bf16.msra.mxu0 0
          %935 = vmatprep.mubr.bf16.mxu0 0
          %936 = vmatmul.mubr.bf16.gmra.mxu0 %v853
          %v937 = vpop.f32.mrf.mxu0
          %v938 = vadd.f32 %v847, %v937
          %v939 = vpop.f32.mrf.mxu0
          %v940 = vpop.f32.mrf.mxu0
          %v941 = vadd.f32 %v848, %v940
          %v942 = vpop.f32.mrf.mxu0
          %943 = vdwg.mxu0
          %944 = vst [vmem:[%s822] sm:$0xff] %v938
          %945 = vst [vmem:[%s822 + $0x8] sm:$0xff] %v941
        $region104: #{vit1d_forward_pallas.2} parent=79 // pred_fallthru
          _
        %v946 = vld [vmem:[%s822] sm:$0xff]
        %v947 = vld [vmem:[%s822 + $0x8] sm:$0xff]
        %v948 = vld [vmem:[%s795] sm:$0x1]
        %v949 = vld [vmem:[%s798] sm:$0x1]
        %950 = vadd.xlane.f32.xlu0 %v946
        %v951 = vpop.xlane.xlu0 %950
        %952 = vadd.xlane.f32.xlu0 %v947
        %v953 = vpop.xlane.xlu0 %952
        %v954 = vrcp.pop 128.0
        %v955 = vmul.f32 %v951, %v954
        %v956 = vmul.f32 %v953, %v954
        %v957 = vsub.f32 %v946, %v955
        %v958 = vsub.f32 %v947, %v956
        %v959 = vmul.f32 %v957, %v957
        %v960 = vmul.f32 %v958, %v958
        %961 = vadd.xlane.f32.xlu0 %v959
        %v962 = vpop.xlane.xlu0 %961
        %963 = vadd.xlane.f32.xlu0 %v960
        %v964 = vpop.xlane.xlu0 %963
        %v965 = vmul.f32 %v962, %v954
        %v966 = vmul.f32 %v964, %v954
        %v967 = vadd.f32 %v965, 1e-06
        %v968 = vadd.f32 %v966, 1e-06
        %v969 = vrsqrt.pop %v967
        %v970 = vrsqrt.pop %v968
        %v972 = vlaneseq
        %v973 = vshrl.u32 %v972, 7
        %v974 = vsub.s32 0, %v973
        %v975 = vrot.slane %v948, %v974
        %v977 = vmul.f32 %v969, %v975
        %v978 = vmul.f32 %v970, %v975
        %v979 = vmul.f32 %v957, %v977
        %v980 = vmul.f32 %v958, %v978
        %v982 = vlaneseq
        %v983 = vshrl.u32 %v982, 7
        %v984 = vsub.s32 0, %v983
        %v985 = vrot.slane %v949, %v984
        %v987 = vadd.f32 %v979, %v985
        %v988 = vadd.f32 %v980, %v985
        %v989 = vpack.c.bf16 %v988, %v987
        %v990 = vld [vmem:[%s647] sm:$0xff]
        %v991 = vld [vmem:[%s647 + $0x8] sm:$0xf]
        %v992 = vld [vmem:[%s647 + $0xc] sm:$0xff]
        %v993 = vld [vmem:[%s647 + $0x14] sm:$0xf]
        %v994 = vld [vmem:[%s647 + $0x18] sm:$0xff]
        %v995 = vld [vmem:[%s647 + $0x20] sm:$0xf]
        %v996 = vld [vmem:[%s647 + $0x24] sm:$0xff]
        %v997 = vld [vmem:[%s647 + $0x2c] sm:$0xf]
        %v998 = vld [vmem:[%s647 + $0x30] sm:$0xff]
        %v999 = vld [vmem:[%s647 + $0x38] sm:$0xf]
        %v1000 = vld [vmem:[%s647 + $0x3c] sm:$0xff]
        %v1001 = vld [vmem:[%s647 + $0x44] sm:$0xf]
        %v1002 = vld [vmem:[%s647 + $0x48] sm:$0xff]
        %v1003 = vld [vmem:[%s647 + $0x50] sm:$0xf]
        %v1004 = vld [vmem:[%s647 + $0x54] sm:$0xff]
        %v1005 = vld [vmem:[%s647 + $0x5c] sm:$0xf]
        %v1006 = vld [vmem:[%s647 + $0x60] sm:$0xff]
        %v1007 = vld [vmem:[%s647 + $0x68] sm:$0xf]
        %v1008 = vld [vmem:[%s647 + $0x6c] sm:$0xff]
        %v1009 = vld [vmem:[%s647 + $0x74] sm:$0xf]
        %v1010 = vld [vmem:[%s647 + $0x78] sm:$0xff]
        %v1011 = vld [vmem:[%s647 + $0x80] sm:$0xf]
        %v1012 = vld [vmem:[%s647 + $0x84] sm:$0xff]
        %v1013 = vld [vmem:[%s647 + $0x8c] sm:$0xf]
        %v1014 = vld [vmem:[%s647 + $0x90] sm:$0xff]
        %v1015 = vld [vmem:[%s647 + $0x98] sm:$0xf]
        %v1016 = vld [vmem:[%s647 + $0x9c] sm:$0xff]
        %v1017 = vld [vmem:[%s647 + $0xa4] sm:$0xf]
        %v1018 = vld [vmem:[%s647 + $0xa8] sm:$0xff]
        %v1019 = vld [vmem:[%s647 + $0xb0] sm:$0xf]
        %v1020 = vld [vmem:[%s647 + $0xb4] sm:$0xff]
        %v1021 = vld [vmem:[%s647 + $0xbc] sm:$0xf]
        %v1022 = vld [vmem:[%s802] sm:$0x7]
        %v1024 = vlaneseq
        %v1025 = vshrl.u32 %v1024, 7
        %v1026 = vsub.s32 0, %v1025
        %v1027 = vrot.slane %v1022, %v1026
        %v1028 = vlaneseq
        %v1029 = vshrl.u32 %v1028, 7
        %v1030 = vsub.s32 1, %v1029
        %v1031 = vrot.slane %v1022, %v1030
        %v1032 = vlaneseq
        %v1033 = vshrl.u32 %v1032, 7
        %v1034 = vsub.s32 2, %v1033
        %v1035 = vrot.slane %v1022, %v1034
        %v1071 = vunpack.c.l.b16 %v990
        %v1072 = vunpack.c.h.b16 %v990
        %v1073 = vunpack.c.l.b16 %v991
        %v1074 = vunpack.c.l.b16 %v992
        %v1075 = vunpack.c.h.b16 %v992
        %v1076 = vunpack.c.l.b16 %v993
        %v1077 = vunpack.c.l.b16 %v994
        %v1078 = vunpack.c.h.b16 %v994
        %v1079 = vunpack.c.l.b16 %v995
        %v1080 = vunpack.c.l.b16 %v996
        %v1081 = vunpack.c.h.b16 %v996
        %v1082 = vunpack.c.l.b16 %v997
        %v1083 = vunpack.c.l.b16 %v998
        %v1084 = vunpack.c.h.b16 %v998
        %v1085 = vunpack.c.l.b16 %v999
        %v1086 = vunpack.c.l.b16 %v1000
        %v1087 = vunpack.c.h.b16 %v1000
        %v1088 = vunpack.c.l.b16 %v1001
        %v1089 = vunpack.c.l.b16 %v1002
        %v1090 = vunpack.c.h.b16 %v1002
        %v1091 = vunpack.c.l.b16 %v1003
        %v1092 = vunpack.c.l.b16 %v1004
        %v1093 = vunpack.c.h.b16 %v1004
        %v1094 = vunpack.c.l.b16 %v1005
        %v1095 = vunpack.c.l.b16 %v1006
        %v1096 = vunpack.c.h.b16 %v1006
        %v1097 = vunpack.c.l.b16 %v1007
        %v1098 = vunpack.c.l.b16 %v1008
        %v1099 = vunpack.c.h.b16 %v1008
        %v1100 = vunpack.c.l.b16 %v1009
        %v1101 = vunpack.c.l.b16 %v1010
        %v1102 = vunpack.c.h.b16 %v1010
        %v1103 = vunpack.c.l.b16 %v1011
        %v1104 = vunpack.c.l.b16 %v1012
        %v1105 = vunpack.c.h.b16 %v1012
        %v1106 = vunpack.c.l.b16 %v1013
        %v1107 = vunpack.c.l.b16 %v1014
        %v1108 = vunpack.c.h.b16 %v1014
        %v1109 = vunpack.c.l.b16 %v1015
        %v1110 = vunpack.c.l.b16 %v1016
        %v1111 = vunpack.c.h.b16 %v1016
        %v1112 = vunpack.c.l.b16 %v1017
        %v1113 = vunpack.c.l.b16 %v1018
        %v1114 = vunpack.c.h.b16 %v1018
        %v1115 = vunpack.c.l.b16 %v1019
        %v1116 = vunpack.c.l.b16 %v1020
        %v1117 = vunpack.c.h.b16 %v1020
        %v1118 = vunpack.c.l.b16 %v1021
        %v1119 = vpack.c.b16 %v1074, %v1071
        %v1120 = vpack.c.b16 %v1075, %v1072
        %v1121 = vpack.c.b16 %v1076, %v1073
        %v1122 = vpack.c.b16 %v1080, %v1077
        %v1123 = vpack.c.b16 %v1081, %v1078
        %v1124 = vpack.c.b16 %v1082, %v1079
        %v1125 = vpack.c.b16 %v1086, %v1083
        %v1126 = vpack.c.b16 %v1087, %v1084
        %v1127 = vpack.c.b16 %v1088, %v1085
        %v1128 = vpack.c.b16 %v1092, %v1089
        %v1129 = vpack.c.b16 %v1093, %v1090
        %v1130 = vpack.c.b16 %v1094, %v1091
        %v1131 = vpack.c.b16 %v1098, %v1095
        %v1132 = vpack.c.b16 %v1099, %v1096
        %v1133 = vpack.c.b16 %v1100, %v1097
        %v1134 = vpack.c.b16 %v1104, %v1101
        %v1135 = vpack.c.b16 %v1105, %v1102
        %v1136 = vpack.c.b16 %v1106, %v1103
        %v1137 = vpack.c.b16 %v1110, %v1107
        %v1138 = vpack.c.b16 %v1111, %v1108
        %v1139 = vpack.c.b16 %v1112, %v1109
        %v1140 = vpack.c.b16 %v1116, %v1113
        %v1141 = vpack.c.b16 %v1117, %v1114
        %v1142 = vpack.c.b16 %v1118, %v1115
        %1167 = vmatprep.subr.bf16.mxu0 %v1141
        %1168 = vmatpush1.bf16.msra.mxu0 %v1140
        %1169 = vmatprep.subr.bf16.mxu0 %v1138
        %1170 = vmatpush1.bf16.msra.mxu0 %v1137
        %1171 = vmatprep.subr.bf16.mxu0 %v1135
        %1172 = vmatpush1.bf16.msra.mxu0 %v1134
        %1173 = vmatprep.subr.bf16.mxu0 %v1132
        %1174 = vmatpush1.bf16.msra.mxu0 %v1131
        %1175 = vmatprep.subr.bf16.mxu0 %v1129
        %1176 = vmatpush1.bf16.msra.mxu0 %v1128
        %1177 = vmatprep.subr.bf16.mxu0 %v1126
        %1178 = vmatpush1.bf16.msra.mxu0 %v1125
        %1179 = vmatprep.subr.bf16.mxu0 %v1123
        %1180 = vmatpush1.bf16.msra.mxu0 %v1122
        %1181 = vmatprep.subr.bf16.mxu0 %v1120
        %1182 = vmatpush1.bf16.msra.mxu0 %v1119
        %1183 = vmatprep.subr.bf16.mxu0 0
        %1184 = vmatpush2.bf16.msra.mxu0 0
        %1185 = vmatprep.subr.bf16.mxu0 0
        %1186 = vmatpush2.bf16.msra.mxu0 0
        %1187 = vmatprep.subr.bf16.mxu0 0
        %1188 = vmatpush2.bf16.msra.mxu0 0
        %1189 = vmatprep.subr.bf16.mxu0 0
        %1190 = vmatpush2.bf16.msra.mxu0 0
        %1191 = vmatprep.subr.bf16.mxu0 0
        %1192 = vmatpush2.bf16.msra.mxu0 0
        %1193 = vmatprep.subr.bf16.mxu0 0
        %1194 = vmatpush2.bf16.msra.mxu0 0
        %1195 = vmatprep.subr.bf16.mxu0 0
        %1196 = vmatpush2.bf16.msra.mxu0 0
        %1197 = vmatprep.subr.bf16.mxu0 0
        %1198 = vmatpush2.bf16.msra.mxu0 0
        %1199 = vmatprep.mubr.bf16.mxu0 0
        %1200 = vmatmul.mubr.bf16.gmra.mxu0 %v989
        %v1201 = vpop.f32.mrf.mxu0
        %v1202 = vadd.f32 %v1027, %v1201
        %v1203 = vpop.f32.mrf.mxu0
        %v1204 = vadd.f32 %v1031, %v1203
        %v1205 = vpop.f32.mrf.mxu0
        %v1206 = vadd.f32 %v1027, %v1205
        %v1207 = vpop.f32.mrf.mxu0
        %v1208 = vadd.f32 %v1031, %v1207
        %1209 = vdwg.mxu0
        %1210 = vmatprep.subr.bf16.mxu0 0
        %1211 = vmatpush1.bf16.msra.mxu0 %v1142
        %1212 = vmatprep.subr.bf16.mxu0 0
        %1213 = vmatpush1.bf16.msra.mxu0 %v1139
        %1214 = vmatprep.subr.bf16.mxu0 0
        %1215 = vmatpush1.bf16.msra.mxu0 %v1136
        %1216 = vmatprep.subr.bf16.mxu0 0
        %1217 = vmatpush1.bf16.msra.mxu0 %v1133
        %1218 = vmatprep.subr.bf16.mxu0 0
        %1219 = vmatpush1.bf16.msra.mxu0 %v1130
        %1220 = vmatprep.subr.bf16.mxu0 0
        %1221 = vmatpush1.bf16.msra.mxu0 %v1127
        %1222 = vmatprep.subr.bf16.mxu0 0
        %1223 = vmatpush1.bf16.msra.mxu0 %v1124
        %1224 = vmatprep.subr.bf16.mxu0 0
        %1225 = vmatpush1.bf16.msra.mxu0 %v1121
        %1226 = vmatprep.subr.bf16.mxu0 0
        %1227 = vmatpush2.bf16.msra.mxu0 0
        %1228 = vmatprep.subr.bf16.mxu0 0
        %1229 = vmatpush2.bf16.msra.mxu0 0
        %1230 = vmatprep.subr.bf16.mxu0 0
        %1231 = vmatpush2.bf16.msra.mxu0 0
        %1232 = vmatprep.subr.bf16.mxu0 0
        %1233 = vmatpush2.bf16.msra.mxu0 0
        %1234 = vmatprep.subr.bf16.mxu0 0
        %1235 = vmatpush2.bf16.msra.mxu0 0
        %1236 = vmatprep.subr.bf16.mxu0 0
        %1237 = vmatpush2.bf16.msra.mxu0 0
        %1238 = vmatprep.subr.bf16.mxu0 0
        %1239 = vmatpush2.bf16.msra.mxu0 0
        %1240 = vmatprep.subr.bf16.mxu0 0
        %1241 = vmatpush2.bf16.msra.mxu0 0
        %1242 = vmatprep.mubr.bf16.mxu0 0
        %1243 = vmatmul.mubr.bf16.gmra.mxu0 %v989
        %v1244 = vpop.f32.mrf.mxu0
        %v1245 = vadd.f32 %v1035, %v1244
        %v1246 = vpop.f32.mrf.mxu0
        %v1247 = vpop.f32.mrf.mxu0
        %v1248 = vadd.f32 %v1035, %v1247
        %v1249 = vpop.f32.mrf.mxu0
        %1250 = vdwg.mxu0
        %v1251 = vpack.c.bf16 %v1202, %v1202
        %v1252 = vpack.c.bf16 %v1204, %v1204
        %v1253 = vpack.c.bf16 %v1245, %v1245
        %vm1254 = vcmask 261120
        %v1256 = vsel %vm1254, %v1251, 0
        %v1259 = vsel %vm1254, %v1252, 0
        %1261 = vmatprep.subr.bf16.mxu0 0
        %1262 = vmatpush1.bf16.xpose.msra.mxu0 0
        %1263 = vmatprep.subr.bf16.mxu0 0
        %1264 = vmatpush1.bf16.xpose.msra.mxu0 0
        %1265 = vmatprep.subr.bf16.mxu0 0
        %1266 = vmatpush1.bf16.xpose.msra.mxu0 0
        %1267 = vmatprep.subr.bf16.mxu0 0
        %1268 = vmatpush1.bf16.xpose.msra.mxu0 0
        %1269 = vmatprep.subr.bf16.mxu0 0
        %1270 = vmatpush1.bf16.xpose.msra.mxu0 0
        %1271 = vmatprep.subr.bf16.mxu0 0
        %1272 = vmatpush1.bf16.xpose.msra.mxu0 0
        %1273 = vmatprep.subr.bf16.mxu0 0
        %1274 = vmatpush1.bf16.xpose.msra.mxu0 0
        %1275 = vmatprep.subr.bf16.mxu0 0
        %1276 = vmatpush1.bf16.xpose.msra.mxu0 %v1259
        %1277 = vmatprep.subr.bf16.mxu0 0
        %1278 = vmatpush2.bf16.xpose.msra.mxu0 0
        %1279 = vmatprep.subr.bf16.mxu0 0
        %1280 = vmatpush2.bf16.xpose.msra.mxu0 0
        %1281 = vmatprep.subr.bf16.mxu0 0
        %1282 = vmatpush2.bf16.xpose.msra.mxu0 0
        %1283 = vmatprep.subr.bf16.mxu0 0
        %1284 = vmatpush2.bf16.xpose.msra.mxu0 0
        %1285 = vmatprep.subr.bf16.mxu0 0
        %1286 = vmatpush2.bf16.xpose.msra.mxu0 0
        %1287 = vmatprep.subr.bf16.mxu0 0
        %1288 = vmatpush2.bf16.xpose.msra.mxu0 0
        %1289 = vmatprep.subr.bf16.mxu0 0
        %1290 = vmatpush2.bf16.xpose.msra.mxu0 0
        %1291 = vmatprep.subr.bf16.mxu0 0
        %1292 = vmatpush2.bf16.xpose.msra.mxu0 0
        %1293 = vmatprep.mubr.bf16.mxu0 0
        %1294 = vmatmul.mubr.bf16.gmra.mxu0 %v1256
        %v1295 = vpop.f32.mrf.mxu0
        %v1296 = vadd.f32 0.0, %v1295
        %v1297 = vpop.f32.mrf.mxu0
        %v1298 = vpop.f32.mrf.mxu0
        %v1299 = vpop.f32.mrf.mxu0
        %1300 = vdwg.mxu0
        %v1301 = vmul.f32 %v1296, 0.17677669
        %vm1302 = vcmask 64512
        %v1303 = vsel %vm1302, %v1301, -inf
        %1304 = vmax.xlane.f32.xlu0 %v1303
        %v1305 = vpop.xlane.xlu0 %1304
        %v1306 = vsub.f32 %v1301, %v1305
        %v1307 = vmul.f32 %v1306, 1.442695
        %v1308 = vpow.pop %v1307
        %v1309 = vsel %vm1302, %v1308, 0.0
        %1310 = vadd.xlane.f32.xlu0 %v1309
        %v1311 = vpop.xlane.xlu0 %1310
        %v1312 = vrcp.pop %v1311
        %v1313 = vmul.f32 %v1308, %v1312
        %v1314 = vpack.c.bf16 %v1313, %v1313
        %v1316 = vsel %vm1302, %v1314, 0
        %vm1318 = vcmask 1043456
        %v1320 = vsel %vm1318, %v1253, 0
        %1322 = vmatprep.subr.bf16.mxu0 0
        %1323 = vmatpush1.bf16.msra.mxu0 0
        %1324 = vmatprep.subr.bf16.mxu0 0
        %1325 = vmatpush1.bf16.msra.mxu0 0
        %1326 = vmatprep.subr.bf16.mxu0 0
        %1327 = vmatpush1.bf16.msra.mxu0 0
        %1328 = vmatprep.subr.bf16.mxu0 0
        %1329 = vmatpush1.bf16.msra.mxu0 0
        %1330 = vmatprep.subr.bf16.mxu0 0
        %1331 = vmatpush1.bf16.msra.mxu0 0
        %1332 = vmatprep.subr.bf16.mxu0 0
        %1333 = vmatpush1.bf16.msra.mxu0 0
        %1334 = vmatprep.subr.bf16.mxu0 0
        %1335 = vmatpush1.bf16.msra.mxu0 0
        %1336 = vmatprep.subr.bf16.mxu0 0
        %1337 = vmatpush1.bf16.msra.mxu0 %v1320
        %1338 = vmatprep.subr.bf16.mxu0 0
        %1339 = vmatpush2.bf16.msra.mxu0 0
        %1340 = vmatprep.subr.bf16.mxu0 0
        %1341 = vmatpush2.bf16.msra.mxu0 0
        %1342 = vmatprep.subr.bf16.mxu0 0
        %1343 = vmatpush2.bf16.msra.mxu0 0
        %1344 = vmatprep.subr.bf16.mxu0 0
        %1345 = vmatpush2.bf16.msra.mxu0 0
        %1346 = vmatprep.subr.bf16.mxu0 0
        %1347 = vmatpush2.bf16.msra.mxu0 0
        %1348 = vmatprep.subr.bf16.mxu0 0
        %1349 = vmatpush2.bf16.msra.mxu0 0
        %1350 = vmatprep.subr.bf16.mxu0 0
        %1351 = vmatpush2.bf16.msra.mxu0 0
        %1352 = vmatprep.subr.bf16.mxu0 0
        %1353 = vmatpush2.bf16.msra.mxu0 0
        %1354 = vmatprep.mubr.bf16.mxu0 0
        %1355 = vmatmul.mubr.bf16.gmra.mxu0 %v1316
        %v1356 = vpop.f32.mrf.mxu0
        %v1357 = vadd.f32 0.0, %v1356
        %v1358 = vpop.f32.mrf.mxu0
        %v1359 = vpop.f32.mrf.mxu0
        %v1360 = vpop.f32.mrf.mxu0
        %1361 = vdwg.mxu0
        %1362 = vst.msk [vmem:[#allocation2] sm:$0xff] %vm1254, %v1357
        %1364 = vrot.lane.b32.xlu0 %v1251, 96
        %v1365 = vpop.permute.xlu0 %1364
        %1367 = vrot.lane.b32.xlu0 %v1252, 96
        %v1368 = vpop.permute.xlu0 %1367
        %v1370 = vsel %vm1254, %v1365, 0
        %v1373 = vsel %vm1254, %v1368, 0
        %1375 = vmatprep.subr.bf16.mxu0 0
        %1376 = vmatpush1.bf16.xpose.msra.mxu0 0
        %1377 = vmatprep.subr.bf16.mxu0 0
        %1378 = vmatpush1.bf16.xpose.msra.mxu0 0
        %1379 = vmatprep.subr.bf16.mxu0 0
        %1380 = vmatpush1.bf16.xpose.msra.mxu0 0
        %1381 = vmatprep.subr.bf16.mxu0 0
        %1382 = vmatpush1.bf16.xpose.msra.mxu0 0
        %1383 = vmatprep.subr.bf16.mxu0 0
        %1384 = vmatpush1.bf16.xpose.msra.mxu0 0
        %1385 = vmatprep.subr.bf16.mxu0 0
        %1386 = vmatpush1.bf16.xpose.msra.mxu0 0
        %1387 = vmatprep.subr.bf16.mxu0 0
        %1388 = vmatpush1.bf16.xpose.msra.mxu0 0
        %1389 = vmatprep.subr.bf16.mxu0 0
        %1390 = vmatpush1.bf16.xpose.msra.mxu0 %v1373
        %1391 = vmatprep.subr.bf16.mxu0 0
        %1392 = vmatpush2.bf16.xpose.msra.mxu0 0
        %1393 = vmatprep.subr.bf16.mxu0 0
        %1394 = vmatpush2.bf16.xpose.msra.mxu0 0
        %1395 = vmatprep.subr.bf16.mxu0 0
        %1396 = vmatpush2.bf16.xpose.msra.mxu0 0
        %1397 = vmatprep.subr.bf16.mxu0 0
        %1398 = vmatpush2.bf16.xpose.msra.mxu0 0
        %1399 = vmatprep.subr.bf16.mxu0 0
        %1400 = vmatpush2.bf16.xpose.msra.mxu0 0
        %1401 = vmatprep.subr.bf16.mxu0 0
        %1402 = vmatpush2.bf16.xpose.msra.mxu0 0
        %1403 = vmatprep.subr.bf16.mxu0 0
        %1404 = vmatpush2.bf16.xpose.msra.mxu0 0
        %1405 = vmatprep.subr.bf16.mxu0 0
        %1406 = vmatpush2.bf16.xpose.msra.mxu0 0
        %1407 = vmatprep.mubr.bf16.mxu0 0
        %1408 = vmatmul.mubr.bf16.gmra.mxu0 %v1370
        %v1409 = vpop.f32.mrf.mxu0
        %v1410 = vadd.f32 0.0, %v1409
        %v1411 = vpop.f32.mrf.mxu0
        %v1412 = vpop.f32.mrf.mxu0
        %v1413 = vpop.f32.mrf.mxu0
        %1414 = vdwg.mxu0
        %v1415 = vmul.f32 %v1410, 0.17677669
        %v1416 = vsel %vm1302, %v1415, -inf
        %1417 = vmax.xlane.f32.xlu0 %v1416
        %v1418 = vpop.xlane.xlu0 %1417
        %v1419 = vsub.f32 %v1415, %v1418
        %v1420 = vmul.f32 %v1419, 1.442695
        %v1421 = vpow.pop %v1420
        %v1422 = vsel %vm1302, %v1421, 0.0
        %1423 = vadd.xlane.f32.xlu0 %v1422
        %v1424 = vpop.xlane.xlu0 %1423
        %v1425 = vrcp.pop %v1424
        %v1426 = vmul.f32 %v1421, %v1425
        %v1427 = vpack.c.bf16 %v1426, %v1426
        %1429 = vrot.lane.b32.xlu0 %v1253, 96
        %v1430 = vpop.permute.xlu0 %1429
        %v1432 = vsel %vm1302, %v1427, 0
        %v1435 = vsel %vm1318, %v1430, 0
        %1437 = vmatprep.subr.bf16.mxu0 0
        %1438 = vmatpush1.bf16.msra.mxu0 0
        %1439 = vmatprep.subr.bf16.mxu0 0
        %1440 = vmatpush1.bf16.msra.mxu0 0
        %1441 = vmatprep.subr.bf16.mxu0 0
        %1442 = vmatpush1.bf16.msra.mxu0 0
        %1443 = vmatprep.subr.bf16.mxu0 0
        %1444 = vmatpush1.bf16.msra.mxu0 0
        %1445 = vmatprep.subr.bf16.mxu0 0
        %1446 = vmatpush1.bf16.msra.mxu0 0
        %1447 = vmatprep.subr.bf16.mxu0 0
        %1448 = vmatpush1.bf16.msra.mxu0 0
        %1449 = vmatprep.subr.bf16.mxu0 0
        %1450 = vmatpush1.bf16.msra.mxu0 0
        %1451 = vmatprep.subr.bf16.mxu0 0
        %1452 = vmatpush1.bf16.msra.mxu0 %v1435
        %1453 = vmatprep.subr.bf16.mxu0 0
        %1454 = vmatpush2.bf16.msra.mxu0 0
        %1455 = vmatprep.subr.bf16.mxu0 0
        %1456 = vmatpush2.bf16.msra.mxu0 0
        %1457 = vmatprep.subr.bf16.mxu0 0
        %1458 = vmatpush2.bf16.msra.mxu0 0
        %1459 = vmatprep.subr.bf16.mxu0 0
        %1460 = vmatpush2.bf16.msra.mxu0 0
        %1461 = vmatprep.subr.bf16.mxu0 0
        %1462 = vmatpush2.bf16.msra.mxu0 0
        %1463 = vmatprep.subr.bf16.mxu0 0
        %1464 = vmatpush2.bf16.msra.mxu0 0
        %1465 = vmatprep.subr.bf16.mxu0 0
        %1466 = vmatpush2.bf16.msra.mxu0 0
        %1467 = vmatprep.subr.bf16.mxu0 0
        %1468 = vmatpush2.bf16.msra.mxu0 0
        %1469 = vmatprep.mubr.bf16.mxu0 0
        %1470 = vmatmul.mubr.bf16.gmra.mxu0 %v1432
        %v1471 = vpop.f32.mrf.mxu0
        %v1472 = vadd.f32 0.0, %v1471
        %v1473 = vpop.f32.mrf.mxu0
        %v1474 = vpop.f32.mrf.mxu0
        %v1475 = vpop.f32.mrf.mxu0
        %1476 = vdwg.mxu0
        %1478 = vrot.lane.b32.xlu0 %v1472, 32
        %v1479 = vpop.permute.xlu0 %1478
        %vm1481 = vcmask 523520
        %1482 = vst.msk [vmem:[#allocation2] sm:$0xff] %vm1481, %v1479
        %1483 = vrot.lane.b32.xlu0 %v1251, 64
        %v1484 = vpop.permute.xlu0 %1483
        %1485 = vrot.lane.b32.xlu0 %v1252, 64
        %v1486 = vpop.permute.xlu0 %1485
        %v1488 = vsel %vm1254, %v1484, 0
        %v1491 = vsel %vm1254, %v1486, 0
        %1493 = vmatprep.subr.bf16.mxu0 0
        %1494 = vmatpush1.bf16.xpose.msra.mxu0 0
        %1495 = vmatprep.subr.bf16.mxu0 0
        %1496 = vmatpush1.bf16.xpose.msra.mxu0 0
        %1497 = vmatprep.subr.bf16.mxu0 0
        %1498 = vmatpush1.bf16.xpose.msra.mxu0 0
        %1499 = vmatprep.subr.bf16.mxu0 0
        %1500 = vmatpush1.bf16.xpose.msra.mxu0 0
        %1501 = vmatprep.subr.bf16.mxu0 0
        %1502 = vmatpush1.bf16.xpose.msra.mxu0 0
        %1503 = vmatprep.subr.bf16.mxu0 0
        %1504 = vmatpush1.bf16.xpose.msra.mxu0 0
        %1505 = vmatprep.subr.bf16.mxu0 0
        %1506 = vmatpush1.bf16.xpose.msra.mxu0 0
        %1507 = vmatprep.subr.bf16.mxu0 0
        %1508 = vmatpush1.bf16.xpose.msra.mxu0 %v1491
        %1509 = vmatprep.subr.bf16.mxu0 0
        %1510 = vmatpush2.bf16.xpose.msra.mxu0 0
        %1511 = vmatprep.subr.bf16.mxu0 0
        %1512 = vmatpush2.bf16.xpose.msra.mxu0 0
        %1513 = vmatprep.subr.bf16.mxu0 0
        %1514 = vmatpush2.bf16.xpose.msra.mxu0 0
        %1515 = vmatprep.subr.bf16.mxu0 0
        %1516 = vmatpush2.bf16.xpose.msra.mxu0 0
        %1517 = vmatprep.subr.bf16.mxu0 0
        %1518 = vmatpush2.bf16.xpose.msra.mxu0 0
        %1519 = vmatprep.subr.bf16.mxu0 0
        %1520 = vmatpush2.bf16.xpose.msra.mxu0 0
        %1521 = vmatprep.subr.bf16.mxu0 0
        %1522 = vmatpush2.bf16.xpose.msra.mxu0 0
        %1523 = vmatprep.subr.bf16.mxu0 0
        %1524 = vmatpush2.bf16.xpose.msra.mxu0 0
        %1525 = vmatprep.mubr.bf16.mxu0 0
        %1526 = vmatmul.mubr.bf16.gmra.mxu0 %v1488
        %v1527 = vpop.f32.mrf.mxu0
        %v1528 = vadd.f32 0.0, %v1527
        %v1529 = vpop.f32.mrf.mxu0
        %v1530 = vpop.f32.mrf.mxu0
        %v1531 = vpop.f32.mrf.mxu0
        %1532 = vdwg.mxu0
        %v1533 = vmul.f32 %v1528, 0.17677669
        %v1534 = vsel %vm1302, %v1533, -inf
        %1535 = vmax.xlane.f32.xlu0 %v1534
        %v1536 = vpop.xlane.xlu0 %1535
        %v1537 = vsub.f32 %v1533, %v1536
        %v1538 = vmul.f32 %v1537, 1.442695
        %v1539 = vpow.pop %v1538
        %v1540 = vsel %vm1302, %v1539, 0.0
        %1541 = vadd.xlane.f32.xlu0 %v1540
        %v1542 = vpop.xlane.xlu0 %1541
        %v1543 = vrcp.pop %v1542
        %v1544 = vmul.f32 %v1539, %v1543
        %v1545 = vpack.c.bf16 %v1544, %v1544
        %1546 = vrot.lane.b32.xlu0 %v1253, 64
        %v1547 = vpop.permute.xlu0 %1546
        %v1549 = vsel %vm1302, %v1545, 0
        %v1552 = vsel %vm1318, %v1547, 0
        %1554 = vmatprep.subr.bf16.mxu0 0
        %1555 = vmatpush1.bf16.msra.mxu0 0
        %1556 = vmatprep.subr.bf16.mxu0 0
        %1557 = vmatpush1.bf16.msra.mxu0 0
        %1558 = vmatprep.subr.bf16.mxu0 0
        %1559 = vmatpush1.bf16.msra.mxu0 0
        %1560 = vmatprep.subr.bf16.mxu0 0
        %1561 = vmatpush1.bf16.msra.mxu0 0
        %1562 = vmatprep.subr.bf16.mxu0 0
        %1563 = vmatpush1.bf16.msra.mxu0 0
        %1564 = vmatprep.subr.bf16.mxu0 0
        %1565 = vmatpush1.bf16.msra.mxu0 0
        %1566 = vmatprep.subr.bf16.mxu0 0
        %1567 = vmatpush1.bf16.msra.mxu0 0
        %1568 = vmatprep.subr.bf16.mxu0 0
        %1569 = vmatpush1.bf16.msra.mxu0 %v1552
        %1570 = vmatprep.subr.bf16.mxu0 0
        %1571 = vmatpush2.bf16.msra.mxu0 0
        %1572 = vmatprep.subr.bf16.mxu0 0
        %1573 = vmatpush2.bf16.msra.mxu0 0
        %1574 = vmatprep.subr.bf16.mxu0 0
        %1575 = vmatpush2.bf16.msra.mxu0 0
        %1576 = vmatprep.subr.bf16.mxu0 0
        %1577 = vmatpush2.bf16.msra.mxu0 0
        %1578 = vmatprep.subr.bf16.mxu0 0
        %1579 = vmatpush2.bf16.msra.mxu0 0
        %1580 = vmatprep.subr.bf16.mxu0 0
        %1581 = vmatpush2.bf16.msra.mxu0 0
        %1582 = vmatprep.subr.bf16.mxu0 0
        %1583 = vmatpush2.bf16.msra.mxu0 0
        %1584 = vmatprep.subr.bf16.mxu0 0
        %1585 = vmatpush2.bf16.msra.mxu0 0
        %1586 = vmatprep.mubr.bf16.mxu0 0
        %1587 = vmatmul.mubr.bf16.gmra.mxu0 %v1549
        %v1588 = vpop.f32.mrf.mxu0
        %v1589 = vadd.f32 0.0, %v1588
        %v1590 = vpop.f32.mrf.mxu0
        %v1591 = vpop.f32.mrf.mxu0
        %v1592 = vpop.f32.mrf.mxu0
        %1593 = vdwg.mxu0
        %1595 = vrot.lane.b32.xlu0 %v1589, 64
        %v1596 = vpop.permute.xlu0 %1595
        %vm1598 = vcmask 785920
        %1599 = vst.msk [vmem:[#allocation2] sm:$0xff] %vm1598, %v1596
        %1600 = vrot.lane.b32.xlu0 %v1251, 32
        %v1601 = vpop.permute.xlu0 %1600
        %1602 = vrot.lane.b32.xlu0 %v1252, 32
        %v1603 = vpop.permute.xlu0 %1602
        %v1605 = vsel %vm1254, %v1601, 0
        %v1608 = vsel %vm1254, %v1603, 0
        %1610 = vmatprep.subr.bf16.mxu0 0
        %1611 = vmatpush1.bf16.xpose.msra.mxu0 0
        %1612 = vmatprep.subr.bf16.mxu0 0
        %1613 = vmatpush1.bf16.xpose.msra.mxu0 0
        %1614 = vmatprep.subr.bf16.mxu0 0
        %1615 = vmatpush1.bf16.xpose.msra.mxu0 0
        %1616 = vmatprep.subr.bf16.mxu0 0
        %1617 = vmatpush1.bf16.xpose.msra.mxu0 0
        %1618 = vmatprep.subr.bf16.mxu0 0
        %1619 = vmatpush1.bf16.xpose.msra.mxu0 0
        %1620 = vmatprep.subr.bf16.mxu0 0
        %1621 = vmatpush1.bf16.xpose.msra.mxu0 0
        %1622 = vmatprep.subr.bf16.mxu0 0
        %1623 = vmatpush1.bf16.xpose.msra.mxu0 0
        %1624 = vmatprep.subr.bf16.mxu0 0
        %1625 = vmatpush1.bf16.xpose.msra.mxu0 %v1608
        %1626 = vmatprep.subr.bf16.mxu0 0
        %1627 = vmatpush2.bf16.xpose.msra.mxu0 0
        %1628 = vmatprep.subr.bf16.mxu0 0
        %1629 = vmatpush2.bf16.xpose.msra.mxu0 0
        %1630 = vmatprep.subr.bf16.mxu0 0
        %1631 = vmatpush2.bf16.xpose.msra.mxu0 0
        %1632 = vmatprep.subr.bf16.mxu0 0
        %1633 = vmatpush2.bf16.xpose.msra.mxu0 0
        %1634 = vmatprep.subr.bf16.mxu0 0
        %1635 = vmatpush2.bf16.xpose.msra.mxu0 0
        %1636 = vmatprep.subr.bf16.mxu0 0
        %1637 = vmatpush2.bf16.xpose.msra.mxu0 0
        %1638 = vmatprep.subr.bf16.mxu0 0
        %1639 = vmatpush2.bf16.xpose.msra.mxu0 0
        %1640 = vmatprep.subr.bf16.mxu0 0
        %1641 = vmatpush2.bf16.xpose.msra.mxu0 0
        %1642 = vmatprep.mubr.bf16.mxu0 0
        %1643 = vmatmul.mubr.bf16.gmra.mxu0 %v1605
        %v1644 = vpop.f32.mrf.mxu0
        %v1645 = vadd.f32 0.0, %v1644
        %v1646 = vpop.f32.mrf.mxu0
        %v1647 = vpop.f32.mrf.mxu0
        %v1648 = vpop.f32.mrf.mxu0
        %1649 = vdwg.mxu0
        %v1650 = vmul.f32 %v1645, 0.17677669
        %v1651 = vsel %vm1302, %v1650, -inf
        %1652 = vmax.xlane.f32.xlu0 %v1651
        %v1653 = vpop.xlane.xlu0 %1652
        %v1654 = vsub.f32 %v1650, %v1653
        %v1655 = vmul.f32 %v1654, 1.442695
        %v1656 = vpow.pop %v1655
        %v1657 = vsel %vm1302, %v1656, 0.0
        %1658 = vadd.xlane.f32.xlu0 %v1657
        %v1659 = vpop.xlane.xlu0 %1658
        %v1660 = vrcp.pop %v1659
        %v1661 = vmul.f32 %v1656, %v1660
        %v1662 = vpack.c.bf16 %v1661, %v1661
        %1663 = vrot.lane.b32.xlu0 %v1253, 32
        %v1664 = vpop.permute.xlu0 %1663
        %v1666 = vsel %vm1302, %v1662, 0
        %v1669 = vsel %vm1318, %v1664, 0
        %1671 = vmatprep.subr.bf16.mxu0 0
        %1672 = vmatpush1.bf16.msra.mxu0 0
        %1673 = vmatprep.subr.bf16.mxu0 0
        %1674 = vmatpush1.bf16.msra.mxu0 0
        %1675 = vmatprep.subr.bf16.mxu0 0
        %1676 = vmatpush1.bf16.msra.mxu0 0
        %1677 = vmatprep.subr.bf16.mxu0 0
        %1678 = vmatpush1.bf16.msra.mxu0 0
        %1679 = vmatprep.subr.bf16.mxu0 0
        %1680 = vmatpush1.bf16.msra.mxu0 0
        %1681 = vmatprep.subr.bf16.mxu0 0
        %1682 = vmatpush1.bf16.msra.mxu0 0
        %1683 = vmatprep.subr.bf16.mxu0 0
        %1684 = vmatpush1.bf16.msra.mxu0 0
        %1685 = vmatprep.subr.bf16.mxu0 0
        %1686 = vmatpush1.bf16.msra.mxu0 %v1669
        %1687 = vmatprep.subr.bf16.mxu0 0
        %1688 = vmatpush2.bf16.msra.mxu0 0
        %1689 = vmatprep.subr.bf16.mxu0 0
        %1690 = vmatpush2.bf16.msra.mxu0 0
        %1691 = vmatprep.subr.bf16.mxu0 0
        %1692 = vmatpush2.bf16.msra.mxu0 0
        %1693 = vmatprep.subr.bf16.mxu0 0
        %1694 = vmatpush2.bf16.msra.mxu0 0
        %1695 = vmatprep.subr.bf16.mxu0 0
        %1696 = vmatpush2.bf16.msra.mxu0 0
        %1697 = vmatprep.subr.bf16.mxu0 0
        %1698 = vmatpush2.bf16.msra.mxu0 0
        %1699 = vmatprep.subr.bf16.mxu0 0
        %1700 = vmatpush2.bf16.msra.mxu0 0
        %1701 = vmatprep.subr.bf16.mxu0 0
        %1702 = vmatpush2.bf16.msra.mxu0 0
        %1703 = vmatprep.mubr.bf16.mxu0 0
        %1704 = vmatmul.mubr.bf16.gmra.mxu0 %v1666
        %v1705 = vpop.f32.mrf.mxu0
        %v1706 = vadd.f32 0.0, %v1705
        %v1707 = vpop.f32.mrf.mxu0
        %v1708 = vpop.f32.mrf.mxu0
        %v1709 = vpop.f32.mrf.mxu0
        %1710 = vdwg.mxu0
        %1712 = vrot.lane.b32.xlu0 %v1706, 96
        %v1713 = vpop.permute.xlu0 %1712
        %vm1715 = vcmask 1048320
        %1716 = vst.msk [vmem:[#allocation2] sm:$0xff] %vm1715, %v1713
        %v1717 = vpack.c.bf16 %v1206, %v1206
        %v1718 = vpack.c.bf16 %v1208, %v1208
        %v1719 = vpack.c.bf16 %v1248, %v1248
        %v1721 = vsel %vm1254, %v1717, 0
        %v1724 = vsel %vm1254, %v1718, 0
        %1726 = vmatprep.subr.bf16.mxu0 0
        %1727 = vmatpush1.bf16.xpose.msra.mxu0 0
        %1728 = vmatprep.subr.bf16.mxu0 0
        %1729 = vmatpush1.bf16.xpose.msra.mxu0 0
        %1730 = vmatprep.subr.bf16.mxu0 0
        %1731 = vmatpush1.bf16.xpose.msra.mxu0 0
        %1732 = vmatprep.subr.bf16.mxu0 0
        %1733 = vmatpush1.bf16.xpose.msra.mxu0 0
        %1734 = vmatprep.subr.bf16.mxu0 0
        %1735 = vmatpush1.bf16.xpose.msra.mxu0 0
        %1736 = vmatprep.subr.bf16.mxu0 0
        %1737 = vmatpush1.bf16.xpose.msra.mxu0 0
        %1738 = vmatprep.subr.bf16.mxu0 0
        %1739 = vmatpush1.bf16.xpose.msra.mxu0 0
        %1740 = vmatprep.subr.bf16.mxu0 0
        %1741 = vmatpush1.bf16.xpose.msra.mxu0 %v1724
        %1742 = vmatprep.subr.bf16.mxu0 0
        %1743 = vmatpush2.bf16.xpose.msra.mxu0 0
        %1744 = vmatprep.subr.bf16.mxu0 0
        %1745 = vmatpush2.bf16.xpose.msra.mxu0 0
        %1746 = vmatprep.subr.bf16.mxu0 0
        %1747 = vmatpush2.bf16.xpose.msra.mxu0 0
        %1748 = vmatprep.subr.bf16.mxu0 0
        %1749 = vmatpush2.bf16.xpose.msra.mxu0 0
        %1750 = vmatprep.subr.bf16.mxu0 0
        %1751 = vmatpush2.bf16.xpose.msra.mxu0 0
        %1752 = vmatprep.subr.bf16.mxu0 0
        %1753 = vmatpush2.bf16.xpose.msra.mxu0 0
        %1754 = vmatprep.subr.bf16.mxu0 0
        %1755 = vmatpush2.bf16.xpose.msra.mxu0 0
        %1756 = vmatprep.subr.bf16.mxu0 0
        %1757 = vmatpush2.bf16.xpose.msra.mxu0 0
        %1758 = vmatprep.mubr.bf16.mxu0 0
        %1759 = vmatmul.mubr.bf16.gmra.mxu0 %v1721
        %v1760 = vpop.f32.mrf.mxu0
        %v1761 = vadd.f32 0.0, %v1760
        %v1762 = vpop.f32.mrf.mxu0
        %v1763 = vpop.f32.mrf.mxu0
        %v1764 = vpop.f32.mrf.mxu0
        %1765 = vdwg.mxu0
        %v1766 = vmul.f32 %v1761, 0.17677669
        %v1767 = vsel %vm1302, %v1766, -inf
        %1768 = vmax.xlane.f32.xlu0 %v1767
        %v1769 = vpop.xlane.xlu0 %1768
        %v1770 = vsub.f32 %v1766, %v1769
        %v1771 = vmul.f32 %v1770, 1.442695
        %v1772 = vpow.pop %v1771
        %v1773 = vsel %vm1302, %v1772, 0.0
        %1774 = vadd.xlane.f32.xlu0 %v1773
        %v1775 = vpop.xlane.xlu0 %1774
        %v1776 = vrcp.pop %v1775
        %v1777 = vmul.f32 %v1772, %v1776
        %v1778 = vpack.c.bf16 %v1777, %v1777
        %v1780 = vsel %vm1302, %v1778, 0
        %v1783 = vsel %vm1318, %v1719, 0
        %1785 = vmatprep.subr.bf16.mxu0 0
        %1786 = vmatpush1.bf16.msra.mxu0 0
        %1787 = vmatprep.subr.bf16.mxu0 0
        %1788 = vmatpush1.bf16.msra.mxu0 0
        %1789 = vmatprep.subr.bf16.mxu0 0
        %1790 = vmatpush1.bf16.msra.mxu0 0
        %1791 = vmatprep.subr.bf16.mxu0 0
        %1792 = vmatpush1.bf16.msra.mxu0 0
        %1793 = vmatprep.subr.bf16.mxu0 0
        %1794 = vmatpush1.bf16.msra.mxu0 0
        %1795 = vmatprep.subr.bf16.mxu0 0
        %1796 = vmatpush1.bf16.msra.mxu0 0
        %1797 = vmatprep.subr.bf16.mxu0 0
        %1798 = vmatpush1.bf16.msra.mxu0 0
        %1799 = vmatprep.subr.bf16.mxu0 0
        %1800 = vmatpush1.bf16.msra.mxu0 %v1783
        %1801 = vmatprep.subr.bf16.mxu0 0
        %1802 = vmatpush2.bf16.msra.mxu0 0
        %1803 = vmatprep.subr.bf16.mxu0 0
        %1804 = vmatpush2.bf16.msra.mxu0 0
        %1805 = vmatprep.subr.bf16.mxu0 0
        %1806 = vmatpush2.bf16.msra.mxu0 0
        %1807 = vmatprep.subr.bf16.mxu0 0
        %1808 = vmatpush2.bf16.msra.mxu0 0
        %1809 = vmatprep.subr.bf16.mxu0 0
        %1810 = vmatpush2.bf16.msra.mxu0 0
        %1811 = vmatprep.subr.bf16.mxu0 0
        %1812 = vmatpush2.bf16.msra.mxu0 0
        %1813 = vmatprep.subr.bf16.mxu0 0
        %1814 = vmatpush2.bf16.msra.mxu0 0
        %1815 = vmatprep.subr.bf16.mxu0 0
        %1816 = vmatpush2.bf16.msra.mxu0 0
        %1817 = vmatprep.mubr.bf16.mxu0 0
        %1818 = vmatmul.mubr.bf16.gmra.mxu0 %v1780
        %v1819 = vpop.f32.mrf.mxu0
        %v1820 = vadd.f32 0.0, %v1819
        %v1821 = vpop.f32.mrf.mxu0
        %v1822 = vpop.f32.mrf.mxu0
        %v1823 = vpop.f32.mrf.mxu0
        %1824 = vdwg.mxu0
        %1825 = vst.msk [vmem:[#allocation2 + $0x8] sm:$0xff] %vm1254, %v1820
        %1827 = vrot.lane.b32.xlu0 %v1717, 96
        %v1828 = vpop.permute.xlu0 %1827
        %1830 = vrot.lane.b32.xlu0 %v1718, 96
        %v1831 = vpop.permute.xlu0 %1830
        %v1833 = vsel %vm1254, %v1828, 0
        %v1836 = vsel %vm1254, %v1831, 0
        %1838 = vmatprep.subr.bf16.mxu0 0
        %1839 = vmatpush1.bf16.xpose.msra.mxu0 0
        %1840 = vmatprep.subr.bf16.mxu0 0
        %1841 = vmatpush1.bf16.xpose.msra.mxu0 0
        %1842 = vmatprep.subr.bf16.mxu0 0
        %1843 = vmatpush1.bf16.xpose.msra.mxu0 0
        %1844 = vmatprep.subr.bf16.mxu0 0
        %1845 = vmatpush1.bf16.xpose.msra.mxu0 0
        %1846 = vmatprep.subr.bf16.mxu0 0
        %1847 = vmatpush1.bf16.xpose.msra.mxu0 0
        %1848 = vmatprep.subr.bf16.mxu0 0
        %1849 = vmatpush1.bf16.xpose.msra.mxu0 0
        %1850 = vmatprep.subr.bf16.mxu0 0
        %1851 = vmatpush1.bf16.xpose.msra.mxu0 0
        %1852 = vmatprep.subr.bf16.mxu0 0
        %1853 = vmatpush1.bf16.xpose.msra.mxu0 %v1836
        %1854 = vmatprep.subr.bf16.mxu0 0
        %1855 = vmatpush2.bf16.xpose.msra.mxu0 0
        %1856 = vmatprep.subr.bf16.mxu0 0
        %1857 = vmatpush2.bf16.xpose.msra.mxu0 0
        %1858 = vmatprep.subr.bf16.mxu0 0
        %1859 = vmatpush2.bf16.xpose.msra.mxu0 0
        %1860 = vmatprep.subr.bf16.mxu0 0
        %1861 = vmatpush2.bf16.xpose.msra.mxu0 0
        %1862 = vmatprep.subr.bf16.mxu0 0
        %1863 = vmatpush2.bf16.xpose.msra.mxu0 0
        %1864 = vmatprep.subr.bf16.mxu0 0
        %1865 = vmatpush2.bf16.xpose.msra.mxu0 0
        %1866 = vmatprep.subr.bf16.mxu0 0
        %1867 = vmatpush2.bf16.xpose.msra.mxu0 0
        %1868 = vmatprep.subr.bf16.mxu0 0
        %1869 = vmatpush2.bf16.xpose.msra.mxu0 0
        %1870 = vmatprep.mubr.bf16.mxu0 0
        %1871 = vmatmul.mubr.bf16.gmra.mxu0 %v1833
        %v1872 = vpop.f32.mrf.mxu0
        %v1873 = vadd.f32 0.0, %v1872
        %v1874 = vpop.f32.mrf.mxu0
        %v1875 = vpop.f32.mrf.mxu0
        %v1876 = vpop.f32.mrf.mxu0
        %1877 = vdwg.mxu0
        %v1878 = vmul.f32 %v1873, 0.17677669
        %v1879 = vsel %vm1302, %v1878, -inf
        %1880 = vmax.xlane.f32.xlu0 %v1879
        %v1881 = vpop.xlane.xlu0 %1880
        %v1882 = vsub.f32 %v1878, %v1881
        %v1883 = vmul.f32 %v1882, 1.442695
        %v1884 = vpow.pop %v1883
        %v1885 = vsel %vm1302, %v1884, 0.0
        %1886 = vadd.xlane.f32.xlu0 %v1885
        %v1887 = vpop.xlane.xlu0 %1886
        %v1888 = vrcp.pop %v1887
        %v1889 = vmul.f32 %v1884, %v1888
        %v1890 = vpack.c.bf16 %v1889, %v1889
        %1892 = vrot.lane.b32.xlu0 %v1719, 96
        %v1893 = vpop.permute.xlu0 %1892
        %v1895 = vsel %vm1302, %v1890, 0
        %v1898 = vsel %vm1318, %v1893, 0
        %1900 = vmatprep.subr.bf16.mxu0 0
        %1901 = vmatpush1.bf16.msra.mxu0 0
        %1902 = vmatprep.subr.bf16.mxu0 0
        %1903 = vmatpush1.bf16.msra.mxu0 0
        %1904 = vmatprep.subr.bf16.mxu0 0
        %1905 = vmatpush1.bf16.msra.mxu0 0
        %1906 = vmatprep.subr.bf16.mxu0 0
        %1907 = vmatpush1.bf16.msra.mxu0 0
        %1908 = vmatprep.subr.bf16.mxu0 0
        %1909 = vmatpush1.bf16.msra.mxu0 0
        %1910 = vmatprep.subr.bf16.mxu0 0
        %1911 = vmatpush1.bf16.msra.mxu0 0
        %1912 = vmatprep.subr.bf16.mxu0 0
        %1913 = vmatpush1.bf16.msra.mxu0 0
        %1914 = vmatprep.subr.bf16.mxu0 0
        %1915 = vmatpush1.bf16.msra.mxu0 %v1898
        %1916 = vmatprep.subr.bf16.mxu0 0
        %1917 = vmatpush2.bf16.msra.mxu0 0
        %1918 = vmatprep.subr.bf16.mxu0 0
        %1919 = vmatpush2.bf16.msra.mxu0 0
        %1920 = vmatprep.subr.bf16.mxu0 0
        %1921 = vmatpush2.bf16.msra.mxu0 0
        %1922 = vmatprep.subr.bf16.mxu0 0
        %1923 = vmatpush2.bf16.msra.mxu0 0
        %1924 = vmatprep.subr.bf16.mxu0 0
        %1925 = vmatpush2.bf16.msra.mxu0 0
        %1926 = vmatprep.subr.bf16.mxu0 0
        %1927 = vmatpush2.bf16.msra.mxu0 0
        %1928 = vmatprep.subr.bf16.mxu0 0
        %1929 = vmatpush2.bf16.msra.mxu0 0
        %1930 = vmatprep.subr.bf16.mxu0 0
        %1931 = vmatpush2.bf16.msra.mxu0 0
        %1932 = vmatprep.mubr.bf16.mxu0 0
        %1933 = vmatmul.mubr.bf16.gmra.mxu0 %v1895
        %v1934 = vpop.f32.mrf.mxu0
        %v1935 = vadd.f32 0.0, %v1934
        %v1936 = vpop.f32.mrf.mxu0
        %v1937 = vpop.f32.mrf.mxu0
        %v1938 = vpop.f32.mrf.mxu0
        %1939 = vdwg.mxu0
        %1941 = vrot.lane.b32.xlu0 %v1935, 32
        %v1942 = vpop.permute.xlu0 %1941
        %1944 = vst.msk [vmem:[#allocation2 + $0x8] sm:$0xff] %vm1481, %v1942
        %1945 = vrot.lane.b32.xlu0 %v1717, 64
        %v1946 = vpop.permute.xlu0 %1945
        %1947 = vrot.lane.b32.xlu0 %v1718, 64
        %v1948 = vpop.permute.xlu0 %1947
        %v1950 = vsel %vm1254, %v1946, 0
        %v1953 = vsel %vm1254, %v1948, 0
        %1955 = vmatprep.subr.bf16.mxu0 0
        %1956 = vmatpush1.bf16.xpose.msra.mxu0 0
        %1957 = vmatprep.subr.bf16.mxu0 0
        %1958 = vmatpush1.bf16.xpose.msra.mxu0 0
        %1959 = vmatprep.subr.bf16.mxu0 0
        %1960 = vmatpush1.bf16.xpose.msra.mxu0 0
        %1961 = vmatprep.subr.bf16.mxu0 0
        %1962 = vmatpush1.bf16.xpose.msra.mxu0 0
        %1963 = vmatprep.subr.bf16.mxu0 0
        %1964 = vmatpush1.bf16.xpose.msra.mxu0 0
        %1965 = vmatprep.subr.bf16.mxu0 0
        %1966 = vmatpush1.bf16.xpose.msra.mxu0 0
        %1967 = vmatprep.subr.bf16.mxu0 0
        %1968 = vmatpush1.bf16.xpose.msra.mxu0 0
        %1969 = vmatprep.subr.bf16.mxu0 0
        %1970 = vmatpush1.bf16.xpose.msra.mxu0 %v1953
        %1971 = vmatprep.subr.bf16.mxu0 0
        %1972 = vmatpush2.bf16.xpose.msra.mxu0 0
        %1973 = vmatprep.subr.bf16.mxu0 0
        %1974 = vmatpush2.bf16.xpose.msra.mxu0 0
        %1975 = vmatprep.subr.bf16.mxu0 0
        %1976 = vmatpush2.bf16.xpose.msra.mxu0 0
        %1977 = vmatprep.subr.bf16.mxu0 0
        %1978 = vmatpush2.bf16.xpose.msra.mxu0 0
        %1979 = vmatprep.subr.bf16.mxu0 0
        %1980 = vmatpush2.bf16.xpose.msra.mxu0 0
        %1981 = vmatprep.subr.bf16.mxu0 0
        %1982 = vmatpush2.bf16.xpose.msra.mxu0 0
        %1983 = vmatprep.subr.bf16.mxu0 0
        %1984 = vmatpush2.bf16.xpose.msra.mxu0 0
        %1985 = vmatprep.subr.bf16.mxu0 0
        %1986 = vmatpush2.bf16.xpose.msra.mxu0 0
        %1987 = vmatprep.mubr.bf16.mxu0 0
        %1988 = vmatmul.mubr.bf16.gmra.mxu0 %v1950
        %v1989 = vpop.f32.mrf.mxu0
        %v1990 = vadd.f32 0.0, %v1989
        %v1991 = vpop.f32.mrf.mxu0
        %v1992 = vpop.f32.mrf.mxu0
        %v1993 = vpop.f32.mrf.mxu0
        %1994 = vdwg.mxu0
        %v1995 = vmul.f32 %v1990, 0.17677669
        %v1996 = vsel %vm1302, %v1995, -inf
        %1997 = vmax.xlane.f32.xlu0 %v1996
        %v1998 = vpop.xlane.xlu0 %1997
        %v1999 = vsub.f32 %v1995, %v1998
        %v2000 = vmul.f32 %v1999, 1.442695
        %v2001 = vpow.pop %v2000
        %v2002 = vsel %vm1302, %v2001, 0.0
        %2003 = vadd.xlane.f32.xlu0 %v2002
        %v2004 = vpop.xlane.xlu0 %2003
        %v2005 = vrcp.pop %v2004
        %v2006 = vmul.f32 %v2001, %v2005
        %v2007 = vpack.c.bf16 %v2006, %v2006
        %2008 = vrot.lane.b32.xlu0 %v1719, 64
        %v2009 = vpop.permute.xlu0 %2008
        %v2011 = vsel %vm1302, %v2007, 0
        %v2014 = vsel %vm1318, %v2009, 0
        %2016 = vmatprep.subr.bf16.mxu0 0
        %2017 = vmatpush1.bf16.msra.mxu0 0
        %2018 = vmatprep.subr.bf16.mxu0 0
        %2019 = vmatpush1.bf16.msra.mxu0 0
        %2020 = vmatprep.subr.bf16.mxu0 0
        %2021 = vmatpush1.bf16.msra.mxu0 0
        %2022 = vmatprep.subr.bf16.mxu0 0
        %2023 = vmatpush1.bf16.msra.mxu0 0
        %2024 = vmatprep.subr.bf16.mxu0 0
        %2025 = vmatpush1.bf16.msra.mxu0 0
        %2026 = vmatprep.subr.bf16.mxu0 0
        %2027 = vmatpush1.bf16.msra.mxu0 0
        %2028 = vmatprep.subr.bf16.mxu0 0
        %2029 = vmatpush1.bf16.msra.mxu0 0
        %2030 = vmatprep.subr.bf16.mxu0 0
        %2031 = vmatpush1.bf16.msra.mxu0 %v2014
        %2032 = vmatprep.subr.bf16.mxu0 0
        %2033 = vmatpush2.bf16.msra.mxu0 0
        %2034 = vmatprep.subr.bf16.mxu0 0
        %2035 = vmatpush2.bf16.msra.mxu0 0
        %2036 = vmatprep.subr.bf16.mxu0 0
        %2037 = vmatpush2.bf16.msra.mxu0 0
        %2038 = vmatprep.subr.bf16.mxu0 0
        %2039 = vmatpush2.bf16.msra.mxu0 0
        %2040 = vmatprep.subr.bf16.mxu0 0
        %2041 = vmatpush2.bf16.msra.mxu0 0
        %2042 = vmatprep.subr.bf16.mxu0 0
        %2043 = vmatpush2.bf16.msra.mxu0 0
        %2044 = vmatprep.subr.bf16.mxu0 0
        %2045 = vmatpush2.bf16.msra.mxu0 0
        %2046 = vmatprep.subr.bf16.mxu0 0
        %2047 = vmatpush2.bf16.msra.mxu0 0
        %2048 = vmatprep.mubr.bf16.mxu0 0
        %2049 = vmatmul.mubr.bf16.gmra.mxu0 %v2011
        %v2050 = vpop.f32.mrf.mxu0
        %v2051 = vadd.f32 0.0, %v2050
        %v2052 = vpop.f32.mrf.mxu0
        %v2053 = vpop.f32.mrf.mxu0
        %v2054 = vpop.f32.mrf.mxu0
        %2055 = vdwg.mxu0
        %2057 = vrot.lane.b32.xlu0 %v2051, 64
        %v2058 = vpop.permute.xlu0 %2057
        %2060 = vst.msk [vmem:[#allocation2 + $0x8] sm:$0xff] %vm1598, %v2058
        %2061 = vrot.lane.b32.xlu0 %v1717, 32
        %v2062 = vpop.permute.xlu0 %2061
        %2063 = vrot.lane.b32.xlu0 %v1718, 32
        %v2064 = vpop.permute.xlu0 %2063
        %v2066 = vsel %vm1254, %v2062, 0
        %v2069 = vsel %vm1254, %v2064, 0
        %2071 = vmatprep.subr.bf16.mxu0 0
        %2072 = vmatpush1.bf16.xpose.msra.mxu0 0
        %2073 = vmatprep.subr.bf16.mxu0 0
        %2074 = vmatpush1.bf16.xpose.msra.mxu0 0
        %2075 = vmatprep.subr.bf16.mxu0 0
        %2076 = vmatpush1.bf16.xpose.msra.mxu0 0
        %2077 = vmatprep.subr.bf16.mxu0 0
        %2078 = vmatpush1.bf16.xpose.msra.mxu0 0
        %2079 = vmatprep.subr.bf16.mxu0 0
        %2080 = vmatpush1.bf16.xpose.msra.mxu0 0
        %2081 = vmatprep.subr.bf16.mxu0 0
        %2082 = vmatpush1.bf16.xpose.msra.mxu0 0
        %2083 = vmatprep.subr.bf16.mxu0 0
        %2084 = vmatpush1.bf16.xpose.msra.mxu0 0
        %2085 = vmatprep.subr.bf16.mxu0 0
        %2086 = vmatpush1.bf16.xpose.msra.mxu0 %v2069
        %2087 = vmatprep.subr.bf16.mxu0 0
        %2088 = vmatpush2.bf16.xpose.msra.mxu0 0
        %2089 = vmatprep.subr.bf16.mxu0 0
        %2090 = vmatpush2.bf16.xpose.msra.mxu0 0
        %2091 = vmatprep.subr.bf16.mxu0 0
        %2092 = vmatpush2.bf16.xpose.msra.mxu0 0
        %2093 = vmatprep.subr.bf16.mxu0 0
        %2094 = vmatpush2.bf16.xpose.msra.mxu0 0
        %2095 = vmatprep.subr.bf16.mxu0 0
        %2096 = vmatpush2.bf16.xpose.msra.mxu0 0
        %2097 = vmatprep.subr.bf16.mxu0 0
        %2098 = vmatpush2.bf16.xpose.msra.mxu0 0
        %2099 = vmatprep.subr.bf16.mxu0 0
        %2100 = vmatpush2.bf16.xpose.msra.mxu0 0
        %2101 = vmatprep.subr.bf16.mxu0 0
        %2102 = vmatpush2.bf16.xpose.msra.mxu0 0
        %2103 = vmatprep.mubr.bf16.mxu0 0
        %2104 = vmatmul.mubr.bf16.gmra.mxu0 %v2066
        %v2105 = vpop.f32.mrf.mxu0
        %v2106 = vadd.f32 0.0, %v2105
        %v2107 = vpop.f32.mrf.mxu0
        %v2108 = vpop.f32.mrf.mxu0
        %v2109 = vpop.f32.mrf.mxu0
        %2110 = vdwg.mxu0
        %v2111 = vmul.f32 %v2106, 0.17677669
        %v2112 = vsel %vm1302, %v2111, -inf
        %2113 = vmax.xlane.f32.xlu0 %v2112
        %v2114 = vpop.xlane.xlu0 %2113
        %v2115 = vsub.f32 %v2111, %v2114
        %v2116 = vmul.f32 %v2115, 1.442695
        %v2117 = vpow.pop %v2116
        %v2118 = vsel %vm1302, %v2117, 0.0
        %2119 = vadd.xlane.f32.xlu0 %v2118
        %v2120 = vpop.xlane.xlu0 %2119
        %v2121 = vrcp.pop %v2120
        %v2122 = vmul.f32 %v2117, %v2121
        %v2123 = vpack.c.bf16 %v2122, %v2122
        %2124 = vrot.lane.b32.xlu0 %v1719, 32
        %v2125 = vpop.permute.xlu0 %2124
        %v2127 = vsel %vm1302, %v2123, 0
        %v2130 = vsel %vm1318, %v2125, 0
        %2132 = vmatprep.subr.bf16.mxu0 0
        %2133 = vmatpush1.bf16.msra.mxu0 0
        %2134 = vmatprep.subr.bf16.mxu0 0
        %2135 = vmatpush1.bf16.msra.mxu0 0
        %2136 = vmatprep.subr.bf16.mxu0 0
        %2137 = vmatpush1.bf16.msra.mxu0 0
        %2138 = vmatprep.subr.bf16.mxu0 0
        %2139 = vmatpush1.bf16.msra.mxu0 0
        %2140 = vmatprep.subr.bf16.mxu0 0
        %2141 = vmatpush1.bf16.msra.mxu0 0
        %2142 = vmatprep.subr.bf16.mxu0 0
        %2143 = vmatpush1.bf16.msra.mxu0 0
        %2144 = vmatprep.subr.bf16.mxu0 0
        %2145 = vmatpush1.bf16.msra.mxu0 0
        %2146 = vmatprep.subr.bf16.mxu0 0
        %2147 = vmatpush1.bf16.msra.mxu0 %v2130
        %2148 = vmatprep.subr.bf16.mxu0 0
        %2149 = vmatpush2.bf16.msra.mxu0 0
        %2150 = vmatprep.subr.bf16.mxu0 0
        %2151 = vmatpush2.bf16.msra.mxu0 0
        %2152 = vmatprep.subr.bf16.mxu0 0
        %2153 = vmatpush2.bf16.msra.mxu0 0
        %2154 = vmatprep.subr.bf16.mxu0 0
        %2155 = vmatpush2.bf16.msra.mxu0 0
        %2156 = vmatprep.subr.bf16.mxu0 0
        %2157 = vmatpush2.bf16.msra.mxu0 0
        %2158 = vmatprep.subr.bf16.mxu0 0
        %2159 = vmatpush2.bf16.msra.mxu0 0
        %2160 = vmatprep.subr.bf16.mxu0 0
        %2161 = vmatpush2.bf16.msra.mxu0 0
        %2162 = vmatprep.subr.bf16.mxu0 0
        %2163 = vmatpush2.bf16.msra.mxu0 0
        %2164 = vmatprep.mubr.bf16.mxu0 0
        %2165 = vmatmul.mubr.bf16.gmra.mxu0 %v2127
        %v2166 = vpop.f32.mrf.mxu0
        %v2167 = vadd.f32 0.0, %v2166
        %v2168 = vpop.f32.mrf.mxu0
        %v2169 = vpop.f32.mrf.mxu0
        %v2170 = vpop.f32.mrf.mxu0
        %2171 = vdwg.mxu0
        %2173 = vrot.lane.b32.xlu0 %v2167, 96
        %v2174 = vpop.permute.xlu0 %2173
        %2176 = vst.msk [vmem:[#allocation2 + $0x8] sm:$0xff] %vm1715, %v2174
        %v2177 = vld [vmem:[#allocation2] sm:$0xff]
        %v2178 = vld [vmem:[#allocation2 + $0x8] sm:$0xff]
        %v2179 = vpack.c.bf16 %v2178, %v2177
        %v2180 = vld [vmem:[%s656] sm:$0xf]
        %v2181 = vld [vmem:[%s656 + $0x4] sm:$0xf]
        %v2182 = vld [vmem:[%s656 + $0x8] sm:$0xf]
        %v2183 = vld [vmem:[%s656 + $0xc] sm:$0xf]
        %v2184 = vld [vmem:[%s656 + $0x10] sm:$0xf]
        %v2185 = vld [vmem:[%s656 + $0x14] sm:$0xf]
        %v2186 = vld [vmem:[%s656 + $0x18] sm:$0xf]
        %v2187 = vld [vmem:[%s656 + $0x1c] sm:$0xf]
        %v2188 = vld [vmem:[%s656 + $0x20] sm:$0xf]
        %v2189 = vld [vmem:[%s656 + $0x24] sm:$0xf]
        %v2190 = vld [vmem:[%s656 + $0x28] sm:$0xf]
        %v2191 = vld [vmem:[%s656 + $0x2c] sm:$0xf]
        %v2192 = vld [vmem:[%s656 + $0x30] sm:$0xf]
        %v2193 = vld [vmem:[%s656 + $0x34] sm:$0xf]
        %v2194 = vld [vmem:[%s656 + $0x38] sm:$0xf]
        %v2195 = vld [vmem:[%s656 + $0x3c] sm:$0xf]
        %v2196 = vld [vmem:[%s805] sm:$0x1]
        %v2198 = vlaneseq
        %v2199 = vshrl.u32 %v2198, 7
        %v2200 = vsub.s32 0, %v2199
        %v2201 = vrot.slane %v2196, %v2200
        %v2219 = vunpack.c.l.b16 %v2180
        %v2220 = vunpack.c.l.b16 %v2181
        %v2221 = vunpack.c.l.b16 %v2182
        %v2222 = vunpack.c.l.b16 %v2183
        %v2223 = vunpack.c.l.b16 %v2184
        %v2224 = vunpack.c.l.b16 %v2185
        %v2225 = vunpack.c.l.b16 %v2186
        %v2226 = vunpack.c.l.b16 %v2187
        %v2227 = vunpack.c.l.b16 %v2188
        %v2228 = vunpack.c.l.b16 %v2189
        %v2229 = vunpack.c.l.b16 %v2190
        %v2230 = vunpack.c.l.b16 %v2191
        %v2231 = vunpack.c.l.b16 %v2192
        %v2232 = vunpack.c.l.b16 %v2193
        %v2233 = vunpack.c.l.b16 %v2194
        %v2234 = vunpack.c.l.b16 %v2195
        %v2235 = vpack.c.b16 %v2220, %v2219
        %v2236 = vpack.c.b16 %v2222, %v2221
        %v2237 = vpack.c.b16 %v2224, %v2223
        %v2238 = vpack.c.b16 %v2226, %v2225
        %v2239 = vpack.c.b16 %v2228, %v2227
        %v2240 = vpack.c.b16 %v2230, %v2229
        %v2241 = vpack.c.b16 %v2232, %v2231
        %v2242 = vpack.c.b16 %v2234, %v2233
        %2251 = vmatprep.subr.bf16.mxu0 0
        %2252 = vmatpush1.bf16.msra.mxu0 %v2242
        %2253 = vmatprep.subr.bf16.mxu0 0
        %2254 = vmatpush1.bf16.msra.mxu0 %v2241
        %2255 = vmatprep.subr.bf16.mxu0 0
        %2256 = vmatpush1.bf16.msra.mxu0 %v2240
        %2257 = vmatprep.subr.bf16.mxu0 0
        %2258 = vmatpush1.bf16.msra.mxu0 %v2239
        %2259 = vmatprep.subr.bf16.mxu0 0
        %2260 = vmatpush1.bf16.msra.mxu0 %v2238
        %2261 = vmatprep.subr.bf16.mxu0 0
        %2262 = vmatpush1.bf16.msra.mxu0 %v2237
        %2263 = vmatprep.subr.bf16.mxu0 0
        %2264 = vmatpush1.bf16.msra.mxu0 %v2236
        %2265 = vmatprep.subr.bf16.mxu0 0
        %2266 = vmatpush1.bf16.msra.mxu0 %v2235
        %2267 = vmatprep.subr.bf16.mxu0 0
        %2268 = vmatpush2.bf16.msra.mxu0 0
        %2269 = vmatprep.subr.bf16.mxu0 0
        %2270 = vmatpush2.bf16.msra.mxu0 0
        %2271 = vmatprep.subr.bf16.mxu0 0
        %2272 = vmatpush2.bf16.msra.mxu0 0
        %2273 = vmatprep.subr.bf16.mxu0 0
        %2274 = vmatpush2.bf16.msra.mxu0 0
        %2275 = vmatprep.subr.bf16.mxu0 0
        %2276 = vmatpush2.bf16.msra.mxu0 0
        %2277 = vmatprep.subr.bf16.mxu0 0
        %2278 = vmatpush2.bf16.msra.mxu0 0
        %2279 = vmatprep.subr.bf16.mxu0 0
        %2280 = vmatpush2.bf16.msra.mxu0 0
        %2281 = vmatprep.subr.bf16.mxu0 0
        %2282 = vmatpush2.bf16.msra.mxu0 0
        %2283 = vmatprep.mubr.bf16.mxu0 0
        %2284 = vmatmul.mubr.bf16.gmra.mxu0 %v2179
        %v2285 = vpop.f32.mrf.mxu0
        %v2286 = vadd.f32 %v2201, %v2285
        %v2287 = vpop.f32.mrf.mxu0
        %v2288 = vpop.f32.mrf.mxu0
        %v2289 = vadd.f32 %v2201, %v2288
        %v2290 = vpop.f32.mrf.mxu0
        %2291 = vdwg.mxu0
        %v2292 = vadd.f32 %v946, %v2286
        %v2293 = vadd.f32 %v947, %v2289
        %v2294 = vld [vmem:[%s664] sm:$0x1]
        %v2295 = vld [vmem:[%s808] sm:$0x1]
        %2296 = vadd.xlane.f32.xlu0 %v2292
        %v2297 = vpop.xlane.xlu0 %2296
        %2298 = vadd.xlane.f32.xlu0 %v2293
        %v2299 = vpop.xlane.xlu0 %2298
        %v2300 = vmul.f32 %v2297, %v954
        %v2301 = vmul.f32 %v2299, %v954
        %v2302 = vsub.f32 %v2292, %v2300
        %v2303 = vsub.f32 %v2293, %v2301
        %v2304 = vmul.f32 %v2302, %v2302
        %v2305 = vmul.f32 %v2303, %v2303
        %2306 = vadd.xlane.f32.xlu0 %v2304
        %v2307 = vpop.xlane.xlu0 %2306
        %2308 = vadd.xlane.f32.xlu0 %v2305
        %v2309 = vpop.xlane.xlu0 %2308
        %v2310 = vmul.f32 %v2307, %v954
        %v2311 = vmul.f32 %v2309, %v954
        %v2312 = vadd.f32 %v2310, 1e-06
        %v2313 = vadd.f32 %v2311, 1e-06
        %v2314 = vrsqrt.pop %v2312
        %v2315 = vrsqrt.pop %v2313
        %v2317 = vlaneseq
        %v2318 = vshrl.u32 %v2317, 7
        %v2319 = vsub.s32 0, %v2318
        %v2320 = vrot.slane %v2294, %v2319
        %v2322 = vmul.f32 %v2314, %v2320
        %v2323 = vmul.f32 %v2315, %v2320
        %v2324 = vmul.f32 %v2302, %v2322
        %v2325 = vmul.f32 %v2303, %v2323
        %v2327 = vlaneseq
        %v2328 = vshrl.u32 %v2327, 7
        %v2329 = vsub.s32 0, %v2328
        %v2330 = vrot.slane %v2295, %v2329
        %v2332 = vadd.f32 %v2324, %v2330
        %v2333 = vadd.f32 %v2325, %v2330
        %v2334 = vpack.c.bf16 %v2333, %v2332
        %v2335 = vld [vmem:[%s813] sm:$0xff]
        %v2336 = vld [vmem:[%s813 + $0x8] sm:$0xff]
        %v2337 = vld [vmem:[%s813 + $0x10] sm:$0xff]
        %v2338 = vld [vmem:[%s813 + $0x18] sm:$0xff]
        %v2339 = vld [vmem:[%s813 + $0x20] sm:$0xff]
        %v2340 = vld [vmem:[%s813 + $0x28] sm:$0xff]
        %v2341 = vld [vmem:[%s813 + $0x30] sm:$0xff]
        %v2342 = vld [vmem:[%s813 + $0x38] sm:$0xff]
        %v2343 = vld [vmem:[%s813 + $0x40] sm:$0xff]
        %v2344 = vld [vmem:[%s813 + $0x48] sm:$0xff]
        %v2345 = vld [vmem:[%s813 + $0x50] sm:$0xff]
        %v2346 = vld [vmem:[%s813 + $0x58] sm:$0xff]
        %v2347 = vld [vmem:[%s813 + $0x60] sm:$0xff]
        %v2348 = vld [vmem:[%s813 + $0x68] sm:$0xff]
        %v2349 = vld [vmem:[%s813 + $0x70] sm:$0xff]
        %v2350 = vld [vmem:[%s813 + $0x78] sm:$0xff]
        %v2351 = vld [vmem:[%s817] sm:$0x3]
        %v2353 = vlaneseq
        %v2354 = vshrl.u32 %v2353, 7
        %v2355 = vsub.s32 0, %v2354
        %v2356 = vrot.slane %v2351, %v2355
        %v2357 = vlaneseq
        %v2358 = vshrl.u32 %v2357, 7
        %v2359 = vsub.s32 1, %v2358
        %v2360 = vrot.slane %v2351, %v2359
        %v2379 = vunpack.c.l.b16 %v2335
        %v2380 = vunpack.c.h.b16 %v2335
        %v2381 = vunpack.c.l.b16 %v2336
        %v2382 = vunpack.c.h.b16 %v2336
        %v2383 = vunpack.c.l.b16 %v2337
        %v2384 = vunpack.c.h.b16 %v2337
        %v2385 = vunpack.c.l.b16 %v2338
        %v2386 = vunpack.c.h.b16 %v2338
        %v2387 = vunpack.c.l.b16 %v2339
        %v2388 = vunpack.c.h.b16 %v2339
        %v2389 = vunpack.c.l.b16 %v2340
        %v2390 = vunpack.c.h.b16 %v2340
        %v2391 = vunpack.c.l.b16 %v2341
        %v2392 = vunpack.c.h.b16 %v2341
        %v2393 = vunpack.c.l.b16 %v2342
        %v2394 = vunpack.c.h.b16 %v2342
        %v2395 = vunpack.c.l.b16 %v2343
        %v2396 = vunpack.c.h.b16 %v2343
        %v2397 = vunpack.c.l.b16 %v2344
        %v2398 = vunpack.c.h.b16 %v2344
        %v2399 = vunpack.c.l.b16 %v2345
        %v2400 = vunpack.c.h.b16 %v2345
        %v2401 = vunpack.c.l.b16 %v2346
        %v2402 = vunpack.c.h.b16 %v2346
        %v2403 = vunpack.c.l.b16 %v2347
        %v2404 = vunpack.c.h.b16 %v2347
        %v2405 = vunpack.c.l.b16 %v2348
        %v2406 = vunpack.c.h.b16 %v2348
        %v2407 = vunpack.c.l.b16 %v2349
        %v2408 = vunpack.c.h.b16 %v2349
        %v2409 = vunpack.c.l.b16 %v2350
        %v2410 = vunpack.c.h.b16 %v2350
        %v2411 = vpack.c.b16 %v2381, %v2379
        %v2412 = vpack.c.b16 %v2382, %v2380
        %v2413 = vpack.c.b16 %v2385, %v2383
        %v2414 = vpack.c.b16 %v2386, %v2384
        %v2415 = vpack.c.b16 %v2389, %v2387
        %v2416 = vpack.c.b16 %v2390, %v2388
        %v2417 = vpack.c.b16 %v2393, %v2391
        %v2418 = vpack.c.b16 %v2394, %v2392
        %v2419 = vpack.c.b16 %v2397, %v2395
        %v2420 = vpack.c.b16 %v2398, %v2396
        %v2421 = vpack.c.b16 %v2401, %v2399
        %v2422 = vpack.c.b16 %v2402, %v2400
        %v2423 = vpack.c.b16 %v2405, %v2403
        %v2424 = vpack.c.b16 %v2406, %v2404
        %v2425 = vpack.c.b16 %v2409, %v2407
        %v2426 = vpack.c.b16 %v2410, %v2408
        %2443 = vmatprep.subr.bf16.mxu0 %v2426
        %2444 = vmatpush1.bf16.msra.mxu0 %v2425
        %2445 = vmatprep.subr.bf16.mxu0 %v2424
        %2446 = vmatpush1.bf16.msra.mxu0 %v2423
        %2447 = vmatprep.subr.bf16.mxu0 %v2422
        %2448 = vmatpush1.bf16.msra.mxu0 %v2421
        %2449 = vmatprep.subr.bf16.mxu0 %v2420
        %2450 = vmatpush1.bf16.msra.mxu0 %v2419
        %2451 = vmatprep.subr.bf16.mxu0 %v2418
        %2452 = vmatpush1.bf16.msra.mxu0 %v2417
        %2453 = vmatprep.subr.bf16.mxu0 %v2416
        %2454 = vmatpush1.bf16.msra.mxu0 %v2415
        %2455 = vmatprep.subr.bf16.mxu0 %v2414
        %2456 = vmatpush1.bf16.msra.mxu0 %v2413
        %2457 = vmatprep.subr.bf16.mxu0 %v2412
        %2458 = vmatpush1.bf16.msra.mxu0 %v2411
        %2459 = vmatprep.subr.bf16.mxu0 0
        %2460 = vmatpush2.bf16.msra.mxu0 0
        %2461 = vmatprep.subr.bf16.mxu0 0
        %2462 = vmatpush2.bf16.msra.mxu0 0
        %2463 = vmatprep.subr.bf16.mxu0 0
        %2464 = vmatpush2.bf16.msra.mxu0 0
        %2465 = vmatprep.subr.bf16.mxu0 0
        %2466 = vmatpush2.bf16.msra.mxu0 0
        %2467 = vmatprep.subr.bf16.mxu0 0
        %2468 = vmatpush2.bf16.msra.mxu0 0
        %2469 = vmatprep.subr.bf16.mxu0 0
        %2470 = vmatpush2.bf16.msra.mxu0 0
        %2471 = vmatprep.subr.bf16.mxu0 0
        %2472 = vmatpush2.bf16.msra.mxu0 0
        %2473 = vmatprep.subr.bf16.mxu0 0
        %2474 = vmatpush2.bf16.msra.mxu0 0
        %2475 = vmatprep.mubr.bf16.mxu0 0
        %2476 = vmatmul.mubr.bf16.gmra.mxu0 %v2334
        %v2477 = vpop.f32.mrf.mxu0
        %v2478 = vadd.f32 %v2356, %v2477
        %v2479 = vpop.f32.mrf.mxu0
        %v2480 = vadd.f32 %v2360, %v2479
        %v2481 = vpop.f32.mrf.mxu0
        %v2482 = vadd.f32 %v2356, %v2481
        %v2483 = vpop.f32.mrf.mxu0
        %v2484 = vadd.f32 %v2360, %v2483
        %2485 = vdwg.mxu0
        %v2486 = vmul.f32 %v2478, %v2478
        %v2487 = vmul.f32 %v2480, %v2480
        %v2488 = vmul.f32 %v2482, %v2482
        %v2489 = vmul.f32 %v2484, %v2484
        %v2490 = vmul.f32 %v2478, %v2486
        %v2491 = vmul.f32 %v2480, %v2487
        %v2492 = vmul.f32 %v2482, %v2488
        %v2493 = vmul.f32 %v2484, %v2489
        %v2494 = vmul.f32 %v2490, 0.044715
        %v2495 = vmul.f32 %v2491, 0.044715
        %v2496 = vmul.f32 %v2492, 0.044715
        %v2497 = vmul.f32 %v2493, 0.044715
        %v2498 = vadd.f32 %v2478, %v2494
        %v2499 = vadd.f32 %v2480, %v2495
        %v2500 = vadd.f32 %v2482, %v2496
        %v2501 = vadd.f32 %v2484, %v2497
        %v2502 = vmul.f32 %v2498, 0.7978846
        %v2503 = vmul.f32 %v2499, 0.7978846
        %v2504 = vmul.f32 %v2500, 0.7978846
        %v2505 = vmul.f32 %v2501, 0.7978846
        %v2506 = vtanh.pop %v2502
        %v2507 = vtanh.pop %v2503
        %v2508 = vtanh.pop %v2504
        %v2509 = vtanh.pop %v2505
        %v2510 = vadd.f32 %v2506, 1.0
        %v2511 = vadd.f32 %v2507, 1.0
        %v2512 = vadd.f32 %v2508, 1.0
        %v2513 = vadd.f32 %v2509, 1.0
        %v2514 = vmul.f32 %v2510, 0.5
        %v2515 = vmul.f32 %v2511, 0.5
        %v2516 = vmul.f32 %v2512, 0.5
        %v2517 = vmul.f32 %v2513, 0.5
        %v2518 = vmul.f32 %v2478, %v2514
        %v2519 = vmul.f32 %v2480, %v2515
        %v2520 = vmul.f32 %v2482, %v2516
        %v2521 = vmul.f32 %v2484, %v2517
        %v2522 = vpack.c.bf16 %v2520, %v2518
        %v2523 = vpack.c.bf16 %v2521, %v2519
        %v2524 = vld [vmem:[%s673] sm:$0xf]
        %v2525 = vld [vmem:[%s673 + $0x4] sm:$0xf]
        %v2526 = vld [vmem:[%s673 + $0x8] sm:$0xf]
        %v2527 = vld [vmem:[%s673 + $0xc] sm:$0xf]
        %v2528 = vld [vmem:[%s673 + $0x10] sm:$0xf]
        %v2529 = vld [vmem:[%s673 + $0x14] sm:$0xf]
        %v2530 = vld [vmem:[%s673 + $0x18] sm:$0xf]
        %v2531 = vld [vmem:[%s673 + $0x1c] sm:$0xf]
        %v2532 = vld [vmem:[%s673 + $0x20] sm:$0xf]
        %v2533 = vld [vmem:[%s673 + $0x24] sm:$0xf]
        %v2534 = vld [vmem:[%s673 + $0x28] sm:$0xf]
        %v2535 = vld [vmem:[%s673 + $0x2c] sm:$0xf]
        %v2536 = vld [vmem:[%s673 + $0x30] sm:$0xf]
        %v2537 = vld [vmem:[%s673 + $0x34] sm:$0xf]
        %v2538 = vld [vmem:[%s673 + $0x38] sm:$0xf]
        %v2539 = vld [vmem:[%s673 + $0x3c] sm:$0xf]
        %v2540 = vld [vmem:[%s673 + $0x40] sm:$0xf]
        %v2541 = vld [vmem:[%s673 + $0x44] sm:$0xf]
        %v2542 = vld [vmem:[%s673 + $0x48] sm:$0xf]
        %v2543 = vld [vmem:[%s673 + $0x4c] sm:$0xf]
        %v2544 = vld [vmem:[%s673 + $0x50] sm:$0xf]
        %v2545 = vld [vmem:[%s673 + $0x54] sm:$0xf]
        %v2546 = vld [vmem:[%s673 + $0x58] sm:$0xf]
        %v2547 = vld [vmem:[%s673 + $0x5c] sm:$0xf]
        %v2548 = vld [vmem:[%s673 + $0x60] sm:$0xf]
        %v2549 = vld [vmem:[%s673 + $0x64] sm:$0xf]
        %v2550 = vld [vmem:[%s673 + $0x68] sm:$0xf]
        %v2551 = vld [vmem:[%s673 + $0x6c] sm:$0xf]
        %v2552 = vld [vmem:[%s673 + $0x70] sm:$0xf]
        %v2553 = vld [vmem:[%s673 + $0x74] sm:$0xf]
        %v2554 = vld [vmem:[%s673 + $0x78] sm:$0xf]
        %v2555 = vld [vmem:[%s673 + $0x7c] sm:$0xf]
        %v2556 = vld [vmem:[%s681] sm:$0x1]
        %v2558 = vlaneseq
        %v2559 = vshrl.u32 %v2558, 7
        %v2560 = vsub.s32 0, %v2559
        %v2561 = vrot.slane %v2556, %v2560
        %v2595 = vunpack.c.l.b16 %v2524
        %v2596 = vunpack.c.l.b16 %v2525
        %v2597 = vunpack.c.l.b16 %v2526
        %v2598 = vunpack.c.l.b16 %v2527
        %v2599 = vunpack.c.l.b16 %v2528
        %v2600 = vunpack.c.l.b16 %v2529
        %v2601 = vunpack.c.l.b16 %v2530
        %v2602 = vunpack.c.l.b16 %v2531
        %v2603 = vunpack.c.l.b16 %v2532
        %v2604 = vunpack.c.l.b16 %v2533
        %v2605 = vunpack.c.l.b16 %v2534
        %v2606 = vunpack.c.l.b16 %v2535
        %v2607 = vunpack.c.l.b16 %v2536
        %v2608 = vunpack.c.l.b16 %v2537
        %v2609 = vunpack.c.l.b16 %v2538
        %v2610 = vunpack.c.l.b16 %v2539
        %v2611 = vunpack.c.l.b16 %v2540
        %v2612 = vunpack.c.l.b16 %v2541
        %v2613 = vunpack.c.l.b16 %v2542
        %v2614 = vunpack.c.l.b16 %v2543
        %v2615 = vunpack.c.l.b16 %v2544
        %v2616 = vunpack.c.l.b16 %v2545
        %v2617 = vunpack.c.l.b16 %v2546
        %v2618 = vunpack.c.l.b16 %v2547
        %v2619 = vunpack.c.l.b16 %v2548
        %v2620 = vunpack.c.l.b16 %v2549
        %v2621 = vunpack.c.l.b16 %v2550
        %v2622 = vunpack.c.l.b16 %v2551
        %v2623 = vunpack.c.l.b16 %v2552
        %v2624 = vunpack.c.l.b16 %v2553
        %v2625 = vunpack.c.l.b16 %v2554
        %v2626 = vunpack.c.l.b16 %v2555
        %v2627 = vpack.c.b16 %v2596, %v2595
        %v2628 = vpack.c.b16 %v2598, %v2597
        %v2629 = vpack.c.b16 %v2600, %v2599
        %v2630 = vpack.c.b16 %v2602, %v2601
        %v2631 = vpack.c.b16 %v2604, %v2603
        %v2632 = vpack.c.b16 %v2606, %v2605
        %v2633 = vpack.c.b16 %v2608, %v2607
        %v2634 = vpack.c.b16 %v2610, %v2609
        %v2635 = vpack.c.b16 %v2612, %v2611
        %v2636 = vpack.c.b16 %v2614, %v2613
        %v2637 = vpack.c.b16 %v2616, %v2615
        %v2638 = vpack.c.b16 %v2618, %v2617
        %v2639 = vpack.c.b16 %v2620, %v2619
        %v2640 = vpack.c.b16 %v2622, %v2621
        %v2641 = vpack.c.b16 %v2624, %v2623
        %v2642 = vpack.c.b16 %v2626, %v2625
        %2659 = vmatprep.subr.bf16.mxu0 0
        %2660 = vmatpush1.bf16.msra.mxu0 %v2634
        %2661 = vmatprep.subr.bf16.mxu0 0
        %2662 = vmatpush1.bf16.msra.mxu0 %v2633
        %2663 = vmatprep.subr.bf16.mxu0 0
        %2664 = vmatpush1.bf16.msra.mxu0 %v2632
        %2665 = vmatprep.subr.bf16.mxu0 0
        %2666 = vmatpush1.bf16.msra.mxu0 %v2631
        %2667 = vmatprep.subr.bf16.mxu0 0
        %2668 = vmatpush1.bf16.msra.mxu0 %v2630
        %2669 = vmatprep.subr.bf16.mxu0 0
        %2670 = vmatpush1.bf16.msra.mxu0 %v2629
        %2671 = vmatprep.subr.bf16.mxu0 0
        %2672 = vmatpush1.bf16.msra.mxu0 %v2628
        %2673 = vmatprep.subr.bf16.mxu0 0
        %2674 = vmatpush1.bf16.msra.mxu0 %v2627
        %2675 = vmatprep.subr.bf16.mxu0 0
        %2676 = vmatpush2.bf16.msra.mxu0 %v2642
        %2677 = vmatprep.subr.bf16.mxu0 0
        %2678 = vmatpush2.bf16.msra.mxu0 %v2641
        %2679 = vmatprep.subr.bf16.mxu0 0
        %2680 = vmatpush2.bf16.msra.mxu0 %v2640
        %2681 = vmatprep.subr.bf16.mxu0 0
        %2682 = vmatpush2.bf16.msra.mxu0 %v2639
        %2683 = vmatprep.subr.bf16.mxu0 0
        %2684 = vmatpush2.bf16.msra.mxu0 %v2638
        %2685 = vmatprep.subr.bf16.mxu0 0
        %2686 = vmatpush2.bf16.msra.mxu0 %v2637
        %2687 = vmatprep.subr.bf16.mxu0 0
        %2688 = vmatpush2.bf16.msra.mxu0 %v2636
        %2689 = vmatprep.subr.bf16.mxu0 0
        %2690 = vmatpush2.bf16.msra.mxu0 %v2635
        %2691 = vmatprep.mubr.bf16.mxu0 %v2523
        %2692 = vmatmul.mubr.bf16.gmra.mxu0 %v2522
        %v2693 = vpop.f32.mrf.mxu0
        %v2694 = vadd.f32 %v2561, %v2693
        %v2695 = vpop.f32.mrf.mxu0
        %v2696 = vpop.f32.mrf.mxu0
        %v2697 = vadd.f32 %v2561, %v2696
        %v2698 = vpop.f32.mrf.mxu0
        %2699 = vdwg.mxu0
        %v2700 = vadd.f32 %v2292, %v2694
        %v2701 = vadd.f32 %v2293, %v2697
        %2702 = vst [vmem:[%s822] sm:$0xff] %v2700
        %2703 = vst [vmem:[%s822 + $0x8] sm:$0xff] %v2701
        %s2704 = smul.u32 2, %s39
        %p2705 = scmp.lt.s32.totalorder %s2704, 1
        %s2706 = scalar_select %p2705, %s2704, 1
        %s2707 = smul.addr %s2706, 8
        %s2708 = scalar_lea.vmem %s15, %s2707
        // Predicated region
        $region105: #{vit1d_forward_pallas.2} parent=79 // pred_check
          %p2709 = pneg %p450
        $region106: #{vit1d_forward_pallas.2} parent=79 // pred_check_branch
          %2711 = sbr.rel (%p2709) target = $region108
        $region107: #{vit1d_forward_pallas.2} parent=79 // pred_region
          %s2712 = smul.u32 2, %s39
        $region108: #{vit1d_forward_pallas.2} parent=79 // pred_fallthru
          _
        // Predicated region
        $region109: #{vit1d_forward_pallas.2} parent=79 // pred_check
          %p2713 = pneg %p450
        $region110: #{vit1d_forward_pallas.2} parent=79 // pred_check_branch
          %2715 = sbr.rel (%p2713) target = $region112
        $region111: #{vit1d_forward_pallas.2} parent=79 // pred_region
          %s2716 = smul.u32 2, %s39
          %p2717 = scmp.lt.s32.totalorder %s2716, 1
          %s2718 = scalar_select %p2717, %s2716, 1
          %s2719 = smul.addr %s2718, 8
          %s2720 = scalar_lea.vmem %s15, %s2719
        $region112: #{vit1d_forward_pallas.2} parent=79 // pred_fallthru
          _
      $region80: #{vit1d_forward_pallas.2} parent=5 // pred_fallthru
        _
      %p2721 = scmp.le.s32.totalorder 2, %s30
      // Predicated region
      $region113: #{vit1d_forward_pallas.2} parent=5 // pred_check
        %p2722 = pneg %p2721
      $region114: #{vit1d_forward_pallas.2} parent=5 // pred_check_branch
        %2724 = sbr.rel (%p2722) target = $region116
      $region115: #{vit1d_forward_pallas.2} parent=5 // pred_region
        %s2725 = ssub.s32 %s30, 2
      $region116: #{vit1d_forward_pallas.2} parent=5 // pred_fallthru
        _
    $region6: #{vit1d_forward_pallas.2} parent=1 // loop_footer
      %s34 = sadd.s32 1, %s30
    $region7: #{vit1d_forward_pallas.2} parent=1 // loop_footer_branch
      %29 = sbr.rel target = $region3
    $region8: #{vit1d_forward_pallas.2} parent=1 // loop_exit
      _
    %2726 = vsyncpa [#allocation4], 1
    %s2727 = scalar_lea.sflag [#allocation4], 1
    %2728 = vsyncpa %s2727, 1
    %2729 = vsyncpa [#allocation6], 1
    %s2730 = scalar_lea.sflag [#allocation6], 1
    %2731 = vsyncpa %s2730, 1
    %2732 = vsyncpa [#allocation9], 1
    %s2733 = scalar_lea.sflag [#allocation9], 1
    %2734 = vsyncpa %s2733, 1

</llo_original>
